<compile_context>
chip_gen: v6e
topology: v6e:2x2x1
jax: 0.10.0
libtpu: 0.0.40
codegen_flags: <defaults>
</compile_context>

<pallas_src>
import functools

import jax
import jax.numpy as jnp
from jax.experimental import pallas as pl
from jax.experimental.pallas import tpu as pltpu

W_LIST = [32, 64, 128, 256, 512]
ALPHA = 1.67
BN_EPS = 1e-5


# ---------------------------------------------------------------------------
# Fused Pallas kernel: whole DC_Block_Encoder for one batch image.
# ---------------------------------------------------------------------------
def _dc_block_encoder_kernel(x_ref, w1_ref, s1_ref, b1_ref,
                             w2_ref, s2_ref, b2_ref,
                             w3_ref, s3_ref, b3_ref,
                             o_ref, flat_ref, col_ref,
                             *, H, W, c_in, c1, c2, c3):
    """One batch image.

    x_ref  : (1, c_in, H*W)  f32   input, channel-major, spatial flattened
    w*_ref : (Cout, 9*Cin)   bf16  im2col-folded (and branch-combined) weights
    s*_ref : (Cout, 1)       f32   folded BN scale
    b*_ref : (Cout, 1)       f32   folded BN shift (includes conv bias)
    o_ref  : (1, c1+c2+c3, H*W) f32  left+right sum of [h1|h2|h3]
    flat_ref : (C_max, pad + H*W + pad) f32  zero-bordered activation buffer
    col_ref  : (9*C_max, H*W)           f32  im2col patch matrix
    """
    HW = H * W
    pad = (flat_ref.shape[1] - HW) // 2       # lane-aligned halo (>= W+1)

    # Column-in-row index of every flattened spatial position; masks the taps
    # that would otherwise wrap across image rows.  Hoisted out of the loops.
    col_idx = jax.lax.broadcasted_iota(jnp.int32, (1, HW), 1) % W
    left_ok = col_idx >= 1            # horizontal offset -1 is valid
    right_ok = col_idx <= W - 2       # horizontal offset +1 is valid

    # Zero once: the halo columns are never written, so they stay zero and
    # provide the conv's zero padding for every stage.
    flat_ref[...] = jnp.zeros_like(flat_ref)

    def conv_bn_relu(cin, w_ref, s_ref, b_ref):
        # Build im2col (9*cin, HW): 9 shifted copies of the (cin, HW)
        # activation, tap-major rows, written into VMEM scratch.
        taps = [(dy - 1, dx - 1) for dy in range(3) for dx in range(3)]
        for t, (oy, ox) in enumerate(taps):
            start = pad + oy * W + ox                  # static offset
            win = flat_ref[0:cin, start:start + HW]
            if ox == -1:
                win = jnp.where(left_ok, win, jnp.zeros_like(win))
            elif ox == 1:
                win = jnp.where(right_ok, win, jnp.zeros_like(win))
            col_ref[t * cin:(t + 1) * cin, :] = win
        # Single MXU dot per conv stage: bf16 operands, f32 accumulation.
        patches = col_ref[0:9 * cin, :].astype(jnp.bfloat16)
        acc = jnp.dot(w_ref[...], patches, preferred_element_type=jnp.float32)
        # Folded BN + ReLU in f32 on the VPU.
        return jnp.maximum(acc * s_ref[...] + b_ref[...], 0.0)   # (cout, HW)

    # Stage 0: load this image into the padded activation buffer.
    flat_ref[0:c_in, pad:pad + HW] = x_ref[0]

    # conv1: left & right share the same input -> weights stacked along Cout.
    hc1 = conv_bn_relu(c_in, w1_ref, s1_ref, b1_ref)              # (2*c1, HW)
    flat_ref[0:2 * c1, pad:pad + HW] = hc1
    o_ref[0, 0:c1, :] = hc1[0:c1, :] + hc1[c1:2 * c1, :]

    # conv2: block-diagonal combined weight -> both branches in one dot.
    hc2 = conv_bn_relu(2 * c1, w2_ref, s2_ref, b2_ref)            # (2*c2, HW)
    flat_ref[0:2 * c2, pad:pad + HW] = hc2
    o_ref[0, c1:c1 + c2, :] = hc2[0:c2, :] + hc2[c2:2 * c2, :]

    # conv3: block-diagonal combined weight.
    hc3 = conv_bn_relu(2 * c2, w3_ref, s3_ref, b3_ref)            # (2*c3, HW)
    o_ref[0, c1 + c2:c1 + c2 + c3, :] = hc3[0:c3, :] + hc3[c3:2 * c3, :]


def dc_block_encoder_fwd(x_nchw, params):
    """x_nchw: (N, C_in, H, W) f32 -> (N, c1+c2+c3, H, W) f32."""
    N, c_in, H, W = x_nchw.shape
    HW = H * W
    c1 = params["w1"].shape[0] // 2
    c2 = params["w2"].shape[0] // 2
    c3 = params["w3"].shape[0] // 2
    c_total = c1 + c2 + c3
    c_flat = max(c_in, 2 * c1, 2 * c2)              # widest conv input
    pad = ((W + 1 + 127) // 128) * 128              # lane-aligned halo

    x = x_nchw.reshape(N, c_in, HW)                 # free reshape, no transpose

    kern = functools.partial(_dc_block_encoder_kernel,
                             H=H, W=W, c_in=c_in, c1=c1, c2=c2, c3=c3)

    def _rep2d(a):                                  # whole-array, grid-constant
        return pl.BlockSpec(a.shape, lambda n: (0, 0))

    out = pl.pallas_call(
        kern,
        out_shape=jax.ShapeDtypeStruct((N, c_total, HW), x_nchw.dtype),
        grid=(N,),
        in_specs=[
            pl.BlockSpec((1, c_in, HW), lambda n: (n, 0, 0)),
            _rep2d(params["w1"]), _rep2d(params["s1"]), _rep2d(params["b1"]),
            _rep2d(params["w2"]), _rep2d(params["s2"]), _rep2d(params["b2"]),
            _rep2d(params["w3"]), _rep2d(params["s3"]), _rep2d(params["b3"]),
        ],
        out_specs=pl.BlockSpec((1, c_total, HW), lambda n: (n, 0, 0)),
        scratch_shapes=[
            pltpu.VMEM((c_flat, HW + 2 * pad), jnp.float32),   # padded act
            pltpu.VMEM((9 * c_flat, HW), jnp.float32),          # im2col
        ],
        compiler_params=pltpu.CompilerParams(
            dimension_semantics=("parallel",)),     # v7x: one image per TC
    )(x, params["w1"], params["s1"], params["b1"],
      params["w2"], params["s2"], params["b2"],
      params["w3"], params["s3"], params["b3"])
    return out.reshape(N, c_total, H, W)


# ---------------------------------------------------------------------------
# Deterministic parameter construction (Conv2d + BatchNorm2d, eval-mode folded)
# ---------------------------------------------------------------------------
def init_conv_bn(key, c_in, c_out):
    k_w, k_b, k_g, k_be, k_m, k_v = jax.random.split(key, 6)
    fan_in = 3 * 3 * c_in
    w = jax.random.normal(k_w, (c_out, c_in, 3, 3), jnp.float32) / jnp.sqrt(fan_in)
    conv_b = 0.05 * jax.random.normal(k_b, (c_out,), jnp.float32)
    gamma = 1.0 + 0.1 * jax.random.normal(k_g, (c_out,), jnp.float32)
    beta = 0.1 * jax.random.normal(k_be, (c_out,), jnp.float32)
    mean = 0.1 * jax.random.normal(k_m, (c_out,), jnp.float32)
    var = 0.5 + jnp.abs(jax.random.normal(k_v, (c_out,), jnp.float32))
    scale = gamma / jnp.sqrt(var + BN_EPS)
    shift = beta + scale * (conv_b - mean)
    return {"w": w, "scale": scale, "shift": shift}


def init_miniblock(key, c_in, w_scaled):
    c1, c2, c3 = int(w_scaled / 6), int(w_scaled / 3), int(w_scaled / 2)
    k1, k2, k3 = jax.random.split(key, 3)
    return (init_conv_bn(k1, c_in, c1),
            init_conv_bn(k2, c1, c2),
            init_conv_bn(k3, c2, c3))


def init_dc_block_encoder(key, w_base, initial_channels):
    w_scaled = w_base * ALPHA             # init_block=True: c_in = initial_channels
    k_l, k_r = jax.random.split(key, 2)
    return {"left": init_miniblock(k_l, initial_channels, w_scaled),
            "right": init_miniblock(k_r, initial_channels, w_scaled)}


# --- kernel-layout weight packing (im2col fold + branch merging), done once ---
def _fold_taps(w):
    """(Cout, Cin, 3, 3) torch layout -> (Cout, 9*Cin), K ordered tap-major."""
    c_out, c_in = w.shape[0], w.shape[1]
    return jnp.transpose(w, (0, 2, 3, 1)).reshape(c_out, 9 * c_in)


def _stack_shared_input(p_left, p_right):
    """conv1: both branches read the same input -> stack along Cout."""
    w = jnp.concatenate([_fold_taps(p_left["w"]), _fold_taps(p_right["w"])], axis=0)
    s = jnp.concatenate([p_left["scale"], p_right["scale"]])[:, None]
    b = jnp.concatenate([p_left["shift"], p_right["shift"]])[:, None]
    return w.astype(jnp.bfloat16), s, b


def _stack_block_diag(p_left, p_right):
    """conv2/conv3: inputs are [left | right] channels -> block-diagonal weight."""
    c_out, c_in = p_left["w"].shape[0], p_left["w"].shape[1]
    w4 = jnp.zeros((2 * c_out, 3, 3, 2 * c_in), jnp.float32)
    w4 = w4.at[:c_out, :, :, :c_in].set(jnp.transpose(p_left["w"], (0, 2, 3, 1)))
    w4 = w4.at[c_out:, :, :, c_in:].set(jnp.transpose(p_right["w"], (0, 2, 3, 1)))
    w = w4.reshape(2 * c_out, 9 * 2 * c_in)
    s = jnp.concatenate([p_left["scale"], p_right["scale"]])[:, None]
    b = jnp.concatenate([p_left["shift"], p_right["shift"]])[:, None]
    return w.astype(jnp.bfloat16), s, b


def build_kernel_params(raw):
    l1, l2, l3 = raw["left"]
    r1, r2, r3 = raw["right"]
    w1, s1, b1 = _stack_shared_input(l1, r1)
    w2, s2, b2 = _stack_block_diag(l2, r2)
    w3, s3, b3 = _stack_block_diag(l3, r3)
    return {"w1": w1, "s1": s1, "b1": b1,
            "w2": w2, "s2": s2, "b2": b2,
            "w3": w3, "s3": s3, "b3": b3}


# ---------------------------------------------------------------------------
# Pure-JAX reference (f32) for a correctness check.
# ---------------------------------------------------------------------------
def _ref_conv_bn_relu(x, p):
    y = jax.lax.conv_general_dilated(
        x, p["w"], window_strides=(1, 1), padding=((1, 1), (1, 1)),
        dimension_numbers=("NCHW", "OIHW", "NCHW"))
    y = y * p["scale"][None, :, None, None] + p["shift"][None, :, None, None]
    return jnp.maximum(y, 0.0)


def _ref_miniblock(x, blk):
    h1 = _ref_conv_bn_relu(x, blk[0])
    h2 = _ref_conv_bn_relu(h1, blk[1])
    h3 = _ref_conv_bn_relu(h2, blk[2])
    return jnp.concatenate([h1, h2, h3], axis=1)   # channel concat (see header)


def _ref_encoder(x, raw):
    return _ref_miniblock(x, raw["left"]) + _ref_miniblock(x, raw["right"])


# ---------------------------------------------------------------------------
if __name__ == "__main__":
    key = jax.random.PRNGKey(0)
    k_x, k_p = jax.random.split(key)

    N, C_IN, H, W_SP = 2, 4, 16, 16
    w_base = W_LIST[0]   # 32 -> w*alpha = 53.44 -> channels (8, 17, 26)

    x = jax.random.normal(k_x, (N, C_IN, H, W_SP), jnp.float32)
    raw = init_dc_block_encoder(k_p, w_base, initial_channels=C_IN)
    kparams = build_kernel_params(raw)

    out = jax.jit(dc_block_encoder_fwd)(x, kparams)
    out = jax.block_until_ready(out)

    w_scaled = w_base * ALPHA
    expected_c = int(w_scaled / 6) + int(w_scaled / 3) + int(w_scaled / 2)
    assert out.shape == (N, expected_c, H, W_SP), out.shape
    assert bool(jnp.all(jnp.isfinite(out)))
    assert bool(jnp.all(out >= 0.0))   # sum of two ReLU outputs is non-negative

    # Numerical check vs. an f32 XLA reference (kernel matmuls run in bf16).
    ref = _ref_encoder(x, raw)
    err = float(jnp.max(jnp.abs(out - ref)))
    tol = 0.05 + 0.05 * float(jnp.max(jnp.abs(ref)))
    assert err <= tol, (err, tol)

    print("KERNEL_OK")
</pallas_src>

<mosaic_0001>
module attributes {stable_mosaic.version = 11 : i64} {
  func.func @_dc_block_encoder_kernel(%arg0: i32, %arg1: memref<1x4x256xf32, #tpu.memory_space<vmem>>, %arg2: memref<16x36xbf16, #tpu.memory_space<vmem>>, %arg3: memref<16x1xf32, #tpu.memory_space<vmem>>, %arg4: memref<16x1xf32, #tpu.memory_space<vmem>>, %arg5: memref<34x144xbf16, #tpu.memory_space<vmem>>, %arg6: memref<34x1xf32, #tpu.memory_space<vmem>>, %arg7: memref<34x1xf32, #tpu.memory_space<vmem>>, %arg8: memref<52x306xbf16, #tpu.memory_space<vmem>>, %arg9: memref<52x1xf32, #tpu.memory_space<vmem>>, %arg10: memref<52x1xf32, #tpu.memory_space<vmem>>, %arg11: memref<1x51x256xf32, #tpu.memory_space<vmem>>, %arg12: memref<34x512xf32, #tpu.memory_space<vmem>>, %arg13: memref<306x256xf32, #tpu.memory_space<vmem>>) attributes {dimension_semantics = [#tpu.dimension_semantics<parallel>], iteration_bounds = array<i64: 2>, scalar_prefetch = 0 : i64, scratch_operands = 2 : i64, tpu.core_type = #tpu.core_type<tc>, window_params = [{transform_indices = @transform_0, window_bounds = array<i64: 1, 4, 256>}, {pipeline_mode = #tpu.pipeline_mode<synchronous>, transform_indices = @transform_1, window_bounds = array<i64: 16, 36>}, {pipeline_mode = #tpu.pipeline_mode<synchronous>, transform_indices = @transform_2, window_bounds = array<i64: 16, 1>}, {pipeline_mode = #tpu.pipeline_mode<synchronous>, transform_indices = @transform_3, window_bounds = array<i64: 16, 1>}, {pipeline_mode = #tpu.pipeline_mode<synchronous>, transform_indices = @transform_4, window_bounds = array<i64: 34, 144>}, {pipeline_mode = #tpu.pipeline_mode<synchronous>, transform_indices = @transform_5, window_bounds = array<i64: 34, 1>}, {pipeline_mode = #tpu.pipeline_mode<synchronous>, transform_indices = @transform_6, window_bounds = array<i64: 34, 1>}, {pipeline_mode = #tpu.pipeline_mode<synchronous>, transform_indices = @transform_7, window_bounds = array<i64: 52, 306>}, {pipeline_mode = #tpu.pipeline_mode<synchronous>, transform_indices = @transform_8, window_bounds = array<i64: 52, 1>}, {pipeline_mode = #tpu.pipeline_mode<synchronous>, transform_indices = @transform_9, window_bounds = array<i64: 52, 1>}, {transform_indices = @transform_10, window_bounds = array<i64: 1, 51, 256>}]} {
    %0 = tpu.iota {dimensions = array<i32: 1>} : vector<1x256xi32>
    %c16_i32 = arith.constant 16 : i32
    %c0_i32 = arith.constant 0 : i32
    %1 = arith.cmpi eq, %c16_i32, %c0_i32 : i32
    %c1_i32 = arith.constant 1 : i32
    %2 = arith.select %1, %c1_i32, %c16_i32 : i32
    %3 = vector.broadcast %2 : i32 to vector<1x256xi32>
    %4 = arith.remsi %0, %3 : vector<1x256xi32>
    %c0_i32_0 = arith.constant 0 : i32
    %5 = vector.broadcast %c0_i32_0 : i32 to vector<1x256xi32>
    %6 = arith.cmpi ne, %4, %5 : vector<1x256xi32>
    %c0_i32_1 = arith.constant 0 : i32
    %7 = vector.broadcast %c0_i32_1 : i32 to vector<1x256xi32>
    %8 = arith.cmpi slt, %4, %7 : vector<1x256xi32>
    %c0_i32_2 = arith.constant 0 : i32
    %9 = arith.cmpi slt, %2, %c0_i32_2 : i32
    %10 = vector.broadcast %9 : i1 to vector<1x256xi1>
    %11 = vector.broadcast %10 : vector<1x256xi1> to vector<1x256xi1>
    %12 = arith.xori %8, %11 : vector<1x256xi1>
    %13 = arith.andi %12, %6 : vector<1x256xi1>
    %14 = vector.broadcast %2 : i32 to vector<1x256xi32>
    %15 = arith.addi %4, %14 : vector<1x256xi32>
    %16 = arith.select %13, %15, %4 : vector<1x256xi1>, vector<1x256xi32>
    %c1_i32_3 = arith.constant 1 : i32
    %17 = vector.broadcast %c1_i32_3 : i32 to vector<1x256xi32>
    %18 = arith.cmpi sge, %16, %17 : vector<1x256xi32>
    %c14_i32 = arith.constant 14 : i32
    %19 = vector.broadcast %c14_i32 : i32 to vector<1x256xi32>
    %20 = arith.cmpi sle, %16, %19 : vector<1x256xi32>
    %cst = arith.constant 0.000000e+00 : f32
    %21 = vector.broadcast %cst : f32 to vector<34x512xf32>
    %c0 = arith.constant 0 : index
    %c0_4 = arith.constant 0 : index
    %22 = vector.load %arg12[%c0, %c0_4] : memref<34x512xf32, #tpu.memory_space<vmem>>, vector<34x512xf32>
    tpu.vector_store %arg12[%c0, %c0_4], %21 {strides = array<i32>} : memref<34x512xf32, #tpu.memory_space<vmem>>, vector<34x512xf32>,
    %c0_5 = arith.constant 0 : index
    %c0_6 = arith.constant 0 : index
    %c0_7 = arith.constant 0 : index
    %23 = vector.load %arg1[%c0_5, %c0_6, %c0_7] : memref<1x4x256xf32, #tpu.memory_space<vmem>>, vector<1x4x256xf32>
    %24 = vector.shape_cast %23 : vector<1x4x256xf32> to vector<4x256xf32>
    %c0_8 = arith.constant 0 : index
    %c128 = arith.constant 128 : index
    %25 = vector.load %arg12[%c0_8, %c128] : memref<34x512xf32, #tpu.memory_space<vmem>>, vector<4x256xf32>
    tpu.vector_store %arg12[%c0_8, %c128], %24 {strides = array<i32>} : memref<34x512xf32, #tpu.memory_space<vmem>>, vector<4x256xf32>,
    %c0_9 = arith.constant 0 : index
    %c111 = arith.constant 111 : index
    %26 = vector.load %arg12[%c0_9, %c111] : memref<34x512xf32, #tpu.memory_space<vmem>>, vector<4x256xf32>
    %cst_10 = arith.constant 0.000000e+00 : f32
    %27 = vector.broadcast %cst_10 : f32 to vector<4x256xf32>
    %28 = vector.shape_cast %18 : vector<1x256xi1> to vector<1x256xi1>
    %29 = vector.broadcast %28 : vector<1x256xi1> to vector<4x256xi1>
    %30 = arith.select %29, %26, %27 : vector<4x256xi1>, vector<4x256xf32>
    %c0_11 = arith.constant 0 : index
    %c0_12 = arith.constant 0 : index
    %31 = vector.load %arg13[%c0_11, %c0_12] : memref<306x256xf32, #tpu.memory_space<vmem>>, vector<4x256xf32>
    tpu.vector_store %arg13[%c0_11, %c0_12], %30 {strides = array<i32>} : memref<306x256xf32, #tpu.memory_space<vmem>>, vector<4x256xf32>,
    %c0_13 = arith.constant 0 : index
    %c112 = arith.constant 112 : index
    %32 = vector.load %arg12[%c0_13, %c112] : memref<34x512xf32, #tpu.memory_space<vmem>>, vector<4x256xf32>
    %c4 = arith.constant 4 : index
    %c0_14 = arith.constant 0 : index
    %33 = vector.load %arg13[%c4, %c0_14] : memref<306x256xf32, #tpu.memory_space<vmem>>, vector<4x256xf32>
    tpu.vector_store %arg13[%c4, %c0_14], %32 {strides = array<i32>} : memref<306x256xf32, #tpu.memory_space<vmem>>, vector<4x256xf32>,
    %c0_15 = arith.constant 0 : index
    %c113 = arith.constant 113 : index
    %34 = vector.load %arg12[%c0_15, %c113] : memref<34x512xf32, #tpu.memory_space<vmem>>, vector<4x256xf32>
    %cst_16 = arith.constant 0.000000e+00 : f32
    %35 = vector.broadcast %cst_16 : f32 to vector<4x256xf32>
    %36 = vector.shape_cast %20 : vector<1x256xi1> to vector<1x256xi1>
    %37 = vector.broadcast %36 : vector<1x256xi1> to vector<4x256xi1>
    %38 = arith.select %37, %34, %35 : vector<4x256xi1>, vector<4x256xf32>
    %c8 = arith.constant 8 : index
    %c0_17 = arith.constant 0 : index
    %39 = vector.load %arg13[%c8, %c0_17] : memref<306x256xf32, #tpu.memory_space<vmem>>, vector<4x256xf32>
    tpu.vector_store %arg13[%c8, %c0_17], %38 {strides = array<i32>} : memref<306x256xf32, #tpu.memory_space<vmem>>, vector<4x256xf32>,
    %c0_18 = arith.constant 0 : index
    %c127 = arith.constant 127 : index
    %40 = vector.load %arg12[%c0_18, %c127] : memref<34x512xf32, #tpu.memory_space<vmem>>, vector<4x256xf32>
    %cst_19 = arith.constant 0.000000e+00 : f32
    %41 = vector.broadcast %cst_19 : f32 to vector<4x256xf32>
    %42 = vector.shape_cast %18 : vector<1x256xi1> to vector<1x256xi1>
    %43 = vector.broadcast %42 : vector<1x256xi1> to vector<4x256xi1>
    %44 = arith.select %43, %40, %41 : vector<4x256xi1>, vector<4x256xf32>
    %c12 = arith.constant 12 : index
    %c0_20 = arith.constant 0 : index
    %45 = vector.load %arg13[%c12, %c0_20] : memref<306x256xf32, #tpu.memory_space<vmem>>, vector<4x256xf32>
    tpu.vector_store %arg13[%c12, %c0_20], %44 {strides = array<i32>} : memref<306x256xf32, #tpu.memory_space<vmem>>, vector<4x256xf32>,
    %c0_21 = arith.constant 0 : index
    %c128_22 = arith.constant 128 : index
    %46 = vector.load %arg12[%c0_21, %c128_22] : memref<34x512xf32, #tpu.memory_space<vmem>>, vector<4x256xf32>
    %c16 = arith.constant 16 : index
    %c0_23 = arith.constant 0 : index
    %47 = vector.load %arg13[%c16, %c0_23] : memref<306x256xf32, #tpu.memory_space<vmem>>, vector<4x256xf32>
    tpu.vector_store %arg13[%c16, %c0_23], %46 {strides = array<i32>} : memref<306x256xf32, #tpu.memory_space<vmem>>, vector<4x256xf32>,
    %c0_24 = arith.constant 0 : index
    %c129 = arith.constant 129 : index
    %48 = vector.load %arg12[%c0_24, %c129] : memref<34x512xf32, #tpu.memory_space<vmem>>, vector<4x256xf32>
    %cst_25 = arith.constant 0.000000e+00 : f32
    %49 = vector.broadcast %cst_25 : f32 to vector<4x256xf32>
    %50 = vector.shape_cast %20 : vector<1x256xi1> to vector<1x256xi1>
    %51 = vector.broadcast %50 : vector<1x256xi1> to vector<4x256xi1>
    %52 = arith.select %51, %48, %49 : vector<4x256xi1>, vector<4x256xf32>
    %c20 = arith.constant 20 : index
    %c0_26 = arith.constant 0 : index
    %53 = vector.load %arg13[%c20, %c0_26] : memref<306x256xf32, #tpu.memory_space<vmem>>, vector<4x256xf32>
    tpu.vector_store %arg13[%c20, %c0_26], %52 {strides = array<i32>} : memref<306x256xf32, #tpu.memory_space<vmem>>, vector<4x256xf32>,
    %c0_27 = arith.constant 0 : index
    %c143 = arith.constant 143 : index
    %54 = vector.load %arg12[%c0_27, %c143] : memref<34x512xf32, #tpu.memory_space<vmem>>, vector<4x256xf32>
    %cst_28 = arith.constant 0.000000e+00 : f32
    %55 = vector.broadcast %cst_28 : f32 to vector<4x256xf32>
    %56 = vector.shape_cast %18 : vector<1x256xi1> to vector<1x256xi1>
    %57 = vector.broadcast %56 : vector<1x256xi1> to vector<4x256xi1>
    %58 = arith.select %57, %54, %55 : vector<4x256xi1>, vector<4x256xf32>
    %c24 = arith.constant 24 : index
    %c0_29 = arith.constant 0 : index
    %59 = vector.load %arg13[%c24, %c0_29] : memref<306x256xf32, #tpu.memory_space<vmem>>, vector<4x256xf32>
    tpu.vector_store %arg13[%c24, %c0_29], %58 {strides = array<i32>} : memref<306x256xf32, #tpu.memory_space<vmem>>, vector<4x256xf32>,
    %c0_30 = arith.constant 0 : index
    %c144 = arith.constant 144 : index
    %60 = vector.load %arg12[%c0_30, %c144] : memref<34x512xf32, #tpu.memory_space<vmem>>, vector<4x256xf32>
    %c28 = arith.constant 28 : index
    %c0_31 = arith.constant 0 : index
    %61 = vector.load %arg13[%c28, %c0_31] : memref<306x256xf32, #tpu.memory_space<vmem>>, vector<4x256xf32>
    tpu.vector_store %arg13[%c28, %c0_31], %60 {strides = array<i32>} : memref<306x256xf32, #tpu.memory_space<vmem>>, vector<4x256xf32>,
    %c0_32 = arith.constant 0 : index
    %c145 = arith.constant 145 : index
    %62 = vector.load %arg12[%c0_32, %c145] : memref<34x512xf32, #tpu.memory_space<vmem>>, vector<4x256xf32>
    %cst_33 = arith.constant 0.000000e+00 : f32
    %63 = vector.broadcast %cst_33 : f32 to vector<4x256xf32>
    %64 = vector.shape_cast %20 : vector<1x256xi1> to vector<1x256xi1>
    %65 = vector.broadcast %64 : vector<1x256xi1> to vector<4x256xi1>
    %66 = arith.select %65, %62, %63 : vector<4x256xi1>, vector<4x256xf32>
    %c32 = arith.constant 32 : index
    %c0_34 = arith.constant 0 : index
    %67 = vector.load %arg13[%c32, %c0_34] : memref<306x256xf32, #tpu.memory_space<vmem>>, vector<4x256xf32>
    tpu.vector_store %arg13[%c32, %c0_34], %66 {strides = array<i32>} : memref<306x256xf32, #tpu.memory_space<vmem>>, vector<4x256xf32>,
    %c0_35 = arith.constant 0 : index
    %c0_36 = arith.constant 0 : index
    %68 = vector.load %arg13[%c0_35, %c0_36] : memref<306x256xf32, #tpu.memory_space<vmem>>, vector<36x256xf32>
    %69 = arith.truncf %68 : vector<36x256xf32> to vector<36x256xbf16>
    %c0_37 = arith.constant 0 : index
    %c0_38 = arith.constant 0 : index
    %70 = vector.load %arg2[%c0_37, %c0_38] : memref<16x36xbf16, #tpu.memory_space<vmem>>, vector<16x36xbf16>
    %cst_39 = arith.constant dense<0.000000e+00> : vector<16x256xf32>
    %71 = tpu.matmul %70, %69, %cst_39 {dimension_numbers = #tpu.dot_dimension_numbers<[1], [0], [0], [1], [0, 0, 1, 1], [], []>} : vector<16x36xbf16>, vector<36x256xbf16>, vector<16x256xf32> -> vector<16x256xf32>
    %c0_40 = arith.constant 0 : index
    %c0_41 = arith.constant 0 : index
    %72 = vector.load %arg3[%c0_40, %c0_41] : memref<16x1xf32, #tpu.memory_space<vmem>>, vector<16x1xf32>
    %73 = vector.broadcast %72 : vector<16x1xf32> to vector<16x256xf32>
    %74 = arith.mulf %71, %73 : vector<16x256xf32>
    %c0_42 = arith.constant 0 : index
    %c0_43 = arith.constant 0 : index
    %75 = vector.load %arg4[%c0_42, %c0_43] : memref<16x1xf32, #tpu.memory_space<vmem>>, vector<16x1xf32>
    %76 = vector.broadcast %75 : vector<16x1xf32> to vector<16x256xf32>
    %77 = arith.addf %74, %76 : vector<16x256xf32>
    %cst_44 = arith.constant 0.000000e+00 : f32
    %78 = vector.broadcast %cst_44 : f32 to vector<16x256xf32>
    %79 = arith.maximumf %77, %78 : vector<16x256xf32>
    %c0_45 = arith.constant 0 : index
    %c128_46 = arith.constant 128 : index
    %80 = vector.load %arg12[%c0_45, %c128_46] : memref<34x512xf32, #tpu.memory_space<vmem>>, vector<16x256xf32>
    tpu.vector_store %arg12[%c0_45, %c128_46], %79 {strides = array<i32>} : memref<34x512xf32, #tpu.memory_space<vmem>>, vector<16x256xf32>,
    %81 = vector.extract_strided_slice %79 {offsets = [0, 0], sizes = [8, 256], strides = [1, 1]} : vector<16x256xf32> to vector<8x256xf32>
    %82 = vector.extract_strided_slice %79 {offsets = [8, 0], sizes = [8, 256], strides = [1, 1]} : vector<16x256xf32> to vector<8x256xf32>
    %83 = arith.addf %81, %82 : vector<8x256xf32>
    %c0_47 = arith.constant 0 : index
    %c0_48 = arith.constant 0 : index
    %c0_49 = arith.constant 0 : index
    %84 = vector.load %arg11[%c0_47, %c0_48, %c0_49] : memref<1x51x256xf32, #tpu.memory_space<vmem>>, vector<1x8x256xf32>
    %85 = vector.shape_cast %84 : vector<1x8x256xf32> to vector<8x256xf32>
    %86 = vector.shape_cast %83 : vector<8x256xf32> to vector<1x8x256xf32>
    tpu.vector_store %arg11[%c0_47, %c0_48, %c0_49], %86 {strides = array<i32>} : memref<1x51x256xf32, #tpu.memory_space<vmem>>, vector<1x8x256xf32>,
    %c0_50 = arith.constant 0 : index
    %c111_51 = arith.constant 111 : index
    %87 = vector.load %arg12[%c0_50, %c111_51] : memref<34x512xf32, #tpu.memory_space<vmem>>, vector<16x256xf32>
    %cst_52 = arith.constant 0.000000e+00 : f32
    %88 = vector.broadcast %cst_52 : f32 to vector<16x256xf32>
    %89 = vector.shape_cast %18 : vector<1x256xi1> to vector<1x256xi1>
    %90 = vector.broadcast %89 : vector<1x256xi1> to vector<16x256xi1>
    %91 = arith.select %90, %87, %88 : vector<16x256xi1>, vector<16x256xf32>
    %c0_53 = arith.constant 0 : index
    %c0_54 = arith.constant 0 : index
    %92 = vector.load %arg13[%c0_53, %c0_54] : memref<306x256xf32, #tpu.memory_space<vmem>>, vector<16x256xf32>
    tpu.vector_store %arg13[%c0_53, %c0_54], %91 {strides = array<i32>} : memref<306x256xf32, #tpu.memory_space<vmem>>, vector<16x256xf32>,
    %c0_55 = arith.constant 0 : index
    %c112_56 = arith.constant 112 : index
    %93 = vector.load %arg12[%c0_55, %c112_56] : memref<34x512xf32, #tpu.memory_space<vmem>>, vector<16x256xf32>
    %c16_57 = arith.constant 16 : index
    %c0_58 = arith.constant 0 : index
    %94 = vector.load %arg13[%c16_57, %c0_58] : memref<306x256xf32, #tpu.memory_space<vmem>>, vector<16x256xf32>
    tpu.vector_store %arg13[%c16_57, %c0_58], %93 {strides = array<i32>} : memref<306x256xf32, #tpu.memory_space<vmem>>, vector<16x256xf32>,
    %c0_59 = arith.constant 0 : index
    %c113_60 = arith.constant 113 : index
    %95 = vector.load %arg12[%c0_59, %c113_60] : memref<34x512xf32, #tpu.memory_space<vmem>>, vector<16x256xf32>
    %cst_61 = arith.constant 0.000000e+00 : f32
    %96 = vector.broadcast %cst_61 : f32 to vector<16x256xf32>
    %97 = vector.shape_cast %20 : vector<1x256xi1> to vector<1x256xi1>
    %98 = vector.broadcast %97 : vector<1x256xi1> to vector<16x256xi1>
    %99 = arith.select %98, %95, %96 : vector<16x256xi1>, vector<16x256xf32>
    %c32_62 = arith.constant 32 : index
    %c0_63 = arith.constant 0 : index
    %100 = vector.load %arg13[%c32_62, %c0_63] : memref<306x256xf32, #tpu.memory_space<vmem>>, vector<16x256xf32>
    tpu.vector_store %arg13[%c32_62, %c0_63], %99 {strides = array<i32>} : memref<306x256xf32, #tpu.memory_space<vmem>>, vector<16x256xf32>,
    %c0_64 = arith.constant 0 : index
    %c127_65 = arith.constant 127 : index
    %101 = vector.load %arg12[%c0_64, %c127_65] : memref<34x512xf32, #tpu.memory_space<vmem>>, vector<16x256xf32>
    %cst_66 = arith.constant 0.000000e+00 : f32
    %102 = vector.broadcast %cst_66 : f32 to vector<16x256xf32>
    %103 = vector.shape_cast %18 : vector<1x256xi1> to vector<1x256xi1>
    %104 = vector.broadcast %103 : vector<1x256xi1> to vector<16x256xi1>
    %105 = arith.select %104, %101, %102 : vector<16x256xi1>, vector<16x256xf32>
    %c48 = arith.constant 48 : index
    %c0_67 = arith.constant 0 : index
    %106 = vector.load %arg13[%c48, %c0_67] : memref<306x256xf32, #tpu.memory_space<vmem>>, vector<16x256xf32>
    tpu.vector_store %arg13[%c48, %c0_67], %105 {strides = array<i32>} : memref<306x256xf32, #tpu.memory_space<vmem>>, vector<16x256xf32>,
    %c0_68 = arith.constant 0 : index
    %c128_69 = arith.constant 128 : index
    %107 = vector.load %arg12[%c0_68, %c128_69] : memref<34x512xf32, #tpu.memory_space<vmem>>, vector<16x256xf32>
    %c64 = arith.constant 64 : index
    %c0_70 = arith.constant 0 : index
    %108 = vector.load %arg13[%c64, %c0_70] : memref<306x256xf32, #tpu.memory_space<vmem>>, vector<16x256xf32>
    tpu.vector_store %arg13[%c64, %c0_70], %107 {strides = array<i32>} : memref<306x256xf32, #tpu.memory_space<vmem>>, vector<16x256xf32>,
    %c0_71 = arith.constant 0 : index
    %c129_72 = arith.constant 129 : index
    %109 = vector.load %arg12[%c0_71, %c129_72] : memref<34x512xf32, #tpu.memory_space<vmem>>, vector<16x256xf32>
    %cst_73 = arith.constant 0.000000e+00 : f32
    %110 = vector.broadcast %cst_73 : f32 to vector<16x256xf32>
    %111 = vector.shape_cast %20 : vector<1x256xi1> to vector<1x256xi1>
    %112 = vector.broadcast %111 : vector<1x256xi1> to vector<16x256xi1>
    %113 = arith.select %112, %109, %110 : vector<16x256xi1>, vector<16x256xf32>
    %c80 = arith.constant 80 : index
    %c0_74 = arith.constant 0 : index
    %114 = vector.load %arg13[%c80, %c0_74] : memref<306x256xf32, #tpu.memory_space<vmem>>, vector<16x256xf32>
    tpu.vector_store %arg13[%c80, %c0_74], %113 {strides = array<i32>} : memref<306x256xf32, #tpu.memory_space<vmem>>, vector<16x256xf32>,
    %c0_75 = arith.constant 0 : index
    %c143_76 = arith.constant 143 : index
    %115 = vector.load %arg12[%c0_75, %c143_76] : memref<34x512xf32, #tpu.memory_space<vmem>>, vector<16x256xf32>
    %cst_77 = arith.constant 0.000000e+00 : f32
    %116 = vector.broadcast %cst_77 : f32 to vector<16x256xf32>
    %117 = vector.shape_cast %18 : vector<1x256xi1> to vector<1x256xi1>
    %118 = vector.broadcast %117 : vector<1x256xi1> to vector<16x256xi1>
    %119 = arith.select %118, %115, %116 : vector<16x256xi1>, vector<16x256xf32>
    %c96 = arith.constant 96 : index
    %c0_78 = arith.constant 0 : index
    %120 = vector.load %arg13[%c96, %c0_78] : memref<306x256xf32, #tpu.memory_space<vmem>>, vector<16x256xf32>
    tpu.vector_store %arg13[%c96, %c0_78], %119 {strides = array<i32>} : memref<306x256xf32, #tpu.memory_space<vmem>>, vector<16x256xf32>,
    %c0_79 = arith.constant 0 : index
    %c144_80 = arith.constant 144 : index
    %121 = vector.load %arg12[%c0_79, %c144_80] : memref<34x512xf32, #tpu.memory_space<vmem>>, vector<16x256xf32>
    %c112_81 = arith.constant 112 : index
    %c0_82 = arith.constant 0 : index
    %122 = vector.load %arg13[%c112_81, %c0_82] : memref<306x256xf32, #tpu.memory_space<vmem>>, vector<16x256xf32>
    tpu.vector_store %arg13[%c112_81, %c0_82], %121 {strides = array<i32>} : memref<306x256xf32, #tpu.memory_space<vmem>>, vector<16x256xf32>,
    %c0_83 = arith.constant 0 : index
    %c145_84 = arith.constant 145 : index
    %123 = vector.load %arg12[%c0_83, %c145_84] : memref<34x512xf32, #tpu.memory_space<vmem>>, vector<16x256xf32>
    %cst_85 = arith.constant 0.000000e+00 : f32
    %124 = vector.broadcast %cst_85 : f32 to vector<16x256xf32>
    %125 = vector.shape_cast %20 : vector<1x256xi1> to vector<1x256xi1>
    %126 = vector.broadcast %125 : vector<1x256xi1> to vector<16x256xi1>
    %127 = arith.select %126, %123, %124 : vector<16x256xi1>, vector<16x256xf32>
    %c128_86 = arith.constant 128 : index
    %c0_87 = arith.constant 0 : index
    %128 = vector.load %arg13[%c128_86, %c0_87] : memref<306x256xf32, #tpu.memory_space<vmem>>, vector<16x256xf32>
    tpu.vector_store %arg13[%c128_86, %c0_87], %127 {strides = array<i32>} : memref<306x256xf32, #tpu.memory_space<vmem>>, vector<16x256xf32>,
    %c0_88 = arith.constant 0 : index
    %c0_89 = arith.constant 0 : index
    %129 = vector.load %arg13[%c0_88, %c0_89] : memref<306x256xf32, #tpu.memory_space<vmem>>, vector<144x256xf32>
    %130 = arith.truncf %129 : vector<144x256xf32> to vector<144x256xbf16>
    %c0_90 = arith.constant 0 : index
    %c0_91 = arith.constant 0 : index
    %131 = vector.load %arg5[%c0_90, %c0_91] : memref<34x144xbf16, #tpu.memory_space<vmem>>, vector<34x144xbf16>
    %cst_92 = arith.constant dense<0.000000e+00> : vector<34x256xf32>
    %132 = tpu.matmul %131, %130, %cst_92 {dimension_numbers = #tpu.dot_dimension_numbers<[1], [0], [0], [1], [0, 0, 1, 1], [], []>} : vector<34x144xbf16>, vector<144x256xbf16>, vector<34x256xf32> -> vector<34x256xf32>
    %c0_93 = arith.constant 0 : index
    %c0_94 = arith.constant 0 : index
    %133 = vector.load %arg6[%c0_93, %c0_94] : memref<34x1xf32, #tpu.memory_space<vmem>>, vector<34x1xf32>
    %134 = vector.broadcast %133 : vector<34x1xf32> to vector<34x256xf32>
    %135 = arith.mulf %132, %134 : vector<34x256xf32>
    %c0_95 = arith.constant 0 : index
    %c0_96 = arith.constant 0 : index
    %136 = vector.load %arg7[%c0_95, %c0_96] : memref<34x1xf32, #tpu.memory_space<vmem>>, vector<34x1xf32>
    %137 = vector.broadcast %136 : vector<34x1xf32> to vector<34x256xf32>
    %138 = arith.addf %135, %137 : vector<34x256xf32>
    %cst_97 = arith.constant 0.000000e+00 : f32
    %139 = vector.broadcast %cst_97 : f32 to vector<34x256xf32>
    %140 = arith.maximumf %138, %139 : vector<34x256xf32>
    %c0_98 = arith.constant 0 : index
    %c128_99 = arith.constant 128 : index
    %141 = vector.load %arg12[%c0_98, %c128_99] : memref<34x512xf32, #tpu.memory_space<vmem>>, vector<34x256xf32>
    tpu.vector_store %arg12[%c0_98, %c128_99], %140 {strides = array<i32>} : memref<34x512xf32, #tpu.memory_space<vmem>>, vector<34x256xf32>,
    %142 = vector.extract_strided_slice %140 {offsets = [0, 0], sizes = [17, 256], strides = [1, 1]} : vector<34x256xf32> to vector<17x256xf32>
    %143 = vector.extract_strided_slice %140 {offsets = [17, 0], sizes = [17, 256], strides = [1, 1]} : vector<34x256xf32> to vector<17x256xf32>
    %144 = arith.addf %142, %143 : vector<17x256xf32>
    %c0_100 = arith.constant 0 : index
    %c8_101 = arith.constant 8 : index
    %c0_102 = arith.constant 0 : index
    %145 = vector.load %arg11[%c0_100, %c8_101, %c0_102] : memref<1x51x256xf32, #tpu.memory_space<vmem>>, vector<1x17x256xf32>
    %146 = vector.shape_cast %145 : vector<1x17x256xf32> to vector<17x256xf32>
    %147 = vector.shape_cast %144 : vector<17x256xf32> to vector<1x17x256xf32>
    tpu.vector_store %arg11[%c0_100, %c8_101, %c0_102], %147 {strides = array<i32>} : memref<1x51x256xf32, #tpu.memory_space<vmem>>, vector<1x17x256xf32>,
    %c0_103 = arith.constant 0 : index
    %c111_104 = arith.constant 111 : index
    %148 = vector.load %arg12[%c0_103, %c111_104] : memref<34x512xf32, #tpu.memory_space<vmem>>, vector<34x256xf32>
    %cst_105 = arith.constant 0.000000e+00 : f32
    %149 = vector.broadcast %cst_105 : f32 to vector<34x256xf32>
    %150 = vector.shape_cast %18 : vector<1x256xi1> to vector<1x256xi1>
    %151 = vector.broadcast %150 : vector<1x256xi1> to vector<34x256xi1>
    %152 = arith.select %151, %148, %149 : vector<34x256xi1>, vector<34x256xf32>
    %c0_106 = arith.constant 0 : index
    %c0_107 = arith.constant 0 : index
    %153 = vector.load %arg13[%c0_106, %c0_107] : memref<306x256xf32, #tpu.memory_space<vmem>>, vector<34x256xf32>
    tpu.vector_store %arg13[%c0_106, %c0_107], %152 {strides = array<i32>} : memref<306x256xf32, #tpu.memory_space<vmem>>, vector<34x256xf32>,
    %c0_108 = arith.constant 0 : index
    %c112_109 = arith.constant 112 : index
    %154 = vector.load %arg12[%c0_108, %c112_109] : memref<34x512xf32, #tpu.memory_space<vmem>>, vector<34x256xf32>
    %c34 = arith.constant 34 : index
    %c0_110 = arith.constant 0 : index
    %155 = vector.load %arg13[%c34, %c0_110] : memref<306x256xf32, #tpu.memory_space<vmem>>, vector<34x256xf32>
    tpu.vector_store %arg13[%c34, %c0_110], %154 {strides = array<i32>} : memref<306x256xf32, #tpu.memory_space<vmem>>, vector<34x256xf32>,
    %c0_111 = arith.constant 0 : index
    %c113_112 = arith.constant 113 : index
    %156 = vector.load %arg12[%c0_111, %c113_112] : memref<34x512xf32, #tpu.memory_space<vmem>>, vector<34x256xf32>
    %cst_113 = arith.constant 0.000000e+00 : f32
    %157 = vector.broadcast %cst_113 : f32 to vector<34x256xf32>
    %158 = vector.shape_cast %20 : vector<1x256xi1> to vector<1x256xi1>
    %159 = vector.broadcast %158 : vector<1x256xi1> to vector<34x256xi1>
    %160 = arith.select %159, %156, %157 : vector<34x256xi1>, vector<34x256xf32>
    %c68 = arith.constant 68 : index
    %c0_114 = arith.constant 0 : index
    %161 = vector.load %arg13[%c68, %c0_114] : memref<306x256xf32, #tpu.memory_space<vmem>>, vector<34x256xf32>
    tpu.vector_store %arg13[%c68, %c0_114], %160 {strides = array<i32>} : memref<306x256xf32, #tpu.memory_space<vmem>>, vector<34x256xf32>,
    %c0_115 = arith.constant 0 : index
    %c127_116 = arith.constant 127 : index
    %162 = vector.load %arg12[%c0_115, %c127_116] : memref<34x512xf32, #tpu.memory_space<vmem>>, vector<34x256xf32>
    %cst_117 = arith.constant 0.000000e+00 : f32
    %163 = vector.broadcast %cst_117 : f32 to vector<34x256xf32>
    %164 = vector.shape_cast %18 : vector<1x256xi1> to vector<1x256xi1>
    %165 = vector.broadcast %164 : vector<1x256xi1> to vector<34x256xi1>
    %166 = arith.select %165, %162, %163 : vector<34x256xi1>, vector<34x256xf32>
    %c102 = arith.constant 102 : index
    %c0_118 = arith.constant 0 : index
    %167 = vector.load %arg13[%c102, %c0_118] : memref<306x256xf32, #tpu.memory_space<vmem>>, vector<34x256xf32>
    tpu.vector_store %arg13[%c102, %c0_118], %166 {strides = array<i32>} : memref<306x256xf32, #tpu.memory_space<vmem>>, vector<34x256xf32>,
    %c0_119 = arith.constant 0 : index
    %c128_120 = arith.constant 128 : index
    %168 = vector.load %arg12[%c0_119, %c128_120] : memref<34x512xf32, #tpu.memory_space<vmem>>, vector<34x256xf32>
    %c136 = arith.constant 136 : index
    %c0_121 = arith.constant 0 : index
    %169 = vector.load %arg13[%c136, %c0_121] : memref<306x256xf32, #tpu.memory_space<vmem>>, vector<34x256xf32>
    tpu.vector_store %arg13[%c136, %c0_121], %168 {strides = array<i32>} : memref<306x256xf32, #tpu.memory_space<vmem>>, vector<34x256xf32>,
    %c0_122 = arith.constant 0 : index
    %c129_123 = arith.constant 129 : index
    %170 = vector.load %arg12[%c0_122, %c129_123] : memref<34x512xf32, #tpu.memory_space<vmem>>, vector<34x256xf32>
    %cst_124 = arith.constant 0.000000e+00 : f32
    %171 = vector.broadcast %cst_124 : f32 to vector<34x256xf32>
    %172 = vector.shape_cast %20 : vector<1x256xi1> to vector<1x256xi1>
    %173 = vector.broadcast %172 : vector<1x256xi1> to vector<34x256xi1>
    %174 = arith.select %173, %170, %171 : vector<34x256xi1>, vector<34x256xf32>
    %c170 = arith.constant 170 : index
    %c0_125 = arith.constant 0 : index
    %175 = vector.load %arg13[%c170, %c0_125] : memref<306x256xf32, #tpu.memory_space<vmem>>, vector<34x256xf32>
    tpu.vector_store %arg13[%c170, %c0_125], %174 {strides = array<i32>} : memref<306x256xf32, #tpu.memory_space<vmem>>, vector<34x256xf32>,
    %c0_126 = arith.constant 0 : index
    %c143_127 = arith.constant 143 : index
    %176 = vector.load %arg12[%c0_126, %c143_127] : memref<34x512xf32, #tpu.memory_space<vmem>>, vector<34x256xf32>
    %cst_128 = arith.constant 0.000000e+00 : f32
    %177 = vector.broadcast %cst_128 : f32 to vector<34x256xf32>
    %178 = vector.shape_cast %18 : vector<1x256xi1> to vector<1x256xi1>
    %179 = vector.broadcast %178 : vector<1x256xi1> to vector<34x256xi1>
    %180 = arith.select %179, %176, %177 : vector<34x256xi1>, vector<34x256xf32>
    %c204 = arith.constant 204 : index
    %c0_129 = arith.constant 0 : index
    %181 = vector.load %arg13[%c204, %c0_129] : memref<306x256xf32, #tpu.memory_space<vmem>>, vector<34x256xf32>
    tpu.vector_store %arg13[%c204, %c0_129], %180 {strides = array<i32>} : memref<306x256xf32, #tpu.memory_space<vmem>>, vector<34x256xf32>,
    %c0_130 = arith.constant 0 : index
    %c144_131 = arith.constant 144 : index
    %182 = vector.load %arg12[%c0_130, %c144_131] : memref<34x512xf32, #tpu.memory_space<vmem>>, vector<34x256xf32>
    %c238 = arith.constant 238 : index
    %c0_132 = arith.constant 0 : index
    %183 = vector.load %arg13[%c238, %c0_132] : memref<306x256xf32, #tpu.memory_space<vmem>>, vector<34x256xf32>
    tpu.vector_store %arg13[%c238, %c0_132], %182 {strides = array<i32>} : memref<306x256xf32, #tpu.memory_space<vmem>>, vector<34x256xf32>,
    %c0_133 = arith.constant 0 : index
    %c145_134 = arith.constant 145 : index
    %184 = vector.load %arg12[%c0_133, %c145_134] : memref<34x512xf32, #tpu.memory_space<vmem>>, vector<34x256xf32>
    %cst_135 = arith.constant 0.000000e+00 : f32
    %185 = vector.broadcast %cst_135 : f32 to vector<34x256xf32>
    %186 = vector.shape_cast %20 : vector<1x256xi1> to vector<1x256xi1>
    %187 = vector.broadcast %186 : vector<1x256xi1> to vector<34x256xi1>
    %188 = arith.select %187, %184, %185 : vector<34x256xi1>, vector<34x256xf32>
    %c272 = arith.constant 272 : index
    %c0_136 = arith.constant 0 : index
    %189 = vector.load %arg13[%c272, %c0_136] : memref<306x256xf32, #tpu.memory_space<vmem>>, vector<34x256xf32>
    tpu.vector_store %arg13[%c272, %c0_136], %188 {strides = array<i32>} : memref<306x256xf32, #tpu.memory_space<vmem>>, vector<34x256xf32>,
    %c0_137 = arith.constant 0 : index
    %c0_138 = arith.constant 0 : index
    %190 = vector.load %arg13[%c0_137, %c0_138] : memref<306x256xf32, #tpu.memory_space<vmem>>, vector<306x256xf32>
    %191 = arith.truncf %190 : vector<306x256xf32> to vector<306x256xbf16>
    %c0_139 = arith.constant 0 : index
    %c0_140 = arith.constant 0 : index
    %192 = vector.load %arg8[%c0_139, %c0_140] : memref<52x306xbf16, #tpu.memory_space<vmem>>, vector<52x306xbf16>
    %cst_141 = arith.constant dense<0.000000e+00> : vector<52x256xf32>
    %193 = tpu.matmul %192, %191, %cst_141 {dimension_numbers = #tpu.dot_dimension_numbers<[1], [0], [0], [1], [0, 0, 1, 1], [], []>} : vector<52x306xbf16>, vector<306x256xbf16>, vector<52x256xf32> -> vector<52x256xf32>
    %c0_142 = arith.constant 0 : index
    %c0_143 = arith.constant 0 : index
    %194 = vector.load %arg9[%c0_142, %c0_143] : memref<52x1xf32, #tpu.memory_space<vmem>>, vector<52x1xf32>
    %195 = vector.broadcast %194 : vector<52x1xf32> to vector<52x256xf32>
    %196 = arith.mulf %193, %195 : vector<52x256xf32>
    %c0_144 = arith.constant 0 : index
    %c0_145 = arith.constant 0 : index
    %197 = vector.load %arg10[%c0_144, %c0_145] : memref<52x1xf32, #tpu.memory_space<vmem>>, vector<52x1xf32>
    %198 = vector.broadcast %197 : vector<52x1xf32> to vector<52x256xf32>
    %199 = arith.addf %196, %198 : vector<52x256xf32>
    %cst_146 = arith.constant 0.000000e+00 : f32
    %200 = vector.broadcast %cst_146 : f32 to vector<52x256xf32>
    %201 = arith.maximumf %199, %200 : vector<52x256xf32>
    %202 = vector.extract_strided_slice %201 {offsets = [0, 0], sizes = [26, 256], strides = [1, 1]} : vector<52x256xf32> to vector<26x256xf32>
    %203 = vector.extract_strided_slice %201 {offsets = [26, 0], sizes = [26, 256], strides = [1, 1]} : vector<52x256xf32> to vector<26x256xf32>
    %204 = arith.addf %202, %203 : vector<26x256xf32>
    %c0_147 = arith.constant 0 : index
    %c25 = arith.constant 25 : index
    %c0_148 = arith.constant 0 : index
    %205 = vector.load %arg11[%c0_147, %c25, %c0_148] : memref<1x51x256xf32, #tpu.memory_space<vmem>>, vector<1x26x256xf32>
    %206 = vector.shape_cast %205 : vector<1x26x256xf32> to vector<26x256xf32>
    %207 = vector.shape_cast %204 : vector<26x256xf32> to vector<1x26x256xf32>
    tpu.vector_store %arg11[%c0_147, %c25, %c0_148], %207 {strides = array<i32>} : memref<1x51x256xf32, #tpu.memory_space<vmem>>, vector<1x26x256xf32>,
    return
  }
  func.func @transform_0(%arg0: i32) -> (i32, i32, i32) {
    %c0_i32 = arith.constant 0 : i32
    %c0_i32_0 = arith.constant 0 : i32
    %c0_i32_1 = arith.constant 0 : i32
    return %arg0, %c0_i32, %c0_i32_0 : i32, i32, i32
  }
  func.func @transform_1(%arg0: i32) -> (i32, i32) {
    %c0_i32 = arith.constant 0 : i32
    %c0_i32_0 = arith.constant 0 : i32
    %c0_i32_1 = arith.constant 0 : i32
    return %c0_i32, %c0_i32_0 : i32, i32
  }
  func.func @transform_2(%arg0: i32) -> (i32, i32) {
    %c0_i32 = arith.constant 0 : i32
    %c0_i32_0 = arith.constant 0 : i32
    %c0_i32_1 = arith.constant 0 : i32
    return %c0_i32, %c0_i32_0 : i32, i32
  }
  func.func @transform_3(%arg0: i32) -> (i32, i32) {
    %c0_i32 = arith.constant 0 : i32
    %c0_i32_0 = arith.constant 0 : i32
    %c0_i32_1 = arith.constant 0 : i32
    return %c0_i32, %c0_i32_0 : i32, i32
  }
  func.func @transform_4(%arg0: i32) -> (i32, i32) {
    %c0_i32 = arith.constant 0 : i32
    %c0_i32_0 = arith.constant 0 : i32
    %c0_i32_1 = arith.constant 0 : i32
    return %c0_i32, %c0_i32_0 : i32, i32
  }
  func.func @transform_5(%arg0: i32) -> (i32, i32) {
    %c0_i32 = arith.constant 0 : i32
    %c0_i32_0 = arith.constant 0 : i32
    %c0_i32_1 = arith.constant 0 : i32
    return %c0_i32, %c0_i32_0 : i32, i32
  }
  func.func @transform_6(%arg0: i32) -> (i32, i32) {
    %c0_i32 = arith.constant 0 : i32
    %c0_i32_0 = arith.constant 0 : i32
    %c0_i32_1 = arith.constant 0 : i32
    return %c0_i32, %c0_i32_0 : i32, i32
  }
  func.func @transform_7(%arg0: i32) -> (i32, i32) {
    %c0_i32 = arith.constant 0 : i32
    %c0_i32_0 = arith.constant 0 : i32
    %c0_i32_1 = arith.constant 0 : i32
    return %c0_i32, %c0_i32_0 : i32, i32
  }
  func.func @transform_8(%arg0: i32) -> (i32, i32) {
    %c0_i32 = arith.constant 0 : i32
    %c0_i32_0 = arith.constant 0 : i32
    %c0_i32_1 = arith.constant 0 : i32
    return %c0_i32, %c0_i32_0 : i32, i32
  }
  func.func @transform_9(%arg0: i32) -> (i32, i32) {
    %c0_i32 = arith.constant 0 : i32
    %c0_i32_0 = arith.constant 0 : i32
    %c0_i32_1 = arith.constant 0 : i32
    return %c0_i32, %c0_i32_0 : i32, i32
  }
  func.func @transform_10(%arg0: i32) -> (i32, i32, i32) {
    %c0_i32 = arith.constant 0 : i32
    %c0_i32_0 = arith.constant 0 : i32
    %c0_i32_1 = arith.constant 0 : i32
    return %arg0, %c0_i32, %c0_i32_0 : i32, i32, i32
  }
}

</mosaic_0001>

<llo_original>
// kernel: dc_block_encoder_fwd.1
$region0: #{dc_block_encoder_fwd.1}
  #allocation0 [shape = 'u32[]', space=smem, size = 0x4, offset = 0x4, fixed_abs, tag = 'smem constant byte address 0x4 - core index']
  #allocation1 [shape = 'u32[144,128]{1,0:T(1,128)}', space=vmem, size = 0x12000, scoped, tag = 'internal scratch']
  #allocation2 [shape = 'f32[34,512]{1,0:T(8,128)}', space=vmem, size = 0x14000, scoped, tag = 'scratch operand']
  #allocation3 [shape = 'f32[306,256]{1,0:T(8,128)}', space=vmem, size = 0x4e000, scoped, tag = 'scratch operand']
  %s0 = inlined_call_operand.vmem [shape: f32[2,4,256], index: 0, kind: input, shape index: {}]
  %s1 = inlined_call_operand.vmem [shape: bf16[16,36], index: 1, kind: input, shape index: {}]
  %s2 = inlined_call_operand.vmem [shape: f32[16,1], index: 2, kind: input, shape index: {}]
  %s3 = inlined_call_operand.vmem [shape: f32[16,1], index: 3, kind: input, shape index: {}]
  %s4 = inlined_call_operand.vmem [shape: bf16[34,144], index: 4, kind: input, shape index: {}]
  %s5 = inlined_call_operand.vmem [shape: f32[34,1], index: 5, kind: input, shape index: {}]
  %s6 = inlined_call_operand.vmem [shape: f32[34,1], index: 6, kind: input, shape index: {}]
  %s7 = inlined_call_operand.vmem [shape: bf16[52,306], index: 7, kind: input, shape index: {}]
  %s8 = inlined_call_operand.vmem [shape: f32[52,1], index: 8, kind: input, shape index: {}]
  %s9 = inlined_call_operand.vmem [shape: f32[52,1], index: 9, kind: input, shape index: {}]
  %s10 = inlined_call_operand.vmem [shape: f32[2,51,256], index: 10, kind: output, shape index: {}]
  %s11 = sld [smem:[#allocation0]]
  $region73: #{dc_block_encoder_fwd.1} parent=0
    _
  %s13 = ssub.s32 1, %s11
  %s14 = scalar_select 0, %s13, %s11
  loop: start=0, step=1, limit=4
  $region2: #{dc_block_encoder_fwd.1} parent=0 // loop_pre_header
    _
  $region3: #{dc_block_encoder_fwd.1} parent=0 // loop_header
    %s16 = sphi 0, %s20
    %p17 = scmp.ge.s32.totalorder %s16, 4
    %s26 = sphi 0, %s28
    %s29 = sphi 0, %s26
    %s30 = sphi 0, %s29
    %s46 = sphi 0, %s30
    %s50 = sphi 0, %s50
    %s52 = sphi 0, %s50
    %s53 = sphi 0, %s52
    %s67 = sphi 0, %s53
    %s71 = sphi 0, %s71
    %s73 = sphi 0, %s71
    %s74 = sphi 0, %s73
    %s88 = sphi 0, %s74
    %s92 = sphi 0, %s92
    %s94 = sphi 0, %s92
    %s95 = sphi 0, %s94
    %s109 = sphi 0, %s95
    %s113 = sphi 0, %s113
    %s115 = sphi 0, %s113
    %s116 = sphi 0, %s115
    %s130 = sphi 0, %s116
    %s134 = sphi 0, %s134
    %s136 = sphi 0, %s134
    %s137 = sphi 0, %s136
    %s151 = sphi 0, %s137
    %s155 = sphi 0, %s155
    %s157 = sphi 0, %s155
    %s158 = sphi 0, %s157
    %s172 = sphi 0, %s158
    %s176 = sphi 0, %s176
    %s178 = sphi 0, %s176
    %s179 = sphi 0, %s178
    %s193 = sphi 0, %s179
    %s197 = sphi 0, %s197
    %s199 = sphi 0, %s197
    %s200 = sphi 0, %s199
    %s214 = sphi 0, %s200
    %s218 = sphi 0, %s218
    %s220 = sphi 0, %s218
    %s221 = sphi 0, %s220
    %s235 = sphi 0, %s221
    %s241 = sphi 0, %s243
    %s244 = sphi 0, %s241
    %s245 = sphi 0, %s244
    %s261 = sphi 0, %s245
  $region4: #{dc_block_encoder_fwd.1} parent=0 // loop_header_branch
    %19 = sbr.rel (%p17) target = $region8
  $region5: #{dc_block_encoder_fwd.1} parent=0 // loop_body
    %s21 = ssub.s32 %s16, 1
    %s22 = ssub.s32 %s16, 2
    %s23 = sadd.s32 %s16, 1
    %s24 = ssub.s32 %s16, %s23
    %p25 = scmp.eq.s32.totalorder %s24, 0
    %s27 = sadd.s32 %s26, 1
    %s28 = scalar_select %p25, %s26, %s27
    %p31 = pneg %p25
    %p32 = scmp.eq.s32.totalorder %s16, 1
    %p33 = por %p31, %p32
    %p34 = scmp.ne.s32.totalorder %s26, %s29
    %p35 = scmp.eq.s32.totalorder %s16, 0
    %p36 = por %p34, %p35
    %p37 = scmp.ne.s32.totalorder %s26, %s29
    %p38 = scmp.eq.s32.totalorder %s21, 1
    %p39 = por %p37, %p38
    %p40 = scmp.ne.s32.totalorder %s29, %s30
    %p41 = scmp.eq.s32.totalorder %s21, 0
    %p42 = por %p40, %p41
    %p43 = scmp.ne.s32.totalorder %s29, %s30
    %p44 = scmp.eq.s32.totalorder %s22, 1
    %p45 = por %p43, %p44
    %p47 = scmp.ne.s32.totalorder %s30, %s46
    %p48 = scmp.eq.s32.totalorder %s22, 0
    %p49 = por %p47, %p48
    %s51 = sadd.s32 %s50, 1
    %p54 = scmp.eq.s32.totalorder %s16, 1
    %p55 = scmp.ne.s32.totalorder %s50, %s52
    %p56 = scmp.eq.s32.totalorder %s16, 0
    %p57 = por %p55, %p56
    %p58 = scmp.ne.s32.totalorder %s50, %s52
    %p59 = scmp.eq.s32.totalorder %s21, 1
    %p60 = por %p58, %p59
    %p61 = scmp.ne.s32.totalorder %s52, %s53
    %p62 = scmp.eq.s32.totalorder %s21, 0
    %p63 = por %p61, %p62
    %p64 = scmp.ne.s32.totalorder %s52, %s53
    %p65 = scmp.eq.s32.totalorder %s22, 1
    %p66 = por %p64, %p65
    %p68 = scmp.ne.s32.totalorder %s53, %s67
    %p69 = scmp.eq.s32.totalorder %s22, 0
    %p70 = por %p68, %p69
    %s72 = sadd.s32 %s71, 1
    %p75 = scmp.eq.s32.totalorder %s16, 1
    %p76 = scmp.ne.s32.totalorder %s71, %s73
    %p77 = scmp.eq.s32.totalorder %s16, 0
    %p78 = por %p76, %p77
    %p79 = scmp.ne.s32.totalorder %s71, %s73
    %p80 = scmp.eq.s32.totalorder %s21, 1
    %p81 = por %p79, %p80
    %p82 = scmp.ne.s32.totalorder %s73, %s74
    %p83 = scmp.eq.s32.totalorder %s21, 0
    %p84 = por %p82, %p83
    %p85 = scmp.ne.s32.totalorder %s73, %s74
    %p86 = scmp.eq.s32.totalorder %s22, 1
    %p87 = por %p85, %p86
    %p89 = scmp.ne.s32.totalorder %s74, %s88
    %p90 = scmp.eq.s32.totalorder %s22, 0
    %p91 = por %p89, %p90
    %s93 = sadd.s32 %s92, 1
    %p96 = scmp.eq.s32.totalorder %s16, 1
    %p97 = scmp.ne.s32.totalorder %s92, %s94
    %p98 = scmp.eq.s32.totalorder %s16, 0
    %p99 = por %p97, %p98
    %p100 = scmp.ne.s32.totalorder %s92, %s94
    %p101 = scmp.eq.s32.totalorder %s21, 1
    %p102 = por %p100, %p101
    %p103 = scmp.ne.s32.totalorder %s94, %s95
    %p104 = scmp.eq.s32.totalorder %s21, 0
    %p105 = por %p103, %p104
    %p106 = scmp.ne.s32.totalorder %s94, %s95
    %p107 = scmp.eq.s32.totalorder %s22, 1
    %p108 = por %p106, %p107
    %p110 = scmp.ne.s32.totalorder %s95, %s109
    %p111 = scmp.eq.s32.totalorder %s22, 0
    %p112 = por %p110, %p111
    %s114 = sadd.s32 %s113, 1
    %p117 = scmp.eq.s32.totalorder %s16, 1
    %p118 = scmp.ne.s32.totalorder %s113, %s115
    %p119 = scmp.eq.s32.totalorder %s16, 0
    %p120 = por %p118, %p119
    %p121 = scmp.ne.s32.totalorder %s113, %s115
    %p122 = scmp.eq.s32.totalorder %s21, 1
    %p123 = por %p121, %p122
    %p124 = scmp.ne.s32.totalorder %s115, %s116
    %p125 = scmp.eq.s32.totalorder %s21, 0
    %p126 = por %p124, %p125
    %p127 = scmp.ne.s32.totalorder %s115, %s116
    %p128 = scmp.eq.s32.totalorder %s22, 1
    %p129 = por %p127, %p128
    %p131 = scmp.ne.s32.totalorder %s116, %s130
    %p132 = scmp.eq.s32.totalorder %s22, 0
    %p133 = por %p131, %p132
    %s135 = sadd.s32 %s134, 1
    %p138 = scmp.eq.s32.totalorder %s16, 1
    %p139 = scmp.ne.s32.totalorder %s134, %s136
    %p140 = scmp.eq.s32.totalorder %s16, 0
    %p141 = por %p139, %p140
    %p142 = scmp.ne.s32.totalorder %s134, %s136
    %p143 = scmp.eq.s32.totalorder %s21, 1
    %p144 = por %p142, %p143
    %p145 = scmp.ne.s32.totalorder %s136, %s137
    %p146 = scmp.eq.s32.totalorder %s21, 0
    %p147 = por %p145, %p146
    %p148 = scmp.ne.s32.totalorder %s136, %s137
    %p149 = scmp.eq.s32.totalorder %s22, 1
    %p150 = por %p148, %p149
    %p152 = scmp.ne.s32.totalorder %s137, %s151
    %p153 = scmp.eq.s32.totalorder %s22, 0
    %p154 = por %p152, %p153
    %s156 = sadd.s32 %s155, 1
    %p159 = scmp.eq.s32.totalorder %s16, 1
    %p160 = scmp.ne.s32.totalorder %s155, %s157
    %p161 = scmp.eq.s32.totalorder %s16, 0
    %p162 = por %p160, %p161
    %p163 = scmp.ne.s32.totalorder %s155, %s157
    %p164 = scmp.eq.s32.totalorder %s21, 1
    %p165 = por %p163, %p164
    %p166 = scmp.ne.s32.totalorder %s157, %s158
    %p167 = scmp.eq.s32.totalorder %s21, 0
    %p168 = por %p166, %p167
    %p169 = scmp.ne.s32.totalorder %s157, %s158
    %p170 = scmp.eq.s32.totalorder %s22, 1
    %p171 = por %p169, %p170
    %p173 = scmp.ne.s32.totalorder %s158, %s172
    %p174 = scmp.eq.s32.totalorder %s22, 0
    %p175 = por %p173, %p174
    %s177 = sadd.s32 %s176, 1
    %p180 = scmp.eq.s32.totalorder %s16, 1
    %p181 = scmp.ne.s32.totalorder %s176, %s178
    %p182 = scmp.eq.s32.totalorder %s16, 0
    %p183 = por %p181, %p182
    %p184 = scmp.ne.s32.totalorder %s176, %s178
    %p185 = scmp.eq.s32.totalorder %s21, 1
    %p186 = por %p184, %p185
    %p187 = scmp.ne.s32.totalorder %s178, %s179
    %p188 = scmp.eq.s32.totalorder %s21, 0
    %p189 = por %p187, %p188
    %p190 = scmp.ne.s32.totalorder %s178, %s179
    %p191 = scmp.eq.s32.totalorder %s22, 1
    %p192 = por %p190, %p191
    %p194 = scmp.ne.s32.totalorder %s179, %s193
    %p195 = scmp.eq.s32.totalorder %s22, 0
    %p196 = por %p194, %p195
    %s198 = sadd.s32 %s197, 1
    %p201 = scmp.eq.s32.totalorder %s16, 1
    %p202 = scmp.ne.s32.totalorder %s197, %s199
    %p203 = scmp.eq.s32.totalorder %s16, 0
    %p204 = por %p202, %p203
    %p205 = scmp.ne.s32.totalorder %s197, %s199
    %p206 = scmp.eq.s32.totalorder %s21, 1
    %p207 = por %p205, %p206
    %p208 = scmp.ne.s32.totalorder %s199, %s200
    %p209 = scmp.eq.s32.totalorder %s21, 0
    %p210 = por %p208, %p209
    %p211 = scmp.ne.s32.totalorder %s199, %s200
    %p212 = scmp.eq.s32.totalorder %s22, 1
    %p213 = por %p211, %p212
    %p215 = scmp.ne.s32.totalorder %s200, %s214
    %p216 = scmp.eq.s32.totalorder %s22, 0
    %p217 = por %p215, %p216
    %s219 = sadd.s32 %s218, 1
    %p222 = scmp.eq.s32.totalorder %s16, 1
    %p223 = scmp.ne.s32.totalorder %s218, %s220
    %p224 = scmp.eq.s32.totalorder %s16, 0
    %p225 = por %p223, %p224
    %p226 = scmp.ne.s32.totalorder %s218, %s220
    %p227 = scmp.eq.s32.totalorder %s21, 1
    %p228 = por %p226, %p227
    %p229 = scmp.ne.s32.totalorder %s220, %s221
    %p230 = scmp.eq.s32.totalorder %s21, 0
    %p231 = por %p229, %p230
    %p232 = scmp.ne.s32.totalorder %s220, %s221
    %p233 = scmp.eq.s32.totalorder %s22, 1
    %p234 = por %p232, %p233
    %p236 = scmp.ne.s32.totalorder %s221, %s235
    %p237 = scmp.eq.s32.totalorder %s22, 0
    %p238 = por %p236, %p237
    %s239 = ssub.s32 %s16, %s23
    %p240 = scmp.eq.s32.totalorder %s239, 0
    %s242 = sadd.s32 %s241, 1
    %s243 = scalar_select %p240, %s241, %s242
    %p246 = pneg %p240
    %p247 = scmp.eq.s32.totalorder %s16, 1
    %p248 = por %p246, %p247
    %p249 = scmp.ne.s32.totalorder %s241, %s244
    %p250 = scmp.eq.s32.totalorder %s16, 0
    %p251 = por %p249, %p250
    %p252 = scmp.ne.s32.totalorder %s241, %s244
    %p253 = scmp.eq.s32.totalorder %s21, 1
    %p254 = por %p252, %p253
    %p255 = scmp.ne.s32.totalorder %s244, %s245
    %p256 = scmp.eq.s32.totalorder %s21, 0
    %p257 = por %p255, %p256
    %p258 = scmp.ne.s32.totalorder %s244, %s245
    %p259 = scmp.eq.s32.totalorder %s22, 1
    %p260 = por %p258, %p259
    %p262 = scmp.ne.s32.totalorder %s245, %s261
    %p263 = scmp.eq.s32.totalorder %s22, 0
    %p264 = por %p262, %p263
    %p265 = scmp.le.s32.totalorder 1, %s16
    %p266 = scmp.lt.s32.totalorder %s16, 3
    %p267 = pnand %p265, %p266
    %p268 = pneg %p267
    // Predicated region
    $region9: #{dc_block_encoder_fwd.1} parent=5 // pred_check
      _
    $region10: #{dc_block_encoder_fwd.1} parent=5 // pred_check_branch
      %270 = sbr.rel (%p267) target = $region12
    $region11: #{dc_block_encoder_fwd.1} parent=5 // pred_region
      %s271 = ssub.s32 %s16, 1
      // Predicated region
      $region13: #{dc_block_encoder_fwd.1} parent=11 // pred_check
        %p272 = pneg %p63
      $region14: #{dc_block_encoder_fwd.1} parent=11 // pred_check_branch
        %274 = sbr.rel (%p272) target = $region16
      $region15: #{dc_block_encoder_fwd.1} parent=11 // pred_region
        _
      $region16: #{dc_block_encoder_fwd.1} parent=11 // pred_fallthru
        _
      // Predicated region
      $region17: #{dc_block_encoder_fwd.1} parent=11 // pred_check
        %p275 = pneg %p84
      $region18: #{dc_block_encoder_fwd.1} parent=11 // pred_check_branch
        %277 = sbr.rel (%p275) target = $region20
      $region19: #{dc_block_encoder_fwd.1} parent=11 // pred_region
        _
      $region20: #{dc_block_encoder_fwd.1} parent=11 // pred_fallthru
        _
      // Predicated region
      $region21: #{dc_block_encoder_fwd.1} parent=11 // pred_check
        %p278 = pneg %p105
      $region22: #{dc_block_encoder_fwd.1} parent=11 // pred_check_branch
        %280 = sbr.rel (%p278) target = $region24
      $region23: #{dc_block_encoder_fwd.1} parent=11 // pred_region
        _
      $region24: #{dc_block_encoder_fwd.1} parent=11 // pred_fallthru
        _
      // Predicated region
      $region25: #{dc_block_encoder_fwd.1} parent=11 // pred_check
        %p281 = pneg %p126
      $region26: #{dc_block_encoder_fwd.1} parent=11 // pred_check_branch
        %283 = sbr.rel (%p281) target = $region28
      $region27: #{dc_block_encoder_fwd.1} parent=11 // pred_region
        _
      $region28: #{dc_block_encoder_fwd.1} parent=11 // pred_fallthru
        _
      // Predicated region
      $region29: #{dc_block_encoder_fwd.1} parent=11 // pred_check
        %p284 = pneg %p147
      $region30: #{dc_block_encoder_fwd.1} parent=11 // pred_check_branch
        %286 = sbr.rel (%p284) target = $region32
      $region31: #{dc_block_encoder_fwd.1} parent=11 // pred_region
        _
      $region32: #{dc_block_encoder_fwd.1} parent=11 // pred_fallthru
        _
      // Predicated region
      $region33: #{dc_block_encoder_fwd.1} parent=11 // pred_check
        %p287 = pneg %p168
      $region34: #{dc_block_encoder_fwd.1} parent=11 // pred_check_branch
        %289 = sbr.rel (%p287) target = $region36
      $region35: #{dc_block_encoder_fwd.1} parent=11 // pred_region
        _
      $region36: #{dc_block_encoder_fwd.1} parent=11 // pred_fallthru
        _
      // Predicated region
      $region37: #{dc_block_encoder_fwd.1} parent=11 // pred_check
        %p290 = pneg %p189
      $region38: #{dc_block_encoder_fwd.1} parent=11 // pred_check_branch
        %292 = sbr.rel (%p290) target = $region40
      $region39: #{dc_block_encoder_fwd.1} parent=11 // pred_region
        _
      $region40: #{dc_block_encoder_fwd.1} parent=11 // pred_fallthru
        _
      // Predicated region
      $region41: #{dc_block_encoder_fwd.1} parent=11 // pred_check
        %p293 = pneg %p210
      $region42: #{dc_block_encoder_fwd.1} parent=11 // pred_check_branch
        %295 = sbr.rel (%p293) target = $region44
      $region43: #{dc_block_encoder_fwd.1} parent=11 // pred_region
        _
      $region44: #{dc_block_encoder_fwd.1} parent=11 // pred_fallthru
        _
      // Predicated region
      $region45: #{dc_block_encoder_fwd.1} parent=11 // pred_check
        %p296 = pneg %p231
      $region46: #{dc_block_encoder_fwd.1} parent=11 // pred_check_branch
        %298 = sbr.rel (%p296) target = $region48
      $region47: #{dc_block_encoder_fwd.1} parent=11 // pred_region
        _
      $region48: #{dc_block_encoder_fwd.1} parent=11 // pred_fallthru
        _
    $region12: #{dc_block_encoder_fwd.1} parent=5 // pred_fallthru
      _
    %p299 = scmp.lt.s32.totalorder %s16, 2
    // Predicated region
    $region49: #{dc_block_encoder_fwd.1} parent=5 // pred_check
      %p300 = pneg %p299
    $region50: #{dc_block_encoder_fwd.1} parent=5 // pred_check_branch
      %302 = sbr.rel (%p300) target = $region52
    $region51: #{dc_block_encoder_fwd.1} parent=5 // pred_region
      // Predicated region
      $region53: #{dc_block_encoder_fwd.1} parent=51 // pred_check
        %p303 = pneg %p36
      $region54: #{dc_block_encoder_fwd.1} parent=51 // pred_check_branch
        %305 = sbr.rel (%p303) target = $region56
      $region55: #{dc_block_encoder_fwd.1} parent=51 // pred_region
        %p306 = scmp.lt.s32.totalorder %s16, 1
        %s307 = scalar_select %p306, %s16, 1
        %s308 = smul.addr %s307, 2
        %s309 = smul.addr %s308, 4
        %s310 = scalar_lea.vmem %s0, %s309
      $region56: #{dc_block_encoder_fwd.1} parent=51 // pred_fallthru
        _
    $region52: #{dc_block_encoder_fwd.1} parent=5 // pred_fallthru
      _
    %p311 = scmp.le.s32.totalorder 1, %s16
    %p312 = scmp.lt.s32.totalorder %s16, 3
    %p313 = pnand %p311, %p312
    %p314 = pneg %p313
    // Predicated region
    $region57: #{dc_block_encoder_fwd.1} parent=5 // pred_check
      _
    $region58: #{dc_block_encoder_fwd.1} parent=5 // pred_check_branch
      %316 = sbr.rel (%p313) target = $region60
    $region59: #{dc_block_encoder_fwd.1} parent=5 // pred_region
      %s317 = ssub.s32 %s16, 1
      %p318 = scmp.lt.s32.totalorder %s21, 1
      %s319 = scalar_select %p318, %s21, 1
      %s320 = smul.addr %s319, 2
      %s321 = smul.addr %s320, 4
      %s322 = scalar_lea.vmem %s0, %s321
      %p323 = pneg %p42
      %p324 = pneg %p39
      %p325 = pneg %p63
      %p326 = pneg %p60
      %p327 = pneg %p84
      %p328 = pneg %p81
      %p329 = pneg %p105
      %p330 = pneg %p102
      %p331 = pneg %p126
      %p332 = pneg %p123
      %p333 = pneg %p147
      %p334 = pneg %p144
      %p335 = pneg %p168
      %p336 = pneg %p165
      %p337 = pneg %p189
      %p338 = pneg %p186
      %p339 = pneg %p210
      %p340 = pneg %p207
      %p341 = pneg %p231
      %p342 = pneg %p228
      %p343 = pneg %p257
      %p344 = pneg %p254
      %p345 = scmp.lt.s32.totalorder %s21, 1
      %s346 = scalar_select %p345, %s21, 1
      %s347 = smul.addr %s346, 14
      %s348 = smul.addr %s347, 8
      %s349 = scalar_lea.vmem %s10, %s348
      %p350 = scmp.lt.s32.totalorder %s21, 1
      %s351 = scalar_select %p350, %s21, 1
      %s352 = smul.addr %s351, 2
      %s353 = smul.addr %s352, 4
      %s354 = scalar_lea.vmem %s0, %s353
      %p355 = scmp.lt.s32.totalorder %s21, 1
      %s356 = scalar_select %p355, %s21, 1
      %s357 = smul.addr %s356, 14
      %s358 = smul.addr %s357, 8
      %s359 = scalar_lea.vmem %s10, %s358
      %v361 = vlaneseq
      %v362 = vand.u32 %v361, 127
      %v363 = vadd.s32 %v362, 128
      %vm364 = vcmp.lt.s32.totalorder %v362, 0
      %v365 = vsub.s32 0, %v362
      %v366 = vsel %vm364, %v365, %v362
      %v367 = vshrl.u32 %v366, 4
      %v368 = vand.u32 %v366, 15
      %v369 = vsub.s32 0, %v368
      %v370 = vsel %vm364, %v369, %v368
      %vm371 = vcmp.lt.s32.totalorder %v363, 0
      %v372 = vsub.s32 0, %v363
      %v373 = vsel %vm371, %v372, %v363
      %v374 = vshrl.u32 %v373, 4
      %v375 = vand.u32 %v373, 15
      %v376 = vsub.s32 0, %v375
      %v377 = vsel %vm371, %v376, %v375
      %vm378 = vcmp.ne.s32.totalorder %v370, 0
      %vm379 = vcmp.ne.s32.totalorder %v377, 0
      %vm380 = vcmp.lt.s32.totalorder %v370, 0
      %vm381 = vcmp.lt.s32.totalorder %v377, 0
      %vm382 = vmand %vm380, %vm378
      %vm383 = vmand %vm381, %vm379
      %v384 = vadd.s32 %v370, 16
      %v385 = vadd.s32 %v377, 16
      %v386 = vsel %vm382, %v384, %v370
      %v387 = vsel %vm383, %v385, %v377
      %vm388 = vcmp.ge.s32.totalorder %v386, 1
      %vm389 = vcmp.ge.s32.totalorder %v387, 1
      %vm390 = vcmp.le.s32.totalorder %v386, 14
      %vm391 = vcmp.le.s32.totalorder %v387, 14
      %392 = vst [vmem:[#allocation2] sm:$0xff] 0.0
      %393 = vst [vmem:[#allocation2 + $0x8] sm:$0xff] 0.0
      %394 = vst [vmem:[#allocation2 + $0x10] sm:$0xff] 0.0
      %395 = vst [vmem:[#allocation2 + $0x18] sm:$0xff] 0.0
      %396 = vst [vmem:[#allocation2 + $0x20] sm:$0xff] 0.0
      %397 = vst [vmem:[#allocation2 + $0x28] sm:$0xff] 0.0
      %398 = vst [vmem:[#allocation2 + $0x30] sm:$0xff] 0.0
      %399 = vst [vmem:[#allocation2 + $0x38] sm:$0xff] 0.0
      %400 = vst [vmem:[#allocation2 + $0x40] sm:$0xff] 0.0
      %401 = vst [vmem:[#allocation2 + $0x48] sm:$0xff] 0.0
      %402 = vst [vmem:[#allocation2 + $0x50] sm:$0xff] 0.0
      %403 = vst [vmem:[#allocation2 + $0x58] sm:$0xff] 0.0
      %404 = vst [vmem:[#allocation2 + $0x60] sm:$0xff] 0.0
      %405 = vst [vmem:[#allocation2 + $0x68] sm:$0xff] 0.0
      %406 = vst [vmem:[#allocation2 + $0x70] sm:$0xff] 0.0
      %407 = vst [vmem:[#allocation2 + $0x78] sm:$0xff] 0.0
      %408 = vst [vmem:[#allocation2 + $0x80] sm:$0x3] 0.0
      %409 = vst [vmem:[#allocation2 + $0x88] sm:$0x3] 0.0
      %410 = vst [vmem:[#allocation2 + $0x90] sm:$0x3] 0.0
      %411 = vst [vmem:[#allocation2 + $0x98] sm:$0x3] 0.0
      %v412 = vld [vmem:[%s354] sm:$0xff]
      %v414 = vcombine.high %v412, %v412
      %416 = vst [vmem:[#allocation2 + $0x8] sm:$0xf] %v412
      %417 = vst [vmem:[#allocation2 + $0x10] sm:$0xf] %v414
      %v418 = vld [vmem:[#allocation2] sm:$0xf]
      %v419 = vld [vmem:[#allocation2 + $0x8] sm:$0xf]
      %v420 = vld [vmem:[#allocation2 + $0x10] sm:$0xf]
      %v421 = vsel %vm388, 1, 0
      %v422 = vsel %vm389, 1, 0
      %vm423 = vcmp.eq.s32.totalorder %v421, 1
      %vm424 = vcmp.eq.s32.totalorder %v422, 1
      %428 = vrot.lane.b32.xlu0 %v418, 17
      %v429 = vpop.permute.xlu0 %428
      %430 = vrot.lane.b32.xlu0 %v419, 17
      %v431 = vpop.permute.xlu0 %430
      %432 = vrot.lane.b32.xlu0 %v420, 17
      %v433 = vpop.permute.xlu0 %432
      %vm434 = vcmask 138240
      %v435 = vsel %vm434, %v429, %v431
      %v436 = vsel %vm434, %v431, %v433
      %v439 = vsel %vm423, %v435, 0.0
      %v440 = vsel %vm424, %v436, 0.0
      %441 = vst [vmem:[#allocation3] sm:$0xf] %v439
      %442 = vst [vmem:[#allocation3 + $0x8] sm:$0xf] %v440
      %v443 = vld [vmem:[#allocation2] sm:$0xf]
      %v444 = vld [vmem:[#allocation2 + $0x8] sm:$0xf]
      %v445 = vld [vmem:[#allocation2 + $0x10] sm:$0xf]
      %v449 = vrot.slane %v443, 4
      %v450 = vrot.slane %v444, 4
      %v451 = vrot.slane %v445, 4
      %452 = vrot.lane.b32.xlu0 %v449, 16
      %v453 = vpop.permute.xlu0 %452
      %454 = vrot.lane.b32.xlu0 %v450, 16
      %v455 = vpop.permute.xlu0 %454
      %456 = vrot.lane.b32.xlu0 %v451, 16
      %v457 = vpop.permute.xlu0 %456
      %vm458 = vcmask 130048
      %v459 = vsel %vm458, %v453, %v455
      %v460 = vsel %vm458, %v455, %v457
      %463 = vst [vmem:[#allocation3] sm:$0xf0] %v459
      %464 = vst [vmem:[#allocation3 + $0x8] sm:$0xf0] %v460
      %v465 = vld [vmem:[#allocation2] sm:$0xf]
      %v466 = vld [vmem:[#allocation2 + $0x8] sm:$0xf]
      %v467 = vld [vmem:[#allocation2 + $0x10] sm:$0xf]
      %v468 = vsel %vm390, 1, 0
      %v469 = vsel %vm391, 1, 0
      %vm470 = vcmp.eq.s32.totalorder %v468, 1
      %vm471 = vcmp.eq.s32.totalorder %v469, 1
      %475 = vrot.lane.b32.xlu0 %v465, 15
      %v476 = vpop.permute.xlu0 %475
      %477 = vrot.lane.b32.xlu0 %v466, 15
      %v478 = vpop.permute.xlu0 %477
      %479 = vrot.lane.b32.xlu0 %v467, 15
      %v480 = vpop.permute.xlu0 %479
      %vm481 = vcmask 121856
      %v482 = vsel %vm481, %v476, %v478
      %v483 = vsel %vm481, %v478, %v480
      %v486 = vsel %vm470, %v482, 0.0
      %v487 = vsel %vm471, %v483, 0.0
      %488 = vst [vmem:[#allocation3 + $0x10] sm:$0xf] %v486
      %489 = vst [vmem:[#allocation3 + $0x18] sm:$0xf] %v487
      %v490 = vld [vmem:[#allocation2] sm:$0xf]
      %v491 = vld [vmem:[#allocation2 + $0x8] sm:$0xf]
      %v492 = vld [vmem:[#allocation2 + $0x10] sm:$0xf]
      %496 = vrot.lane.b32.xlu0 %v490, 1
      %v497 = vpop.permute.xlu0 %496
      %498 = vrot.lane.b32.xlu0 %v491, 1
      %v499 = vpop.permute.xlu0 %498
      %500 = vrot.lane.b32.xlu0 %v492, 1
      %v501 = vpop.permute.xlu0 %500
      %vm502 = vcmask 7168
      %v503 = vsel %vm502, %v497, %v499
      %v504 = vsel %vm502, %v499, %v501
      %v507 = vsel %vm423, %v503, 0.0
      %v508 = vsel %vm424, %v504, 0.0
      %v511 = vrot.slane %v507, 4
      %v512 = vrot.slane %v508, 4
      %515 = vst [vmem:[#allocation3 + $0x10] sm:$0xf0] %v511
      %516 = vst [vmem:[#allocation3 + $0x18] sm:$0xf0] %v512
      %v517 = vld [vmem:[#allocation2 + $0x8] sm:$0xf]
      %v518 = vld [vmem:[#allocation2 + $0x10] sm:$0xf]
      %519 = vst [vmem:[#allocation3 + $0x20] sm:$0xf] %v517
      %520 = vst [vmem:[#allocation3 + $0x28] sm:$0xf] %v518
      %v521 = vld [vmem:[#allocation2 + $0x8] sm:$0xf]
      %v522 = vld [vmem:[#allocation2 + $0x10] sm:$0xf]
      %v523 = vld [vmem:[#allocation2 + $0x18] sm:$0xf]
      %527 = vrot.lane.b32.xlu0 %v521, 127
      %v528 = vpop.permute.xlu0 %527
      %529 = vrot.lane.b32.xlu0 %v522, 127
      %v530 = vpop.permute.xlu0 %529
      %531 = vrot.lane.b32.xlu0 %v523, 127
      %v532 = vpop.permute.xlu0 %531
      %vm533 = vcmask 1039360
      %v534 = vsel %vm533, %v528, %v530
      %v535 = vsel %vm533, %v530, %v532
      %v538 = vsel %vm470, %v534, 0.0
      %v539 = vsel %vm471, %v535, 0.0
      %v542 = vrot.slane %v538, 4
      %v543 = vrot.slane %v539, 4
      %546 = vst [vmem:[#allocation3 + $0x20] sm:$0xf0] %v542
      %547 = vst [vmem:[#allocation3 + $0x28] sm:$0xf0] %v543
      %v548 = vld [vmem:[#allocation2 + $0x8] sm:$0xf]
      %v549 = vld [vmem:[#allocation2 + $0x10] sm:$0xf]
      %v550 = vld [vmem:[#allocation2 + $0x18] sm:$0xf]
      %554 = vrot.lane.b32.xlu0 %v548, 113
      %v555 = vpop.permute.xlu0 %554
      %556 = vrot.lane.b32.xlu0 %v549, 113
      %v557 = vpop.permute.xlu0 %556
      %558 = vrot.lane.b32.xlu0 %v550, 113
      %v559 = vpop.permute.xlu0 %558
      %vm560 = vcmask 924672
      %v561 = vsel %vm560, %v555, %v557
      %v562 = vsel %vm560, %v557, %v559
      %v565 = vsel %vm423, %v561, 0.0
      %v566 = vsel %vm424, %v562, 0.0
      %567 = vst [vmem:[#allocation3 + $0x30] sm:$0xf] %v565
      %568 = vst [vmem:[#allocation3 + $0x38] sm:$0xf] %v566
      %v569 = vld [vmem:[#allocation2 + $0x8] sm:$0xf]
      %v570 = vld [vmem:[#allocation2 + $0x10] sm:$0xf]
      %v571 = vld [vmem:[#allocation2 + $0x18] sm:$0xf]
      %v575 = vrot.slane %v569, 4
      %v576 = vrot.slane %v570, 4
      %v577 = vrot.slane %v571, 4
      %578 = vrot.lane.b32.xlu0 %v575, 112
      %v579 = vpop.permute.xlu0 %578
      %580 = vrot.lane.b32.xlu0 %v576, 112
      %v581 = vpop.permute.xlu0 %580
      %582 = vrot.lane.b32.xlu0 %v577, 112
      %v583 = vpop.permute.xlu0 %582
      %vm584 = vcmask 916480
      %v585 = vsel %vm584, %v579, %v581
      %v586 = vsel %vm584, %v581, %v583
      %589 = vst [vmem:[#allocation3 + $0x30] sm:$0xf0] %v585
      %590 = vst [vmem:[#allocation3 + $0x38] sm:$0xf0] %v586
      %v591 = vld [vmem:[#allocation2 + $0x8] sm:$0xf]
      %v592 = vld [vmem:[#allocation2 + $0x10] sm:$0xf]
      %v593 = vld [vmem:[#allocation2 + $0x18] sm:$0xf]
      %597 = vrot.lane.b32.xlu0 %v591, 111
      %v598 = vpop.permute.xlu0 %597
      %599 = vrot.lane.b32.xlu0 %v592, 111
      %v600 = vpop.permute.xlu0 %599
      %601 = vrot.lane.b32.xlu0 %v593, 111
      %v602 = vpop.permute.xlu0 %601
      %vm603 = vcmask 908288
      %v604 = vsel %vm603, %v598, %v600
      %v605 = vsel %vm603, %v600, %v602
      %v608 = vsel %vm470, %v604, 0.0
      %v609 = vsel %vm471, %v605, 0.0
      %610 = vst [vmem:[#allocation3 + $0x40] sm:$0xf] %v608
      %611 = vst [vmem:[#allocation3 + $0x48] sm:$0xf] %v609
      %v612 = vld [vmem:[#allocation3] sm:$0xff]
      %v613 = vld [vmem:[#allocation3 + $0x8] sm:$0xff]
      %v614 = vld [vmem:[#allocation3 + $0x10] sm:$0xff]
      %v615 = vld [vmem:[#allocation3 + $0x18] sm:$0xff]
      %v616 = vld [vmem:[#allocation3 + $0x20] sm:$0xff]
      %v617 = vld [vmem:[#allocation3 + $0x28] sm:$0xff]
      %v618 = vld [vmem:[#allocation3 + $0x30] sm:$0xff]
      %v619 = vld [vmem:[#allocation3 + $0x38] sm:$0xff]
      %v620 = vld [vmem:[#allocation3 + $0x40] sm:$0xf]
      %v621 = vld [vmem:[#allocation3 + $0x48] sm:$0xf]
      %v622 = vpack.c.bf16 %v614, %v612
      %v623 = vpack.c.bf16 %v615, %v613
      %v624 = vpack.c.bf16 %v618, %v616
      %v625 = vpack.c.bf16 %v619, %v617
      %v626 = vpack.c.bf16 %v620, %v620
      %v627 = vpack.c.bf16 %v621, %v621
      %v628 = vld [vmem:[%s1] sm:$0xf]
      %v629 = vld [vmem:[%s1 + $0x4] sm:$0xf]
      %v632 = vunpack.c.l.b16 %v628
      %v633 = vunpack.c.l.b16 %v629
      %v634 = vpack.c.b16 %v633, %v632
      %vm635 = vcmask 293888
      %v637 = vsel %vm635, %v634, 0
      %vm639 = vcmask 1041408
      %v641 = vsel %vm639, %v626, 0
      %v644 = vsel %vm639, %v627, 0
      %646 = vmatprep.subr.bf16.mxu0 0
      %647 = vmatpush1.bf16.msra.mxu0 0
      %648 = vmatprep.subr.bf16.mxu0 0
      %649 = vmatpush1.bf16.msra.mxu0 0
      %650 = vmatprep.subr.bf16.mxu0 0
      %651 = vmatpush1.bf16.msra.mxu0 0
      %652 = vmatprep.subr.bf16.mxu0 0
      %653 = vmatpush1.bf16.msra.mxu0 0
      %654 = vmatprep.subr.bf16.mxu0 0
      %655 = vmatpush1.bf16.msra.mxu0 0
      %656 = vmatprep.subr.bf16.mxu0 %v644
      %657 = vmatpush1.bf16.msra.mxu0 %v641
      %658 = vmatprep.subr.bf16.mxu0 %v625
      %659 = vmatpush1.bf16.msra.mxu0 %v624
      %660 = vmatprep.subr.bf16.mxu0 %v623
      %661 = vmatpush1.bf16.msra.mxu0 %v622
      %662 = vmatprep.subr.bf16.mxu0 0
      %663 = vmatpush2.bf16.msra.mxu0 0
      %664 = vmatprep.subr.bf16.mxu0 0
      %665 = vmatpush2.bf16.msra.mxu0 0
      %666 = vmatprep.subr.bf16.mxu0 0
      %667 = vmatpush2.bf16.msra.mxu0 0
      %668 = vmatprep.subr.bf16.mxu0 0
      %669 = vmatpush2.bf16.msra.mxu0 0
      %670 = vmatprep.subr.bf16.mxu0 0
      %671 = vmatpush2.bf16.msra.mxu0 0
      %672 = vmatprep.subr.bf16.mxu0 0
      %673 = vmatpush2.bf16.msra.mxu0 0
      %674 = vmatprep.subr.bf16.mxu0 0
      %675 = vmatpush2.bf16.msra.mxu0 0
      %676 = vmatprep.subr.bf16.mxu0 0
      %677 = vmatpush2.bf16.msra.mxu0 0
      %678 = vmatprep.mubr.bf16.mxu0 0
      %679 = vmatmul.mubr.bf16.gmra.mxu0 %v637
      %v680 = vpop.f32.mrf.mxu0
      %v681 = vadd.f32 0.0, %v680
      %v682 = vpop.f32.mrf.mxu0
      %v683 = vadd.f32 0.0, %v682
      %v684 = vpop.f32.mrf.mxu0
      %v685 = vadd.f32 0.0, %v684
      %v686 = vpop.f32.mrf.mxu0
      %v687 = vadd.f32 0.0, %v686
      %688 = vdwg.mxu0
      %v689 = vld [vmem:[%s2] sm:$0xff]
      %v690 = vld [vmem:[%s2 + $0x8] sm:$0xff]
      %692 = vset.pattern.permute.xlu0 0
      %693 = vperm.xlu0 %692, %v689
      %v694 = vpop.permute.xlu0 %693
      %697 = vset.pattern.permute.xlu0 0
      %698 = vperm.xlu0 %697, %v690
      %v699 = vpop.permute.xlu0 %698
      %v701 = vmul.f32 %v681, %v694
      %v702 = vmul.f32 %v683, %v694
      %v703 = vmul.f32 %v685, %v699
      %v704 = vmul.f32 %v687, %v699
      %v705 = vld [vmem:[%s3] sm:$0xff]
      %v706 = vld [vmem:[%s3 + $0x8] sm:$0xff]
      %708 = vset.pattern.permute.xlu0 0
      %709 = vperm.xlu0 %708, %v705
      %v710 = vpop.permute.xlu0 %709
      %713 = vset.pattern.permute.xlu0 0
      %714 = vperm.xlu0 %713, %v706
      %v715 = vpop.permute.xlu0 %714
      %v717 = vadd.f32 %v701, %v710
      %v718 = vadd.f32 %v702, %v710
      %v719 = vadd.f32 %v703, %v715
      %v720 = vadd.f32 %v704, %v715
      %v721 = vmax.f32 %v717, 0.0
      %v722 = vmax.f32 %v718, 0.0
      %v723 = vmax.f32 %v719, 0.0
      %v724 = vmax.f32 %v720, 0.0
      %725 = vst [vmem:[#allocation2 + $0x8] sm:$0xff] %v721
      %726 = vst [vmem:[#allocation2 + $0x10] sm:$0xff] %v722
      %727 = vst [vmem:[#allocation2 + $0x28] sm:$0xff] %v723
      %728 = vst [vmem:[#allocation2 + $0x30] sm:$0xff] %v724
      %v729 = vadd.f32 %v721, %v723
      %v730 = vadd.f32 %v722, %v724
      %731 = vst [vmem:[%s359] sm:$0xff] %v729
      %732 = vst [vmem:[%s359 + $0x8] sm:$0xff] %v730
      %v733 = vld [vmem:[#allocation2] sm:$0xff]
      %v734 = vld [vmem:[#allocation2 + $0x8] sm:$0xff]
      %v735 = vld [vmem:[#allocation2 + $0x10] sm:$0xff]
      %v736 = vld [vmem:[#allocation2 + $0x20] sm:$0xff]
      %v737 = vld [vmem:[#allocation2 + $0x28] sm:$0xff]
      %v738 = vld [vmem:[#allocation2 + $0x30] sm:$0xff]
      %745 = vrot.lane.b32.xlu0 %v733, 17
      %v746 = vpop.permute.xlu0 %745
      %747 = vrot.lane.b32.xlu0 %v734, 17
      %v748 = vpop.permute.xlu0 %747
      %749 = vrot.lane.b32.xlu0 %v735, 17
      %v750 = vpop.permute.xlu0 %749
      %751 = vrot.lane.b32.xlu0 %v736, 17
      %v752 = vpop.permute.xlu0 %751
      %753 = vrot.lane.b32.xlu0 %v737, 17
      %v754 = vpop.permute.xlu0 %753
      %755 = vrot.lane.b32.xlu0 %v738, 17
      %v756 = vpop.permute.xlu0 %755
      %v757 = vsel %vm434, %v746, %v748
      %v758 = vsel %vm434, %v748, %v750
      %v759 = vsel %vm434, %v752, %v754
      %v760 = vsel %vm434, %v754, %v756
      %v765 = vsel %vm423, %v757, 0.0
      %v766 = vsel %vm424, %v758, 0.0
      %v767 = vsel %vm423, %v759, 0.0
      %v768 = vsel %vm424, %v760, 0.0
      %769 = vst [vmem:[#allocation3] sm:$0xff] %v765
      %770 = vst [vmem:[#allocation3 + $0x8] sm:$0xff] %v766
      %771 = vst [vmem:[#allocation3 + $0x10] sm:$0xff] %v767
      %772 = vst [vmem:[#allocation3 + $0x18] sm:$0xff] %v768
      %v773 = vld [vmem:[#allocation2] sm:$0xff]
      %v774 = vld [vmem:[#allocation2 + $0x8] sm:$0xff]
      %v775 = vld [vmem:[#allocation2 + $0x10] sm:$0xff]
      %v776 = vld [vmem:[#allocation2 + $0x20] sm:$0xff]
      %v777 = vld [vmem:[#allocation2 + $0x28] sm:$0xff]
      %v778 = vld [vmem:[#allocation2 + $0x30] sm:$0xff]
      %785 = vrot.lane.b32.xlu0 %v773, 16
      %v786 = vpop.permute.xlu0 %785
      %787 = vrot.lane.b32.xlu0 %v774, 16
      %v788 = vpop.permute.xlu0 %787
      %789 = vrot.lane.b32.xlu0 %v775, 16
      %v790 = vpop.permute.xlu0 %789
      %791 = vrot.lane.b32.xlu0 %v776, 16
      %v792 = vpop.permute.xlu0 %791
      %793 = vrot.lane.b32.xlu0 %v777, 16
      %v794 = vpop.permute.xlu0 %793
      %795 = vrot.lane.b32.xlu0 %v778, 16
      %v796 = vpop.permute.xlu0 %795
      %v797 = vsel %vm458, %v786, %v788
      %v798 = vsel %vm458, %v788, %v790
      %v799 = vsel %vm458, %v792, %v794
      %v800 = vsel %vm458, %v794, %v796
      %805 = vst [vmem:[#allocation3 + $0x20] sm:$0xff] %v797
      %806 = vst [vmem:[#allocation3 + $0x28] sm:$0xff] %v798
      %807 = vst [vmem:[#allocation3 + $0x30] sm:$0xff] %v799
      %808 = vst [vmem:[#allocation3 + $0x38] sm:$0xff] %v800
      %v809 = vld [vmem:[#allocation2] sm:$0xff]
      %v810 = vld [vmem:[#allocation2 + $0x8] sm:$0xff]
      %v811 = vld [vmem:[#allocation2 + $0x10] sm:$0xff]
      %v812 = vld [vmem:[#allocation2 + $0x20] sm:$0xff]
      %v813 = vld [vmem:[#allocation2 + $0x28] sm:$0xff]
      %v814 = vld [vmem:[#allocation2 + $0x30] sm:$0xff]
      %821 = vrot.lane.b32.xlu0 %v809, 15
      %v822 = vpop.permute.xlu0 %821
      %823 = vrot.lane.b32.xlu0 %v810, 15
      %v824 = vpop.permute.xlu0 %823
      %825 = vrot.lane.b32.xlu0 %v811, 15
      %v826 = vpop.permute.xlu0 %825
      %827 = vrot.lane.b32.xlu0 %v812, 15
      %v828 = vpop.permute.xlu0 %827
      %829 = vrot.lane.b32.xlu0 %v813, 15
      %v830 = vpop.permute.xlu0 %829
      %831 = vrot.lane.b32.xlu0 %v814, 15
      %v832 = vpop.permute.xlu0 %831
      %v833 = vsel %vm481, %v822, %v824
      %v834 = vsel %vm481, %v824, %v826
      %v835 = vsel %vm481, %v828, %v830
      %v836 = vsel %vm481, %v830, %v832
      %v841 = vsel %vm470, %v833, 0.0
      %v842 = vsel %vm471, %v834, 0.0
      %v843 = vsel %vm470, %v835, 0.0
      %v844 = vsel %vm471, %v836, 0.0
      %845 = vst [vmem:[#allocation3 + $0x40] sm:$0xff] %v841
      %846 = vst [vmem:[#allocation3 + $0x48] sm:$0xff] %v842
      %847 = vst [vmem:[#allocation3 + $0x50] sm:$0xff] %v843
      %848 = vst [vmem:[#allocation3 + $0x58] sm:$0xff] %v844
      %v849 = vld [vmem:[#allocation2] sm:$0xff]
      %v850 = vld [vmem:[#allocation2 + $0x8] sm:$0xff]
      %v851 = vld [vmem:[#allocation2 + $0x10] sm:$0xff]
      %v852 = vld [vmem:[#allocation2 + $0x20] sm:$0xff]
      %v853 = vld [vmem:[#allocation2 + $0x28] sm:$0xff]
      %v854 = vld [vmem:[#allocation2 + $0x30] sm:$0xff]
      %861 = vrot.lane.b32.xlu0 %v849, 1
      %v862 = vpop.permute.xlu0 %861
      %863 = vrot.lane.b32.xlu0 %v850, 1
      %v864 = vpop.permute.xlu0 %863
      %865 = vrot.lane.b32.xlu0 %v851, 1
      %v866 = vpop.permute.xlu0 %865
      %867 = vrot.lane.b32.xlu0 %v852, 1
      %v868 = vpop.permute.xlu0 %867
      %869 = vrot.lane.b32.xlu0 %v853, 1
      %v870 = vpop.permute.xlu0 %869
      %871 = vrot.lane.b32.xlu0 %v854, 1
      %v872 = vpop.permute.xlu0 %871
      %v873 = vsel %vm502, %v862, %v864
      %v874 = vsel %vm502, %v864, %v866
      %v875 = vsel %vm502, %v868, %v870
      %v876 = vsel %vm502, %v870, %v872
      %v881 = vsel %vm423, %v873, 0.0
      %v882 = vsel %vm424, %v874, 0.0
      %v883 = vsel %vm423, %v875, 0.0
      %v884 = vsel %vm424, %v876, 0.0
      %885 = vst [vmem:[#allocation3 + $0x60] sm:$0xff] %v881
      %886 = vst [vmem:[#allocation3 + $0x68] sm:$0xff] %v882
      %887 = vst [vmem:[#allocation3 + $0x70] sm:$0xff] %v883
      %888 = vst [vmem:[#allocation3 + $0x78] sm:$0xff] %v884
      %v889 = vld [vmem:[#allocation2 + $0x8] sm:$0xff]
      %v890 = vld [vmem:[#allocation2 + $0x10] sm:$0xff]
      %v891 = vld [vmem:[#allocation2 + $0x28] sm:$0xff]
      %v892 = vld [vmem:[#allocation2 + $0x30] sm:$0xff]
      %893 = vst [vmem:[#allocation3 + $0x80] sm:$0xff] %v889
      %894 = vst [vmem:[#allocation3 + $0x88] sm:$0xff] %v890
      %895 = vst [vmem:[#allocation3 + $0x90] sm:$0xff] %v891
      %896 = vst [vmem:[#allocation3 + $0x98] sm:$0xff] %v892
      %v897 = vld [vmem:[#allocation2 + $0x8] sm:$0xff]
      %v898 = vld [vmem:[#allocation2 + $0x10] sm:$0xff]
      %v899 = vld [vmem:[#allocation2 + $0x18] sm:$0xff]
      %v900 = vld [vmem:[#allocation2 + $0x28] sm:$0xff]
      %v901 = vld [vmem:[#allocation2 + $0x30] sm:$0xff]
      %v902 = vld [vmem:[#allocation2 + $0x38] sm:$0xff]
      %909 = vrot.lane.b32.xlu0 %v897, 127
      %v910 = vpop.permute.xlu0 %909
      %911 = vrot.lane.b32.xlu0 %v898, 127
      %v912 = vpop.permute.xlu0 %911
      %913 = vrot.lane.b32.xlu0 %v899, 127
      %v914 = vpop.permute.xlu0 %913
      %915 = vrot.lane.b32.xlu0 %v900, 127
      %v916 = vpop.permute.xlu0 %915
      %917 = vrot.lane.b32.xlu0 %v901, 127
      %v918 = vpop.permute.xlu0 %917
      %919 = vrot.lane.b32.xlu0 %v902, 127
      %v920 = vpop.permute.xlu0 %919
      %v921 = vsel %vm533, %v910, %v912
      %v922 = vsel %vm533, %v912, %v914
      %v923 = vsel %vm533, %v916, %v918
      %v924 = vsel %vm533, %v918, %v920
      %v929 = vsel %vm470, %v921, 0.0
      %v930 = vsel %vm471, %v922, 0.0
      %v931 = vsel %vm470, %v923, 0.0
      %v932 = vsel %vm471, %v924, 0.0
      %933 = vst [vmem:[#allocation3 + $0xa0] sm:$0xff] %v929
      %934 = vst [vmem:[#allocation3 + $0xa8] sm:$0xff] %v930
      %935 = vst [vmem:[#allocation3 + $0xb0] sm:$0xff] %v931
      %936 = vst [vmem:[#allocation3 + $0xb8] sm:$0xff] %v932
      %v937 = vld [vmem:[#allocation2 + $0x8] sm:$0xff]
      %v938 = vld [vmem:[#allocation2 + $0x10] sm:$0xff]
      %v939 = vld [vmem:[#allocation2 + $0x18] sm:$0xff]
      %v940 = vld [vmem:[#allocation2 + $0x28] sm:$0xff]
      %v941 = vld [vmem:[#allocation2 + $0x30] sm:$0xff]
      %v942 = vld [vmem:[#allocation2 + $0x38] sm:$0xff]
      %949 = vrot.lane.b32.xlu0 %v937, 113
      %v950 = vpop.permute.xlu0 %949
      %951 = vrot.lane.b32.xlu0 %v938, 113
      %v952 = vpop.permute.xlu0 %951
      %953 = vrot.lane.b32.xlu0 %v939, 113
      %v954 = vpop.permute.xlu0 %953
      %955 = vrot.lane.b32.xlu0 %v940, 113
      %v956 = vpop.permute.xlu0 %955
      %957 = vrot.lane.b32.xlu0 %v941, 113
      %v958 = vpop.permute.xlu0 %957
      %959 = vrot.lane.b32.xlu0 %v942, 113
      %v960 = vpop.permute.xlu0 %959
      %v961 = vsel %vm560, %v950, %v952
      %v962 = vsel %vm560, %v952, %v954
      %v963 = vsel %vm560, %v956, %v958
      %v964 = vsel %vm560, %v958, %v960
      %v969 = vsel %vm423, %v961, 0.0
      %v970 = vsel %vm424, %v962, 0.0
      %v971 = vsel %vm423, %v963, 0.0
      %v972 = vsel %vm424, %v964, 0.0
      %973 = vst [vmem:[#allocation3 + $0xc0] sm:$0xff] %v969
      %974 = vst [vmem:[#allocation3 + $0xc8] sm:$0xff] %v970
      %975 = vst [vmem:[#allocation3 + $0xd0] sm:$0xff] %v971
      %976 = vst [vmem:[#allocation3 + $0xd8] sm:$0xff] %v972
      %v977 = vld [vmem:[#allocation2 + $0x8] sm:$0xff]
      %v978 = vld [vmem:[#allocation2 + $0x10] sm:$0xff]
      %v979 = vld [vmem:[#allocation2 + $0x18] sm:$0xff]
      %v980 = vld [vmem:[#allocation2 + $0x28] sm:$0xff]
      %v981 = vld [vmem:[#allocation2 + $0x30] sm:$0xff]
      %v982 = vld [vmem:[#allocation2 + $0x38] sm:$0xff]
      %989 = vrot.lane.b32.xlu0 %v977, 112
      %v990 = vpop.permute.xlu0 %989
      %991 = vrot.lane.b32.xlu0 %v978, 112
      %v992 = vpop.permute.xlu0 %991
      %993 = vrot.lane.b32.xlu0 %v979, 112
      %v994 = vpop.permute.xlu0 %993
      %995 = vrot.lane.b32.xlu0 %v980, 112
      %v996 = vpop.permute.xlu0 %995
      %997 = vrot.lane.b32.xlu0 %v981, 112
      %v998 = vpop.permute.xlu0 %997
      %999 = vrot.lane.b32.xlu0 %v982, 112
      %v1000 = vpop.permute.xlu0 %999
      %v1001 = vsel %vm584, %v990, %v992
      %v1002 = vsel %vm584, %v992, %v994
      %v1003 = vsel %vm584, %v996, %v998
      %v1004 = vsel %vm584, %v998, %v1000
      %1009 = vst [vmem:[#allocation3 + $0xe0] sm:$0xff] %v1001
      %1010 = vst [vmem:[#allocation3 + $0xe8] sm:$0xff] %v1002
      %1011 = vst [vmem:[#allocation3 + $0xf0] sm:$0xff] %v1003
      %1012 = vst [vmem:[#allocation3 + $0xf8] sm:$0xff] %v1004
      %v1013 = vld [vmem:[#allocation2 + $0x8] sm:$0xff]
      %v1014 = vld [vmem:[#allocation2 + $0x10] sm:$0xff]
      %v1015 = vld [vmem:[#allocation2 + $0x18] sm:$0xff]
      %v1016 = vld [vmem:[#allocation2 + $0x28] sm:$0xff]
      %v1017 = vld [vmem:[#allocation2 + $0x30] sm:$0xff]
      %v1018 = vld [vmem:[#allocation2 + $0x38] sm:$0xff]
      %1025 = vrot.lane.b32.xlu0 %v1013, 111
      %v1026 = vpop.permute.xlu0 %1025
      %1027 = vrot.lane.b32.xlu0 %v1014, 111
      %v1028 = vpop.permute.xlu0 %1027
      %1029 = vrot.lane.b32.xlu0 %v1015, 111
      %v1030 = vpop.permute.xlu0 %1029
      %1031 = vrot.lane.b32.xlu0 %v1016, 111
      %v1032 = vpop.permute.xlu0 %1031
      %1033 = vrot.lane.b32.xlu0 %v1017, 111
      %v1034 = vpop.permute.xlu0 %1033
      %1035 = vrot.lane.b32.xlu0 %v1018, 111
      %v1036 = vpop.permute.xlu0 %1035
      %v1037 = vsel %vm603, %v1026, %v1028
      %v1038 = vsel %vm603, %v1028, %v1030
      %v1039 = vsel %vm603, %v1032, %v1034
      %v1040 = vsel %vm603, %v1034, %v1036
      %v1045 = vsel %vm470, %v1037, 0.0
      %v1046 = vsel %vm471, %v1038, 0.0
      %v1047 = vsel %vm470, %v1039, 0.0
      %v1048 = vsel %vm471, %v1040, 0.0
      %1049 = vst [vmem:[#allocation3 + $0x100] sm:$0xff] %v1045
      %1050 = vst [vmem:[#allocation3 + $0x108] sm:$0xff] %v1046
      %1051 = vst [vmem:[#allocation3 + $0x110] sm:$0xff] %v1047
      %1052 = vst [vmem:[#allocation3 + $0x118] sm:$0xff] %v1048
      %v1053 = vld [vmem:[#allocation3] sm:$0xff]
      %v1054 = vld [vmem:[#allocation3 + $0x8] sm:$0xff]
      %v1055 = vld [vmem:[#allocation3 + $0x10] sm:$0xff]
      %v1056 = vld [vmem:[#allocation3 + $0x18] sm:$0xff]
      %v1057 = vld [vmem:[#allocation3 + $0x20] sm:$0xff]
      %v1058 = vld [vmem:[#allocation3 + $0x28] sm:$0xff]
      %v1059 = vld [vmem:[#allocation3 + $0x30] sm:$0xff]
      %v1060 = vld [vmem:[#allocation3 + $0x38] sm:$0xff]
      %v1061 = vld [vmem:[#allocation3 + $0x40] sm:$0xff]
      %v1062 = vld [vmem:[#allocation3 + $0x48] sm:$0xff]
      %v1063 = vld [vmem:[#allocation3 + $0x50] sm:$0xff]
      %v1064 = vld [vmem:[#allocation3 + $0x58] sm:$0xff]
      %v1065 = vld [vmem:[#allocation3 + $0x60] sm:$0xff]
      %v1066 = vld [vmem:[#allocation3 + $0x68] sm:$0xff]
      %v1067 = vld [vmem:[#allocation3 + $0x70] sm:$0xff]
      %v1068 = vld [vmem:[#allocation3 + $0x78] sm:$0xff]
      %v1069 = vld [vmem:[#allocation3 + $0x80] sm:$0xff]
      %v1070 = vld [vmem:[#allocation3 + $0x88] sm:$0xff]
      %v1071 = vld [vmem:[#allocation3 + $0x90] sm:$0xff]
      %v1072 = vld [vmem:[#allocation3 + $0x98] sm:$0xff]
      %v1073 = vld [vmem:[#allocation3 + $0xa0] sm:$0xff]
      %v1074 = vld [vmem:[#allocation3 + $0xa8] sm:$0xff]
      %v1075 = vld [vmem:[#allocation3 + $0xb0] sm:$0xff]
      %v1076 = vld [vmem:[#allocation3 + $0xb8] sm:$0xff]
      %v1077 = vld [vmem:[#allocation3 + $0xc0] sm:$0xff]
      %v1078 = vld [vmem:[#allocation3 + $0xc8] sm:$0xff]
      %v1079 = vld [vmem:[#allocation3 + $0xd0] sm:$0xff]
      %v1080 = vld [vmem:[#allocation3 + $0xd8] sm:$0xff]
      %v1081 = vld [vmem:[#allocation3 + $0xe0] sm:$0xff]
      %v1082 = vld [vmem:[#allocation3 + $0xe8] sm:$0xff]
      %v1083 = vld [vmem:[#allocation3 + $0xf0] sm:$0xff]
      %v1084 = vld [vmem:[#allocation3 + $0xf8] sm:$0xff]
      %v1085 = vld [vmem:[#allocation3 + $0x100] sm:$0xff]
      %v1086 = vld [vmem:[#allocation3 + $0x108] sm:$0xff]
      %v1087 = vld [vmem:[#allocation3 + $0x110] sm:$0xff]
      %v1088 = vld [vmem:[#allocation3 + $0x118] sm:$0xff]
      %v1089 = vpack.c.bf16 %v1055, %v1053
      %v1090 = vpack.c.bf16 %v1056, %v1054
      %v1091 = vpack.c.bf16 %v1059, %v1057
      %v1092 = vpack.c.bf16 %v1060, %v1058
      %v1093 = vpack.c.bf16 %v1063, %v1061
      %v1094 = vpack.c.bf16 %v1064, %v1062
      %v1095 = vpack.c.bf16 %v1067, %v1065
      %v1096 = vpack.c.bf16 %v1068, %v1066
      %v1097 = vpack.c.bf16 %v1071, %v1069
      %v1098 = vpack.c.bf16 %v1072, %v1070
      %v1099 = vpack.c.bf16 %v1075, %v1073
      %v1100 = vpack.c.bf16 %v1076, %v1074
      %v1101 = vpack.c.bf16 %v1079, %v1077
      %v1102 = vpack.c.bf16 %v1080, %v1078
      %v1103 = vpack.c.bf16 %v1083, %v1081
      %v1104 = vpack.c.bf16 %v1084, %v1082
      %v1105 = vpack.c.bf16 %v1087, %v1085
      %v1106 = vpack.c.bf16 %v1088, %v1086
      %v1107 = vld [vmem:[%s4] sm:$0xff]
      %v1108 = vld [vmem:[%s4 + $0x8] sm:$0xff]
      %v1109 = vld [vmem:[%s4 + $0x10] sm:$0xff]
      %v1110 = vld [vmem:[%s4 + $0x18] sm:$0xff]
      %v1111 = vld [vmem:[%s4 + $0x20] sm:$0x11]
      %v1117 = vunpack.c.l.b16 %v1107
      %v1118 = vunpack.c.h.b16 %v1107
      %v1119 = vunpack.c.l.b16 %v1108
      %v1120 = vunpack.c.h.b16 %v1108
      %v1121 = vunpack.c.l.b16 %v1109
      %v1122 = vunpack.c.h.b16 %v1109
      %v1123 = vunpack.c.l.b16 %v1110
      %v1124 = vunpack.c.h.b16 %v1110
      %v1125 = vunpack.c.l.b16 %v1111
      %v1126 = vunpack.c.h.b16 %v1111
      %v1127 = vpack.c.b16 %v1119, %v1117
      %v1128 = vpack.c.b16 %v1120, %v1118
      %v1129 = vpack.c.b16 %v1123, %v1121
      %v1130 = vpack.c.b16 %v1124, %v1122
      %v1131 = vpack.c.b16 %v1125, %v1125
      %v1132 = vpack.c.b16 %v1126, %v1126
      %v1137 = vsel %vm458, %v1128, 0
      %v1140 = vsel %vm458, %v1130, 0
      %v1143 = vsel %vm458, %v1132, 0
      %1145 = vmatprep.subr.bf16.mxu0 %v1104
      %1146 = vmatpush1.bf16.msra.mxu0 %v1103
      %1147 = vmatprep.subr.bf16.mxu0 %v1102
      %1148 = vmatpush1.bf16.msra.mxu0 %v1101
      %1149 = vmatprep.subr.bf16.mxu0 %v1100
      %1150 = vmatpush1.bf16.msra.mxu0 %v1099
      %1151 = vmatprep.subr.bf16.mxu0 %v1098
      %1152 = vmatpush1.bf16.msra.mxu0 %v1097
      %1153 = vmatprep.subr.bf16.mxu0 %v1096
      %1154 = vmatpush1.bf16.msra.mxu0 %v1095
      %1155 = vmatprep.subr.bf16.mxu0 %v1094
      %1156 = vmatpush1.bf16.msra.mxu0 %v1093
      %1157 = vmatprep.subr.bf16.mxu0 %v1092
      %1158 = vmatpush1.bf16.msra.mxu0 %v1091
      %1159 = vmatprep.subr.bf16.mxu0 %v1090
      %1160 = vmatpush1.bf16.msra.mxu0 %v1089
      %1161 = vmatprep.subr.bf16.mxu0 0
      %1162 = vmatpush2.bf16.msra.mxu0 0
      %1163 = vmatprep.subr.bf16.mxu0 0
      %1164 = vmatpush2.bf16.msra.mxu0 0
      %1165 = vmatprep.subr.bf16.mxu0 0
      %1166 = vmatpush2.bf16.msra.mxu0 0
      %1167 = vmatprep.subr.bf16.mxu0 0
      %1168 = vmatpush2.bf16.msra.mxu0 0
      %1169 = vmatprep.subr.bf16.mxu0 0
      %1170 = vmatpush2.bf16.msra.mxu0 0
      %1171 = vmatprep.subr.bf16.mxu0 0
      %1172 = vmatpush2.bf16.msra.mxu0 0
      %1173 = vmatprep.subr.bf16.mxu0 0
      %1174 = vmatpush2.bf16.msra.mxu0 0
      %1175 = vmatprep.subr.bf16.mxu0 %v1106
      %1176 = vmatpush2.bf16.msra.mxu0 %v1105
      %1177 = vmatprep.mubr.bf16.mxu0 %v1137
      %1178 = vmatmul.mubr.bf16.gmra.mxu0 %v1127
      %v1179 = vpop.f32.mrf.mxu0
      %v1180 = vadd.f32 0.0, %v1179
      %v1181 = vpop.f32.mrf.mxu0
      %v1182 = vadd.f32 0.0, %v1181
      %v1183 = vpop.f32.mrf.mxu0
      %v1184 = vadd.f32 0.0, %v1183
      %v1185 = vpop.f32.mrf.mxu0
      %v1186 = vadd.f32 0.0, %v1185
      %1187 = vmatprep.mubr.bf16.mxu0 %v1140
      %1188 = vmatmul.mubr.bf16.gmra.mxu0 %v1129
      %v1189 = vpop.f32.mrf.mxu0
      %v1190 = vadd.f32 0.0, %v1189
      %v1191 = vpop.f32.mrf.mxu0
      %v1192 = vadd.f32 0.0, %v1191
      %v1193 = vpop.f32.mrf.mxu0
      %v1194 = vadd.f32 0.0, %v1193
      %v1195 = vpop.f32.mrf.mxu0
      %v1196 = vadd.f32 0.0, %v1195
      %1197 = vmatprep.mubr.bf16.mxu0 %v1143
      %1198 = vmatmul.mubr.bf16.gmra.mxu0 %v1131
      %v1199 = vpop.f32.mrf.mxu0
      %v1200 = vadd.f32 0.0, %v1199
      %v1201 = vpop.f32.mrf.mxu0
      %v1202 = vadd.f32 0.0, %v1201
      %v1203 = vpop.f32.mrf.mxu0
      %v1204 = vpop.f32.mrf.mxu0
      %1205 = vdwg.mxu0
      %v1206 = vld [vmem:[%s5] sm:$0xff]
      %v1207 = vld [vmem:[%s5 + $0x8] sm:$0xff]
      %v1208 = vld [vmem:[%s5 + $0x10] sm:$0xff]
      %v1209 = vld [vmem:[%s5 + $0x18] sm:$0xff]
      %v1210 = vld [vmem:[%s5 + $0x20] sm:$0x3]
      %1212 = vset.pattern.permute.xlu0 0
      %1213 = vperm.xlu0 %1212, %v1206
      %v1214 = vpop.permute.xlu0 %1213
      %1217 = vset.pattern.permute.xlu0 0
      %1218 = vperm.xlu0 %1217, %v1207
      %v1219 = vpop.permute.xlu0 %1218
      %1222 = vset.pattern.permute.xlu0 0
      %1223 = vperm.xlu0 %1222, %v1208
      %v1224 = vpop.permute.xlu0 %1223
      %1227 = vset.pattern.permute.xlu0 0
      %1228 = vperm.xlu0 %1227, %v1209
      %v1229 = vpop.permute.xlu0 %1228
      %1232 = vset.pattern.permute.xlu0 0
      %1233 = vperm.xlu0 %1232, %v1210
      %v1234 = vpop.permute.xlu0 %1233
      %v1236 = vmul.f32 %v1180, %v1214
      %v1237 = vmul.f32 %v1182, %v1214
      %v1238 = vmul.f32 %v1184, %v1219
      %v1239 = vmul.f32 %v1186, %v1219
      %v1240 = vmul.f32 %v1190, %v1224
      %v1241 = vmul.f32 %v1192, %v1224
      %v1242 = vmul.f32 %v1194, %v1229
      %v1243 = vmul.f32 %v1196, %v1229
      %v1244 = vmul.f32 %v1200, %v1234
      %v1245 = vmul.f32 %v1202, %v1234
      %v1246 = vld [vmem:[%s6] sm:$0xff]
      %v1247 = vld [vmem:[%s6 + $0x8] sm:$0xff]
      %v1248 = vld [vmem:[%s6 + $0x10] sm:$0xff]
      %v1249 = vld [vmem:[%s6 + $0x18] sm:$0xff]
      %v1250 = vld [vmem:[%s6 + $0x20] sm:$0x3]
      %1252 = vset.pattern.permute.xlu0 0
      %1253 = vperm.xlu0 %1252, %v1246
      %v1254 = vpop.permute.xlu0 %1253
      %1257 = vset.pattern.permute.xlu0 0
      %1258 = vperm.xlu0 %1257, %v1247
      %v1259 = vpop.permute.xlu0 %1258
      %1262 = vset.pattern.permute.xlu0 0
      %1263 = vperm.xlu0 %1262, %v1248
      %v1264 = vpop.permute.xlu0 %1263
      %1267 = vset.pattern.permute.xlu0 0
      %1268 = vperm.xlu0 %1267, %v1249
      %v1269 = vpop.permute.xlu0 %1268
      %1272 = vset.pattern.permute.xlu0 0
      %1273 = vperm.xlu0 %1272, %v1250
      %v1274 = vpop.permute.xlu0 %1273
      %v1276 = vadd.f32 %v1236, %v1254
      %v1277 = vadd.f32 %v1237, %v1254
      %v1278 = vadd.f32 %v1238, %v1259
      %v1279 = vadd.f32 %v1239, %v1259
      %v1280 = vadd.f32 %v1240, %v1264
      %v1281 = vadd.f32 %v1241, %v1264
      %v1282 = vadd.f32 %v1242, %v1269
      %v1283 = vadd.f32 %v1243, %v1269
      %v1284 = vadd.f32 %v1244, %v1274
      %v1285 = vadd.f32 %v1245, %v1274
      %v1286 = vmax.f32 %v1276, 0.0
      %v1287 = vmax.f32 %v1277, 0.0
      %v1288 = vmax.f32 %v1278, 0.0
      %v1289 = vmax.f32 %v1279, 0.0
      %v1290 = vmax.f32 %v1280, 0.0
      %v1291 = vmax.f32 %v1281, 0.0
      %v1292 = vmax.f32 %v1282, 0.0
      %v1293 = vmax.f32 %v1283, 0.0
      %v1294 = vmax.f32 %v1284, 0.0
      %v1295 = vmax.f32 %v1285, 0.0
      %1296 = vst [vmem:[#allocation2 + $0x8] sm:$0xff] %v1286
      %1297 = vst [vmem:[#allocation2 + $0x10] sm:$0xff] %v1287
      %1298 = vst [vmem:[#allocation2 + $0x28] sm:$0xff] %v1288
      %1299 = vst [vmem:[#allocation2 + $0x30] sm:$0xff] %v1289
      %1300 = vst [vmem:[#allocation2 + $0x48] sm:$0xff] %v1290
      %1301 = vst [vmem:[#allocation2 + $0x50] sm:$0xff] %v1291
      %1302 = vst [vmem:[#allocation2 + $0x68] sm:$0xff] %v1292
      %1303 = vst [vmem:[#allocation2 + $0x70] sm:$0xff] %v1293
      %1304 = vst [vmem:[#allocation2 + $0x88] sm:$0x3] %v1294
      %1305 = vst [vmem:[#allocation2 + $0x90] sm:$0x3] %v1295
      %vm1312 = vcmask 1046528
      %v1313 = vrot.slane %v1290, 1
      %v1314 = vrot.slane %v1292, 1
      %v1315 = vsel %vm1312, %v1313, %v1314
      %v1316 = vrot.slane %v1291, 1
      %v1317 = vrot.slane %v1293, 1
      %v1318 = vsel %vm1312, %v1316, %v1317
      %v1319 = vrot.slane %v1294, 1
      %v1320 = vsel %vm1312, %v1314, %v1319
      %v1321 = vrot.slane %v1295, 1
      %v1322 = vsel %vm1312, %v1317, %v1321
      %v1329 = vadd.f32 %v1286, %v1315
      %v1330 = vadd.f32 %v1287, %v1318
      %v1331 = vadd.f32 %v1288, %v1320
      %v1332 = vadd.f32 %v1289, %v1322
      %v1333 = vadd.f32 %v1290, %v1319
      %v1334 = vadd.f32 %v1291, %v1321
      %1335 = vst [vmem:[%s359 + $0x10] sm:$0xff] %v1329
      %1336 = vst [vmem:[%s359 + $0x18] sm:$0xff] %v1330
      %1337 = vst [vmem:[%s359 + $0x20] sm:$0xff] %v1331
      %1338 = vst [vmem:[%s359 + $0x28] sm:$0xff] %v1332
      %1339 = vst [vmem:[%s359 + $0x30] sm:$0x1] %v1333
      %1340 = vst [vmem:[%s359 + $0x38] sm:$0x1] %v1334
      %v1341 = vld [vmem:[#allocation2] sm:$0xff]
      %v1342 = vld [vmem:[#allocation2 + $0x8] sm:$0xff]
      %v1343 = vld [vmem:[#allocation2 + $0x10] sm:$0xff]
      %v1344 = vld [vmem:[#allocation2 + $0x20] sm:$0xff]
      %v1345 = vld [vmem:[#allocation2 + $0x28] sm:$0xff]
      %v1346 = vld [vmem:[#allocation2 + $0x30] sm:$0xff]
      %v1347 = vld [vmem:[#allocation2 + $0x40] sm:$0xff]
      %v1348 = vld [vmem:[#allocation2 + $0x48] sm:$0xff]
      %v1349 = vld [vmem:[#allocation2 + $0x50] sm:$0xff]
      %v1350 = vld [vmem:[#allocation2 + $0x60] sm:$0xff]
      %v1351 = vld [vmem:[#allocation2 + $0x68] sm:$0xff]
      %v1352 = vld [vmem:[#allocation2 + $0x70] sm:$0xff]
      %v1353 = vld [vmem:[#allocation2 + $0x80] sm:$0x3]
      %v1354 = vld [vmem:[#allocation2 + $0x88] sm:$0x3]
      %v1355 = vld [vmem:[#allocation2 + $0x90] sm:$0x3]
      %1371 = vrot.lane.b32.xlu0 %v1341, 17
      %v1372 = vpop.permute.xlu0 %1371
      %1373 = vrot.lane.b32.xlu0 %v1342, 17
      %v1374 = vpop.permute.xlu0 %1373
      %1375 = vrot.lane.b32.xlu0 %v1343, 17
      %v1376 = vpop.permute.xlu0 %1375
      %1377 = vrot.lane.b32.xlu0 %v1344, 17
      %v1378 = vpop.permute.xlu0 %1377
      %1379 = vrot.lane.b32.xlu0 %v1345, 17
      %v1380 = vpop.permute.xlu0 %1379
      %1381 = vrot.lane.b32.xlu0 %v1346, 17
      %v1382 = vpop.permute.xlu0 %1381
      %1383 = vrot.lane.b32.xlu0 %v1347, 17
      %v1384 = vpop.permute.xlu0 %1383
      %1385 = vrot.lane.b32.xlu0 %v1348, 17
      %v1386 = vpop.permute.xlu0 %1385
      %1387 = vrot.lane.b32.xlu0 %v1349, 17
      %v1388 = vpop.permute.xlu0 %1387
      %1389 = vrot.lane.b32.xlu0 %v1350, 17
      %v1390 = vpop.permute.xlu0 %1389
      %1391 = vrot.lane.b32.xlu0 %v1351, 17
      %v1392 = vpop.permute.xlu0 %1391
      %1393 = vrot.lane.b32.xlu0 %v1352, 17
      %v1394 = vpop.permute.xlu0 %1393
      %1395 = vrot.lane.b32.xlu0 %v1353, 17
      %v1396 = vpop.permute.xlu0 %1395
      %1397 = vrot.lane.b32.xlu0 %v1354, 17
      %v1398 = vpop.permute.xlu0 %1397
      %1399 = vrot.lane.b32.xlu0 %v1355, 17
      %v1400 = vpop.permute.xlu0 %1399
      %v1401 = vsel %vm434, %v1372, %v1374
      %v1402 = vsel %vm434, %v1374, %v1376
      %v1403 = vsel %vm434, %v1378, %v1380
      %v1404 = vsel %vm434, %v1380, %v1382
      %v1405 = vsel %vm434, %v1384, %v1386
      %v1406 = vsel %vm434, %v1386, %v1388
      %v1407 = vsel %vm434, %v1390, %v1392
      %v1408 = vsel %vm434, %v1392, %v1394
      %v1409 = vsel %vm434, %v1396, %v1398
      %v1410 = vsel %vm434, %v1398, %v1400
      %v1421 = vsel %vm423, %v1401, 0.0
      %v1422 = vsel %vm424, %v1402, 0.0
      %v1423 = vsel %vm423, %v1403, 0.0
      %v1424 = vsel %vm424, %v1404, 0.0
      %v1425 = vsel %vm423, %v1405, 0.0
      %v1426 = vsel %vm424, %v1406, 0.0
      %v1427 = vsel %vm423, %v1407, 0.0
      %v1428 = vsel %vm424, %v1408, 0.0
      %v1429 = vsel %vm423, %v1409, 0.0
      %v1430 = vsel %vm424, %v1410, 0.0
      %1431 = vst [vmem:[#allocation3] sm:$0xff] %v1421
      %1432 = vst [vmem:[#allocation3 + $0x8] sm:$0xff] %v1422
      %1433 = vst [vmem:[#allocation3 + $0x10] sm:$0xff] %v1423
      %1434 = vst [vmem:[#allocation3 + $0x18] sm:$0xff] %v1424
      %1435 = vst [vmem:[#allocation3 + $0x20] sm:$0xff] %v1425
      %1436 = vst [vmem:[#allocation3 + $0x28] sm:$0xff] %v1426
      %1437 = vst [vmem:[#allocation3 + $0x30] sm:$0xff] %v1427
      %1438 = vst [vmem:[#allocation3 + $0x38] sm:$0xff] %v1428
      %1439 = vst [vmem:[#allocation3 + $0x40] sm:$0x3] %v1429
      %1440 = vst [vmem:[#allocation3 + $0x48] sm:$0x3] %v1430
      %v1441 = vld [vmem:[#allocation2] sm:$0xff]
      %v1442 = vld [vmem:[#allocation2 + $0x8] sm:$0xff]
      %v1443 = vld [vmem:[#allocation2 + $0x10] sm:$0xff]
      %v1444 = vld [vmem:[#allocation2 + $0x20] sm:$0xff]
      %v1445 = vld [vmem:[#allocation2 + $0x28] sm:$0xff]
      %v1446 = vld [vmem:[#allocation2 + $0x30] sm:$0xff]
      %v1447 = vld [vmem:[#allocation2 + $0x40] sm:$0xff]
      %v1448 = vld [vmem:[#allocation2 + $0x48] sm:$0xff]
      %v1449 = vld [vmem:[#allocation2 + $0x50] sm:$0xff]
      %v1450 = vld [vmem:[#allocation2 + $0x60] sm:$0xff]
      %v1451 = vld [vmem:[#allocation2 + $0x68] sm:$0xff]
      %v1452 = vld [vmem:[#allocation2 + $0x70] sm:$0xff]
      %v1453 = vld [vmem:[#allocation2 + $0x80] sm:$0x3]
      %v1454 = vld [vmem:[#allocation2 + $0x88] sm:$0x3]
      %v1455 = vld [vmem:[#allocation2 + $0x90] sm:$0x3]
      %v1471 = vrot.slane %v1441, 6
      %v1472 = vrot.slane %v1442, 6
      %v1473 = vrot.slane %v1443, 6
      %v1474 = vrot.slane %v1444, 6
      %v1475 = vsel %vm639, %v1471, %v1474
      %v1476 = vrot.slane %v1445, 6
      %v1477 = vsel %vm639, %v1472, %v1476
      %v1478 = vrot.slane %v1446, 6
      %v1479 = vsel %vm639, %v1473, %v1478
      %v1480 = vrot.slane %v1447, 6
      %v1481 = vsel %vm639, %v1474, %v1480
      %v1482 = vrot.slane %v1448, 6
      %v1483 = vsel %vm639, %v1476, %v1482
      %v1484 = vrot.slane %v1449, 6
      %v1485 = vsel %vm639, %v1478, %v1484
      %v1486 = vrot.slane %v1450, 6
      %v1487 = vsel %vm639, %v1480, %v1486
      %v1488 = vrot.slane %v1451, 6
      %v1489 = vsel %vm639, %v1482, %v1488
      %v1490 = vrot.slane %v1452, 6
      %v1491 = vsel %vm639, %v1484, %v1490
      %v1492 = vrot.slane %v1453, 6
      %v1493 = vsel %vm639, %v1486, %v1492
      %v1494 = vrot.slane %v1454, 6
      %v1495 = vsel %vm639, %v1488, %v1494
      %v1496 = vrot.slane %v1455, 6
      %v1497 = vsel %vm639, %v1490, %v1496
      %1498 = vrot.lane.b32.xlu0 %v1471, 16
      %v1499 = vpop.permute.xlu0 %1498
      %1500 = vrot.lane.b32.xlu0 %v1472, 16
      %v1501 = vpop.permute.xlu0 %1500
      %1502 = vrot.lane.b32.xlu0 %v1473, 16
      %v1503 = vpop.permute.xlu0 %1502
      %1504 = vrot.lane.b32.xlu0 %v1475, 16
      %v1505 = vpop.permute.xlu0 %1504
      %1506 = vrot.lane.b32.xlu0 %v1477, 16
      %v1507 = vpop.permute.xlu0 %1506
      %1508 = vrot.lane.b32.xlu0 %v1479, 16
      %v1509 = vpop.permute.xlu0 %1508
      %1510 = vrot.lane.b32.xlu0 %v1481, 16
      %v1511 = vpop.permute.xlu0 %1510
      %1512 = vrot.lane.b32.xlu0 %v1483, 16
      %v1513 = vpop.permute.xlu0 %1512
      %1514 = vrot.lane.b32.xlu0 %v1485, 16
      %v1515 = vpop.permute.xlu0 %1514
      %1516 = vrot.lane.b32.xlu0 %v1487, 16
      %v1517 = vpop.permute.xlu0 %1516
      %1518 = vrot.lane.b32.xlu0 %v1489, 16
      %v1519 = vpop.permute.xlu0 %1518
      %1520 = vrot.lane.b32.xlu0 %v1491, 16
      %v1521 = vpop.permute.xlu0 %1520
      %1522 = vrot.lane.b32.xlu0 %v1493, 16
      %v1523 = vpop.permute.xlu0 %1522
      %1524 = vrot.lane.b32.xlu0 %v1495, 16
      %v1525 = vpop.permute.xlu0 %1524
      %1526 = vrot.lane.b32.xlu0 %v1497, 16
      %v1527 = vpop.permute.xlu0 %1526
      %v1528 = vsel %vm458, %v1499, %v1501
      %v1529 = vsel %vm458, %v1501, %v1503
      %v1530 = vsel %vm458, %v1505, %v1507
      %v1531 = vsel %vm458, %v1507, %v1509
      %v1532 = vsel %vm458, %v1511, %v1513
      %v1533 = vsel %vm458, %v1513, %v1515
      %v1534 = vsel %vm458, %v1517, %v1519
      %v1535 = vsel %vm458, %v1519, %v1521
      %v1536 = vsel %vm458, %v1523, %v1525
      %v1537 = vsel %vm458, %v1525, %v1527
      %1548 = vst [vmem:[#allocation3 + $0x40] sm:$0xfc] %v1528
      %1549 = vst [vmem:[#allocation3 + $0x48] sm:$0xfc] %v1529
      %1550 = vst [vmem:[#allocation3 + $0x50] sm:$0xff] %v1530
      %1551 = vst [vmem:[#allocation3 + $0x58] sm:$0xff] %v1531
      %1552 = vst [vmem:[#allocation3 + $0x60] sm:$0xff] %v1532
      %1553 = vst [vmem:[#allocation3 + $0x68] sm:$0xff] %v1533
      %1554 = vst [vmem:[#allocation3 + $0x70] sm:$0xff] %v1534
      %1555 = vst [vmem:[#allocation3 + $0x78] sm:$0xff] %v1535
      %1556 = vst [vmem:[#allocation3 + $0x80] sm:$0xf] %v1536
      %1557 = vst [vmem:[#allocation3 + $0x88] sm:$0xf] %v1537
      %v1558 = vld [vmem:[#allocation2] sm:$0xff]
      %v1559 = vld [vmem:[#allocation2 + $0x8] sm:$0xff]
      %v1560 = vld [vmem:[#allocation2 + $0x10] sm:$0xff]
      %v1561 = vld [vmem:[#allocation2 + $0x20] sm:$0xff]
      %v1562 = vld [vmem:[#allocation2 + $0x28] sm:$0xff]
      %v1563 = vld [vmem:[#allocation2 + $0x30] sm:$0xff]
      %v1564 = vld [vmem:[#allocation2 + $0x40] sm:$0xff]
      %v1565 = vld [vmem:[#allocation2 + $0x48] sm:$0xff]
      %v1566 = vld [vmem:[#allocation2 + $0x50] sm:$0xff]
      %v1567 = vld [vmem:[#allocation2 + $0x60] sm:$0xff]
      %v1568 = vld [vmem:[#allocation2 + $0x68] sm:$0xff]
      %v1569 = vld [vmem:[#allocation2 + $0x70] sm:$0xff]
      %v1570 = vld [vmem:[#allocation2 + $0x80] sm:$0x3]
      %v1571 = vld [vmem:[#allocation2 + $0x88] sm:$0x3]
      %v1572 = vld [vmem:[#allocation2 + $0x90] sm:$0x3]
      %1588 = vrot.lane.b32.xlu0 %v1558, 15
      %v1589 = vpop.permute.xlu0 %1588
      %1590 = vrot.lane.b32.xlu0 %v1559, 15
      %v1591 = vpop.permute.xlu0 %1590
      %1592 = vrot.lane.b32.xlu0 %v1560, 15
      %v1593 = vpop.permute.xlu0 %1592
      %1594 = vrot.lane.b32.xlu0 %v1561, 15
      %v1595 = vpop.permute.xlu0 %1594
      %1596 = vrot.lane.b32.xlu0 %v1562, 15
      %v1597 = vpop.permute.xlu0 %1596
      %1598 = vrot.lane.b32.xlu0 %v1563, 15
      %v1599 = vpop.permute.xlu0 %1598
      %1600 = vrot.lane.b32.xlu0 %v1564, 15
      %v1601 = vpop.permute.xlu0 %1600
      %1602 = vrot.lane.b32.xlu0 %v1565, 15
      %v1603 = vpop.permute.xlu0 %1602
      %1604 = vrot.lane.b32.xlu0 %v1566, 15
      %v1605 = vpop.permute.xlu0 %1604
      %1606 = vrot.lane.b32.xlu0 %v1567, 15
      %v1607 = vpop.permute.xlu0 %1606
      %1608 = vrot.lane.b32.xlu0 %v1568, 15
      %v1609 = vpop.permute.xlu0 %1608
      %1610 = vrot.lane.b32.xlu0 %v1569, 15
      %v1611 = vpop.permute.xlu0 %1610
      %1612 = vrot.lane.b32.xlu0 %v1570, 15
      %v1613 = vpop.permute.xlu0 %1612
      %1614 = vrot.lane.b32.xlu0 %v1571, 15
      %v1615 = vpop.permute.xlu0 %1614
      %1616 = vrot.lane.b32.xlu0 %v1572, 15
      %v1617 = vpop.permute.xlu0 %1616
      %v1618 = vsel %vm481, %v1589, %v1591
      %v1619 = vsel %vm481, %v1591, %v1593
      %v1620 = vsel %vm481, %v1595, %v1597
      %v1621 = vsel %vm481, %v1597, %v1599
      %v1622 = vsel %vm481, %v1601, %v1603
      %v1623 = vsel %vm481, %v1603, %v1605
      %v1624 = vsel %vm481, %v1607, %v1609
      %v1625 = vsel %vm481, %v1609, %v1611
      %v1626 = vsel %vm481, %v1613, %v1615
      %v1627 = vsel %vm481, %v1615, %v1617
      %v1638 = vsel %vm470, %v1618, 0.0
      %v1639 = vsel %vm471, %v1619, 0.0
      %v1640 = vsel %vm470, %v1620, 0.0
      %v1641 = vsel %vm471, %v1621, 0.0
      %v1642 = vsel %vm470, %v1622, 0.0
      %v1643 = vsel %vm471, %v1623, 0.0
      %v1644 = vsel %vm470, %v1624, 0.0
      %v1645 = vsel %vm471, %v1625, 0.0
      %v1646 = vsel %vm470, %v1626, 0.0
      %v1647 = vsel %vm471, %v1627, 0.0
      %vm1658 = vcmask 1043456
      %v1659 = vrot.slane %v1638, 4
      %v1660 = vrot.slane %v1639, 4
      %v1661 = vrot.slane %v1640, 4
      %v1662 = vsel %vm1658, %v1659, %v1661
      %v1663 = vrot.slane %v1641, 4
      %v1664 = vsel %vm1658, %v1660, %v1663
      %v1665 = vrot.slane %v1642, 4
      %v1666 = vsel %vm1658, %v1661, %v1665
      %v1667 = vrot.slane %v1643, 4
      %v1668 = vsel %vm1658, %v1663, %v1667
      %v1669 = vrot.slane %v1644, 4
      %v1670 = vsel %vm1658, %v1665, %v1669
      %v1671 = vrot.slane %v1645, 4
      %v1672 = vsel %vm1658, %v1667, %v1671
      %v1673 = vrot.slane %v1646, 4
      %v1674 = vsel %vm1658, %v1669, %v1673
      %v1675 = vrot.slane %v1647, 4
      %v1676 = vsel %vm1658, %v1671, %v1675
      %1687 = vst [vmem:[#allocation3 + $0x80] sm:$0xf0] %v1659
      %1688 = vst [vmem:[#allocation3 + $0x88] sm:$0xf0] %v1660
      %1689 = vst [vmem:[#allocation3 + $0x90] sm:$0xff] %v1662
      %1690 = vst [vmem:[#allocation3 + $0x98] sm:$0xff] %v1664
      %1691 = vst [vmem:[#allocation3 + $0xa0] sm:$0xff] %v1666
      %1692 = vst [vmem:[#allocation3 + $0xa8] sm:$0xff] %v1668
      %1693 = vst [vmem:[#allocation3 + $0xb0] sm:$0xff] %v1670
      %1694 = vst [vmem:[#allocation3 + $0xb8] sm:$0xff] %v1672
      %1695 = vst [vmem:[#allocation3 + $0xc0] sm:$0x3f] %v1674
      %1696 = vst [vmem:[#allocation3 + $0xc8] sm:$0x3f] %v1676
      %v1697 = vld [vmem:[#allocation2] sm:$0xff]
      %v1698 = vld [vmem:[#allocation2 + $0x8] sm:$0xff]
      %v1699 = vld [vmem:[#allocation2 + $0x10] sm:$0xff]
      %v1700 = vld [vmem:[#allocation2 + $0x20] sm:$0xff]
      %v1701 = vld [vmem:[#allocation2 + $0x28] sm:$0xff]
      %v1702 = vld [vmem:[#allocation2 + $0x30] sm:$0xff]
      %v1703 = vld [vmem:[#allocation2 + $0x40] sm:$0xff]
      %v1704 = vld [vmem:[#allocation2 + $0x48] sm:$0xff]
      %v1705 = vld [vmem:[#allocation2 + $0x50] sm:$0xff]
      %v1706 = vld [vmem:[#allocation2 + $0x60] sm:$0xff]
      %v1707 = vld [vmem:[#allocation2 + $0x68] sm:$0xff]
      %v1708 = vld [vmem:[#allocation2 + $0x70] sm:$0xff]
      %v1709 = vld [vmem:[#allocation2 + $0x80] sm:$0x3]
      %v1710 = vld [vmem:[#allocation2 + $0x88] sm:$0x3]
      %v1711 = vld [vmem:[#allocation2 + $0x90] sm:$0x3]
      %1727 = vrot.lane.b32.xlu0 %v1697, 1
      %v1728 = vpop.permute.xlu0 %1727
      %1729 = vrot.lane.b32.xlu0 %v1698, 1
      %v1730 = vpop.permute.xlu0 %1729
      %1731 = vrot.lane.b32.xlu0 %v1699, 1
      %v1732 = vpop.permute.xlu0 %1731
      %1733 = vrot.lane.b32.xlu0 %v1700, 1
      %v1734 = vpop.permute.xlu0 %1733
      %1735 = vrot.lane.b32.xlu0 %v1701, 1
      %v1736 = vpop.permute.xlu0 %1735
      %1737 = vrot.lane.b32.xlu0 %v1702, 1
      %v1738 = vpop.permute.xlu0 %1737
      %1739 = vrot.lane.b32.xlu0 %v1703, 1
      %v1740 = vpop.permute.xlu0 %1739
      %1741 = vrot.lane.b32.xlu0 %v1704, 1
      %v1742 = vpop.permute.xlu0 %1741
      %1743 = vrot.lane.b32.xlu0 %v1705, 1
      %v1744 = vpop.permute.xlu0 %1743
      %1745 = vrot.lane.b32.xlu0 %v1706, 1
      %v1746 = vpop.permute.xlu0 %1745
      %1747 = vrot.lane.b32.xlu0 %v1707, 1
      %v1748 = vpop.permute.xlu0 %1747
      %1749 = vrot.lane.b32.xlu0 %v1708, 1
      %v1750 = vpop.permute.xlu0 %1749
      %1751 = vrot.lane.b32.xlu0 %v1709, 1
      %v1752 = vpop.permute.xlu0 %1751
      %1753 = vrot.lane.b32.xlu0 %v1710, 1
      %v1754 = vpop.permute.xlu0 %1753
      %1755 = vrot.lane.b32.xlu0 %v1711, 1
      %v1756 = vpop.permute.xlu0 %1755
      %v1757 = vsel %vm502, %v1728, %v1730
      %v1758 = vsel %vm502, %v1730, %v1732
      %v1759 = vsel %vm502, %v1734, %v1736
      %v1760 = vsel %vm502, %v1736, %v1738
      %v1761 = vsel %vm502, %v1740, %v1742
      %v1762 = vsel %vm502, %v1742, %v1744
      %v1763 = vsel %vm502, %v1746, %v1748
      %v1764 = vsel %vm502, %v1748, %v1750
      %v1765 = vsel %vm502, %v1752, %v1754
      %v1766 = vsel %vm502, %v1754, %v1756
      %v1777 = vsel %vm423, %v1757, 0.0
      %v1778 = vsel %vm424, %v1758, 0.0
      %v1779 = vsel %vm423, %v1759, 0.0
      %v1780 = vsel %vm424, %v1760, 0.0
      %v1781 = vsel %vm423, %v1761, 0.0
      %v1782 = vsel %vm424, %v1762, 0.0
      %v1783 = vsel %vm423, %v1763, 0.0
      %v1784 = vsel %vm424, %v1764, 0.0
      %v1785 = vsel %vm423, %v1765, 0.0
      %v1786 = vsel %vm424, %v1766, 0.0
      %vm1797 = vcmask 1045504
      %v1798 = vrot.slane %v1777, 2
      %v1799 = vrot.slane %v1778, 2
      %v1800 = vrot.slane %v1779, 2
      %v1801 = vsel %vm1797, %v1798, %v1800
      %v1802 = vrot.slane %v1780, 2
      %v1803 = vsel %vm1797, %v1799, %v1802
      %v1804 = vrot.slane %v1781, 2
      %v1805 = vsel %vm1797, %v1800, %v1804
      %v1806 = vrot.slane %v1782, 2
      %v1807 = vsel %vm1797, %v1802, %v1806
      %v1808 = vrot.slane %v1783, 2
      %v1809 = vsel %vm1797, %v1804, %v1808
      %v1810 = vrot.slane %v1784, 2
      %v1811 = vsel %vm1797, %v1806, %v1810
      %v1812 = vrot.slane %v1785, 2
      %v1813 = vsel %vm1797, %v1808, %v1812
      %v1814 = vrot.slane %v1786, 2
      %v1815 = vsel %vm1797, %v1810, %v1814
      %1826 = vst [vmem:[#allocation3 + $0xc0] sm:$0xc0] %v1798
      %1827 = vst [vmem:[#allocation3 + $0xc8] sm:$0xc0] %v1799
      %1828 = vst [vmem:[#allocation3 + $0xd0] sm:$0xff] %v1801
      %1829 = vst [vmem:[#allocation3 + $0xd8] sm:$0xff] %v1803
      %1830 = vst [vmem:[#allocation3 + $0xe0] sm:$0xff] %v1805
      %1831 = vst [vmem:[#allocation3 + $0xe8] sm:$0xff] %v1807
      %1832 = vst [vmem:[#allocation3 + $0xf0] sm:$0xff] %v1809
      %1833 = vst [vmem:[#allocation3 + $0xf8] sm:$0xff] %v1811
      %1834 = vst [vmem:[#allocation3 + $0x100] sm:$0xff] %v1813
      %1835 = vst [vmem:[#allocation3 + $0x108] sm:$0xff] %v1815
      %v1836 = vld [vmem:[#allocation2 + $0x8] sm:$0xff]
      %v1837 = vld [vmem:[#allocation2 + $0x10] sm:$0xff]
      %v1838 = vld [vmem:[#allocation2 + $0x28] sm:$0xff]
      %v1839 = vld [vmem:[#allocation2 + $0x30] sm:$0xff]
      %v1840 = vld [vmem:[#allocation2 + $0x48] sm:$0xff]
      %v1841 = vld [vmem:[#allocation2 + $0x50] sm:$0xff]
      %v1842 = vld [vmem:[#allocation2 + $0x68] sm:$0xff]
      %v1843 = vld [vmem:[#allocation2 + $0x70] sm:$0xff]
      %v1844 = vld [vmem:[#allocation2 + $0x88] sm:$0x3]
      %v1845 = vld [vmem:[#allocation2 + $0x90] sm:$0x3]
      %1846 = vst [vmem:[#allocation3 + $0x110] sm:$0xff] %v1836
      %1847 = vst [vmem:[#allocation3 + $0x118] sm:$0xff] %v1837
      %1848 = vst [vmem:[#allocation3 + $0x120] sm:$0xff] %v1838
      %1849 = vst [vmem:[#allocation3 + $0x128] sm:$0xff] %v1839
      %1850 = vst [vmem:[#allocation3 + $0x130] sm:$0xff] %v1840
      %1851 = vst [vmem:[#allocation3 + $0x138] sm:$0xff] %v1841
      %1852 = vst [vmem:[#allocation3 + $0x140] sm:$0xff] %v1842
      %1853 = vst [vmem:[#allocation3 + $0x148] sm:$0xff] %v1843
      %1854 = vst [vmem:[#allocation3 + $0x150] sm:$0x3] %v1844
      %1855 = vst [vmem:[#allocation3 + $0x158] sm:$0x3] %v1845
      %v1856 = vld [vmem:[#allocation2 + $0x8] sm:$0xff]
      %v1857 = vld [vmem:[#allocation2 + $0x10] sm:$0xff]
      %v1858 = vld [vmem:[#allocation2 + $0x18] sm:$0xff]
      %v1859 = vld [vmem:[#allocation2 + $0x28] sm:$0xff]
      %v1860 = vld [vmem:[#allocation2 + $0x30] sm:$0xff]
      %v1861 = vld [vmem:[#allocation2 + $0x38] sm:$0xff]
      %v1862 = vld [vmem:[#allocation2 + $0x48] sm:$0xff]
      %v1863 = vld [vmem:[#allocation2 + $0x50] sm:$0xff]
      %v1864 = vld [vmem:[#allocation2 + $0x58] sm:$0xff]
      %v1865 = vld [vmem:[#allocation2 + $0x68] sm:$0xff]
      %v1866 = vld [vmem:[#allocation2 + $0x70] sm:$0xff]
      %v1867 = vld [vmem:[#allocation2 + $0x78] sm:$0xff]
      %v1868 = vld [vmem:[#allocation2 + $0x88] sm:$0x3]
      %v1869 = vld [vmem:[#allocation2 + $0x90] sm:$0x3]
      %v1870 = vld [vmem:[#allocation2 + $0x98] sm:$0x3]
      %1886 = vrot.lane.b32.xlu0 %v1856, 127
      %v1887 = vpop.permute.xlu0 %1886
      %1888 = vrot.lane.b32.xlu0 %v1857, 127
      %v1889 = vpop.permute.xlu0 %1888
      %1890 = vrot.lane.b32.xlu0 %v1858, 127
      %v1891 = vpop.permute.xlu0 %1890
      %1892 = vrot.lane.b32.xlu0 %v1859, 127
      %v1893 = vpop.permute.xlu0 %1892
      %1894 = vrot.lane.b32.xlu0 %v1860, 127
      %v1895 = vpop.permute.xlu0 %1894
      %1896 = vrot.lane.b32.xlu0 %v1861, 127
      %v1897 = vpop.permute.xlu0 %1896
      %1898 = vrot.lane.b32.xlu0 %v1862, 127
      %v1899 = vpop.permute.xlu0 %1898
      %1900 = vrot.lane.b32.xlu0 %v1863, 127
      %v1901 = vpop.permute.xlu0 %1900
      %1902 = vrot.lane.b32.xlu0 %v1864, 127
      %v1903 = vpop.permute.xlu0 %1902
      %1904 = vrot.lane.b32.xlu0 %v1865, 127
      %v1905 = vpop.permute.xlu0 %1904
      %1906 = vrot.lane.b32.xlu0 %v1866, 127
      %v1907 = vpop.permute.xlu0 %1906
      %1908 = vrot.lane.b32.xlu0 %v1867, 127
      %v1909 = vpop.permute.xlu0 %1908
      %1910 = vrot.lane.b32.xlu0 %v1868, 127
      %v1911 = vpop.permute.xlu0 %1910
      %1912 = vrot.lane.b32.xlu0 %v1869, 127
      %v1913 = vpop.permute.xlu0 %1912
      %1914 = vrot.lane.b32.xlu0 %v1870, 127
      %v1915 = vpop.permute.xlu0 %1914
      %v1916 = vsel %vm533, %v1887, %v1889
      %v1917 = vsel %vm533, %v1889, %v1891
      %v1918 = vsel %vm533, %v1893, %v1895
      %v1919 = vsel %vm533, %v1895, %v1897
      %v1920 = vsel %vm533, %v1899, %v1901
      %v1921 = vsel %vm533, %v1901, %v1903
      %v1922 = vsel %vm533, %v1905, %v1907
      %v1923 = vsel %vm533, %v1907, %v1909
      %v1924 = vsel %vm533, %v1911, %v1913
      %v1925 = vsel %vm533, %v1913, %v1915
      %v1936 = vsel %vm470, %v1916, 0.0
      %v1937 = vsel %vm471, %v1917, 0.0
      %v1938 = vsel %vm470, %v1918, 0.0
      %v1939 = vsel %vm471, %v1919, 0.0
      %v1940 = vsel %vm470, %v1920, 0.0
      %v1941 = vsel %vm471, %v1921, 0.0
      %v1942 = vsel %vm470, %v1922, 0.0
      %v1943 = vsel %vm471, %v1923, 0.0
      %v1944 = vsel %vm470, %v1924, 0.0
      %v1945 = vsel %vm471, %v1925, 0.0
      %v1956 = vrot.slane %v1936, 6
      %v1957 = vrot.slane %v1937, 6
      %v1958 = vrot.slane %v1938, 6
      %v1959 = vsel %vm639, %v1956, %v1958
      %v1960 = vrot.slane %v1939, 6
      %v1961 = vsel %vm639, %v1957, %v1960
      %v1962 = vrot.slane %v1940, 6
      %v1963 = vsel %vm639, %v1958, %v1962
      %v1964 = vrot.slane %v1941, 6
      %v1965 = vsel %vm639, %v1960, %v1964
      %v1966 = vrot.slane %v1942, 6
      %v1967 = vsel %vm639, %v1962, %v1966
      %v1968 = vrot.slane %v1943, 6
      %v1969 = vsel %vm639, %v1964, %v1968
      %v1970 = vrot.slane %v1944, 6
      %v1971 = vsel %vm639, %v1966, %v1970
      %v1972 = vrot.slane %v1945, 6
      %v1973 = vsel %vm639, %v1968, %v1972
      %1984 = vst [vmem:[#allocation3 + $0x150] sm:$0xfc] %v1956
      %1985 = vst [vmem:[#allocation3 + $0x158] sm:$0xfc] %v1957
      %1986 = vst [vmem:[#allocation3 + $0x160] sm:$0xff] %v1959
      %1987 = vst [vmem:[#allocation3 + $0x168] sm:$0xff] %v1961
      %1988 = vst [vmem:[#allocation3 + $0x170] sm:$0xff] %v1963
      %1989 = vst [vmem:[#allocation3 + $0x178] sm:$0xff] %v1965
      %1990 = vst [vmem:[#allocation3 + $0x180] sm:$0xff] %v1967
      %1991 = vst [vmem:[#allocation3 + $0x188] sm:$0xff] %v1969
      %1992 = vst [vmem:[#allocation3 + $0x190] sm:$0xf] %v1971
      %1993 = vst [vmem:[#allocation3 + $0x198] sm:$0xf] %v1973
      %v1994 = vld [vmem:[#allocation2 + $0x8] sm:$0xff]
      %v1995 = vld [vmem:[#allocation2 + $0x10] sm:$0xff]
      %v1996 = vld [vmem:[#allocation2 + $0x18] sm:$0xff]
      %v1997 = vld [vmem:[#allocation2 + $0x28] sm:$0xff]
      %v1998 = vld [vmem:[#allocation2 + $0x30] sm:$0xff]
      %v1999 = vld [vmem:[#allocation2 + $0x38] sm:$0xff]
      %v2000 = vld [vmem:[#allocation2 + $0x48] sm:$0xff]
      %v2001 = vld [vmem:[#allocation2 + $0x50] sm:$0xff]
      %v2002 = vld [vmem:[#allocation2 + $0x58] sm:$0xff]
      %v2003 = vld [vmem:[#allocation2 + $0x68] sm:$0xff]
      %v2004 = vld [vmem:[#allocation2 + $0x70] sm:$0xff]
      %v2005 = vld [vmem:[#allocation2 + $0x78] sm:$0xff]
      %v2006 = vld [vmem:[#allocation2 + $0x88] sm:$0x3]
      %v2007 = vld [vmem:[#allocation2 + $0x90] sm:$0x3]
      %v2008 = vld [vmem:[#allocation2 + $0x98] sm:$0x3]
      %2024 = vrot.lane.b32.xlu0 %v1994, 113
      %v2025 = vpop.permute.xlu0 %2024
      %2026 = vrot.lane.b32.xlu0 %v1995, 113
      %v2027 = vpop.permute.xlu0 %2026
      %2028 = vrot.lane.b32.xlu0 %v1996, 113
      %v2029 = vpop.permute.xlu0 %2028
      %2030 = vrot.lane.b32.xlu0 %v1997, 113
      %v2031 = vpop.permute.xlu0 %2030
      %2032 = vrot.lane.b32.xlu0 %v1998, 113
      %v2033 = vpop.permute.xlu0 %2032
      %2034 = vrot.lane.b32.xlu0 %v1999, 113
      %v2035 = vpop.permute.xlu0 %2034
      %2036 = vrot.lane.b32.xlu0 %v2000, 113
      %v2037 = vpop.permute.xlu0 %2036
      %2038 = vrot.lane.b32.xlu0 %v2001, 113
      %v2039 = vpop.permute.xlu0 %2038
      %2040 = vrot.lane.b32.xlu0 %v2002, 113
      %v2041 = vpop.permute.xlu0 %2040
      %2042 = vrot.lane.b32.xlu0 %v2003, 113
      %v2043 = vpop.permute.xlu0 %2042
      %2044 = vrot.lane.b32.xlu0 %v2004, 113
      %v2045 = vpop.permute.xlu0 %2044
      %2046 = vrot.lane.b32.xlu0 %v2005, 113
      %v2047 = vpop.permute.xlu0 %2046
      %2048 = vrot.lane.b32.xlu0 %v2006, 113
      %v2049 = vpop.permute.xlu0 %2048
      %2050 = vrot.lane.b32.xlu0 %v2007, 113
      %v2051 = vpop.permute.xlu0 %2050
      %2052 = vrot.lane.b32.xlu0 %v2008, 113
      %v2053 = vpop.permute.xlu0 %2052
      %v2054 = vsel %vm560, %v2025, %v2027
      %v2055 = vsel %vm560, %v2027, %v2029
      %v2056 = vsel %vm560, %v2031, %v2033
      %v2057 = vsel %vm560, %v2033, %v2035
      %v2058 = vsel %vm560, %v2037, %v2039
      %v2059 = vsel %vm560, %v2039, %v2041
      %v2060 = vsel %vm560, %v2043, %v2045
      %v2061 = vsel %vm560, %v2045, %v2047
      %v2062 = vsel %vm560, %v2049, %v2051
      %v2063 = vsel %vm560, %v2051, %v2053
      %v2074 = vsel %vm423, %v2054, 0.0
      %v2075 = vsel %vm424, %v2055, 0.0
      %v2076 = vsel %vm423, %v2056, 0.0
      %v2077 = vsel %vm424, %v2057, 0.0
      %v2078 = vsel %vm423, %v2058, 0.0
      %v2079 = vsel %vm424, %v2059, 0.0
      %v2080 = vsel %vm423, %v2060, 0.0
      %v2081 = vsel %vm424, %v2061, 0.0
      %v2082 = vsel %vm423, %v2062, 0.0
      %v2083 = vsel %vm424, %v2063, 0.0
      %v2094 = vrot.slane %v2074, 4
      %v2095 = vrot.slane %v2075, 4
      %v2096 = vrot.slane %v2076, 4
      %v2097 = vsel %vm1658, %v2094, %v2096
      %v2098 = vrot.slane %v2077, 4
      %v2099 = vsel %vm1658, %v2095, %v2098
      %v2100 = vrot.slane %v2078, 4
      %v2101 = vsel %vm1658, %v2096, %v2100
      %v2102 = vrot.slane %v2079, 4
      %v2103 = vsel %vm1658, %v2098, %v2102
      %v2104 = vrot.slane %v2080, 4
      %v2105 = vsel %vm1658, %v2100, %v2104
      %v2106 = vrot.slane %v2081, 4
      %v2107 = vsel %vm1658, %v2102, %v2106
      %v2108 = vrot.slane %v2082, 4
      %v2109 = vsel %vm1658, %v2104, %v2108
      %v2110 = vrot.slane %v2083, 4
      %v2111 = vsel %vm1658, %v2106, %v2110
      %2122 = vst [vmem:[#allocation3 + $0x190] sm:$0xf0] %v2094
      %2123 = vst [vmem:[#allocation3 + $0x198] sm:$0xf0] %v2095
      %2124 = vst [vmem:[#allocation3 + $0x1a0] sm:$0xff] %v2097
      %2125 = vst [vmem:[#allocation3 + $0x1a8] sm:$0xff] %v2099
      %2126 = vst [vmem:[#allocation3 + $0x1b0] sm:$0xff] %v2101
      %2127 = vst [vmem:[#allocation3 + $0x1b8] sm:$0xff] %v2103
      %2128 = vst [vmem:[#allocation3 + $0x1c0] sm:$0xff] %v2105
      %2129 = vst [vmem:[#allocation3 + $0x1c8] sm:$0xff] %v2107
      %2130 = vst [vmem:[#allocation3 + $0x1d0] sm:$0x3f] %v2109
      %2131 = vst [vmem:[#allocation3 + $0x1d8] sm:$0x3f] %v2111
      %v2132 = vld [vmem:[#allocation2 + $0x8] sm:$0xff]
      %v2133 = vld [vmem:[#allocation2 + $0x10] sm:$0xff]
      %v2134 = vld [vmem:[#allocation2 + $0x18] sm:$0xff]
      %v2135 = vld [vmem:[#allocation2 + $0x28] sm:$0xff]
      %v2136 = vld [vmem:[#allocation2 + $0x30] sm:$0xff]
      %v2137 = vld [vmem:[#allocation2 + $0x38] sm:$0xff]
      %v2138 = vld [vmem:[#allocation2 + $0x48] sm:$0xff]
      %v2139 = vld [vmem:[#allocation2 + $0x50] sm:$0xff]
      %v2140 = vld [vmem:[#allocation2 + $0x58] sm:$0xff]
      %v2141 = vld [vmem:[#allocation2 + $0x68] sm:$0xff]
      %v2142 = vld [vmem:[#allocation2 + $0x70] sm:$0xff]
      %v2143 = vld [vmem:[#allocation2 + $0x78] sm:$0xff]
      %v2144 = vld [vmem:[#allocation2 + $0x88] sm:$0x3]
      %v2145 = vld [vmem:[#allocation2 + $0x90] sm:$0x3]
      %v2146 = vld [vmem:[#allocation2 + $0x98] sm:$0x3]
      %v2162 = vrot.slane %v2132, 2
      %v2163 = vrot.slane %v2133, 2
      %v2164 = vrot.slane %v2134, 2
      %v2165 = vrot.slane %v2135, 2
      %v2166 = vsel %vm1797, %v2162, %v2165
      %v2167 = vrot.slane %v2136, 2
      %v2168 = vsel %vm1797, %v2163, %v2167
      %v2169 = vrot.slane %v2137, 2
      %v2170 = vsel %vm1797, %v2164, %v2169
      %v2171 = vrot.slane %v2138, 2
      %v2172 = vsel %vm1797, %v2165, %v2171
      %v2173 = vrot.slane %v2139, 2
      %v2174 = vsel %vm1797, %v2167, %v2173
      %v2175 = vrot.slane %v2140, 2
      %v2176 = vsel %vm1797, %v2169, %v2175
      %v2177 = vrot.slane %v2141, 2
      %v2178 = vsel %vm1797, %v2171, %v2177
      %v2179 = vrot.slane %v2142, 2
      %v2180 = vsel %vm1797, %v2173, %v2179
      %v2181 = vrot.slane %v2143, 2
      %v2182 = vsel %vm1797, %v2175, %v2181
      %v2183 = vrot.slane %v2144, 2
      %v2184 = vsel %vm1797, %v2177, %v2183
      %v2185 = vrot.slane %v2145, 2
      %v2186 = vsel %vm1797, %v2179, %v2185
      %v2187 = vrot.slane %v2146, 2
      %v2188 = vsel %vm1797, %v2181, %v2187
      %2189 = vrot.lane.b32.xlu0 %v2162, 112
      %v2190 = vpop.permute.xlu0 %2189
      %2191 = vrot.lane.b32.xlu0 %v2163, 112
      %v2192 = vpop.permute.xlu0 %2191
      %2193 = vrot.lane.b32.xlu0 %v2164, 112
      %v2194 = vpop.permute.xlu0 %2193
      %2195 = vrot.lane.b32.xlu0 %v2166, 112
      %v2196 = vpop.permute.xlu0 %2195
      %2197 = vrot.lane.b32.xlu0 %v2168, 112
      %v2198 = vpop.permute.xlu0 %2197
      %2199 = vrot.lane.b32.xlu0 %v2170, 112
      %v2200 = vpop.permute.xlu0 %2199
      %2201 = vrot.lane.b32.xlu0 %v2172, 112
      %v2202 = vpop.permute.xlu0 %2201
      %2203 = vrot.lane.b32.xlu0 %v2174, 112
      %v2204 = vpop.permute.xlu0 %2203
      %2205 = vrot.lane.b32.xlu0 %v2176, 112
      %v2206 = vpop.permute.xlu0 %2205
      %2207 = vrot.lane.b32.xlu0 %v2178, 112
      %v2208 = vpop.permute.xlu0 %2207
      %2209 = vrot.lane.b32.xlu0 %v2180, 112
      %v2210 = vpop.permute.xlu0 %2209
      %2211 = vrot.lane.b32.xlu0 %v2182, 112
      %v2212 = vpop.permute.xlu0 %2211
      %2213 = vrot.lane.b32.xlu0 %v2184, 112
      %v2214 = vpop.permute.xlu0 %2213
      %2215 = vrot.lane.b32.xlu0 %v2186, 112
      %v2216 = vpop.permute.xlu0 %2215
      %2217 = vrot.lane.b32.xlu0 %v2188, 112
      %v2218 = vpop.permute.xlu0 %2217
      %v2219 = vsel %vm584, %v2190, %v2192
      %v2220 = vsel %vm584, %v2192, %v2194
      %v2221 = vsel %vm584, %v2196, %v2198
      %v2222 = vsel %vm584, %v2198, %v2200
      %v2223 = vsel %vm584, %v2202, %v2204
      %v2224 = vsel %vm584, %v2204, %v2206
      %v2225 = vsel %vm584, %v2208, %v2210
      %v2226 = vsel %vm584, %v2210, %v2212
      %v2227 = vsel %vm584, %v2214, %v2216
      %v2228 = vsel %vm584, %v2216, %v2218
      %2239 = vst [vmem:[#allocation3 + $0x1d0] sm:$0xc0] %v2219
      %2240 = vst [vmem:[#allocation3 + $0x1d8] sm:$0xc0] %v2220
      %2241 = vst [vmem:[#allocation3 + $0x1e0] sm:$0xff] %v2221
      %2242 = vst [vmem:[#allocation3 + $0x1e8] sm:$0xff] %v2222
      %2243 = vst [vmem:[#allocation3 + $0x1f0] sm:$0xff] %v2223
      %2244 = vst [vmem:[#allocation3 + $0x1f8] sm:$0xff] %v2224
      %2245 = vst [vmem:[#allocation3 + $0x200] sm:$0xff] %v2225
      %2246 = vst [vmem:[#allocation3 + $0x208] sm:$0xff] %v2226
      %2247 = vst [vmem:[#allocation3 + $0x210] sm:$0xff] %v2227
      %2248 = vst [vmem:[#allocation3 + $0x218] sm:$0xff] %v2228
      %v2249 = vld [vmem:[#allocation2 + $0x8] sm:$0xff]
      %v2250 = vld [vmem:[#allocation2 + $0x10] sm:$0xff]
      %v2251 = vld [vmem:[#allocation2 + $0x18] sm:$0xff]
      %v2252 = vld [vmem:[#allocation2 + $0x28] sm:$0xff]
      %v2253 = vld [vmem:[#allocation2 + $0x30] sm:$0xff]
      %v2254 = vld [vmem:[#allocation2 + $0x38] sm:$0xff]
      %v2255 = vld [vmem:[#allocation2 + $0x48] sm:$0xff]
      %v2256 = vld [vmem:[#allocation2 + $0x50] sm:$0xff]
      %v2257 = vld [vmem:[#allocation2 + $0x58] sm:$0xff]
      %v2258 = vld [vmem:[#allocation2 + $0x68] sm:$0xff]
      %v2259 = vld [vmem:[#allocation2 + $0x70] sm:$0xff]
      %v2260 = vld [vmem:[#allocation2 + $0x78] sm:$0xff]
      %v2261 = vld [vmem:[#allocation2 + $0x88] sm:$0x3]
      %v2262 = vld [vmem:[#allocation2 + $0x90] sm:$0x3]
      %v2263 = vld [vmem:[#allocation2 + $0x98] sm:$0x3]
      %2279 = vrot.lane.b32.xlu0 %v2249, 111
      %v2280 = vpop.permute.xlu0 %2279
      %2281 = vrot.lane.b32.xlu0 %v2250, 111
      %v2282 = vpop.permute.xlu0 %2281
      %2283 = vrot.lane.b32.xlu0 %v2251, 111
      %v2284 = vpop.permute.xlu0 %2283
      %2285 = vrot.lane.b32.xlu0 %v2252, 111
      %v2286 = vpop.permute.xlu0 %2285
      %2287 = vrot.lane.b32.xlu0 %v2253, 111
      %v2288 = vpop.permute.xlu0 %2287
      %2289 = vrot.lane.b32.xlu0 %v2254, 111
      %v2290 = vpop.permute.xlu0 %2289
      %2291 = vrot.lane.b32.xlu0 %v2255, 111
      %v2292 = vpop.permute.xlu0 %2291
      %2293 = vrot.lane.b32.xlu0 %v2256, 111
      %v2294 = vpop.permute.xlu0 %2293
      %2295 = vrot.lane.b32.xlu0 %v2257, 111
      %v2296 = vpop.permute.xlu0 %2295
      %2297 = vrot.lane.b32.xlu0 %v2258, 111
      %v2298 = vpop.permute.xlu0 %2297
      %2299 = vrot.lane.b32.xlu0 %v2259, 111
      %v2300 = vpop.permute.xlu0 %2299
      %2301 = vrot.lane.b32.xlu0 %v2260, 111
      %v2302 = vpop.permute.xlu0 %2301
      %2303 = vrot.lane.b32.xlu0 %v2261, 111
      %v2304 = vpop.permute.xlu0 %2303
      %2305 = vrot.lane.b32.xlu0 %v2262, 111
      %v2306 = vpop.permute.xlu0 %2305
      %2307 = vrot.lane.b32.xlu0 %v2263, 111
      %v2308 = vpop.permute.xlu0 %2307
      %v2309 = vsel %vm603, %v2280, %v2282
      %v2310 = vsel %vm603, %v2282, %v2284
      %v2311 = vsel %vm603, %v2286, %v2288
      %v2312 = vsel %vm603, %v2288, %v2290
      %v2313 = vsel %vm603, %v2292, %v2294
      %v2314 = vsel %vm603, %v2294, %v2296
      %v2315 = vsel %vm603, %v2298, %v2300
      %v2316 = vsel %vm603, %v2300, %v2302
      %v2317 = vsel %vm603, %v2304, %v2306
      %v2318 = vsel %vm603, %v2306, %v2308
      %v2329 = vsel %vm470, %v2309, 0.0
      %v2330 = vsel %vm471, %v2310, 0.0
      %v2331 = vsel %vm470, %v2311, 0.0
      %v2332 = vsel %vm471, %v2312, 0.0
      %v2333 = vsel %vm470, %v2313, 0.0
      %v2334 = vsel %vm471, %v2314, 0.0
      %v2335 = vsel %vm470, %v2315, 0.0
      %v2336 = vsel %vm471, %v2316, 0.0
      %v2337 = vsel %vm470, %v2317, 0.0
      %v2338 = vsel %vm471, %v2318, 0.0
      %2339 = vst [vmem:[#allocation3 + $0x220] sm:$0xff] %v2329
      %2340 = vst [vmem:[#allocation3 + $0x228] sm:$0xff] %v2330
      %2341 = vst [vmem:[#allocation3 + $0x230] sm:$0xff] %v2331
      %2342 = vst [vmem:[#allocation3 + $0x238] sm:$0xff] %v2332
      %2343 = vst [vmem:[#allocation3 + $0x240] sm:$0xff] %v2333
      %2344 = vst [vmem:[#allocation3 + $0x248] sm:$0xff] %v2334
      %2345 = vst [vmem:[#allocation3 + $0x250] sm:$0xff] %v2335
      %2346 = vst [vmem:[#allocation3 + $0x258] sm:$0xff] %v2336
      %2347 = vst [vmem:[#allocation3 + $0x260] sm:$0x3] %v2337
      %2348 = vst [vmem:[#allocation3 + $0x268] sm:$0x3] %v2338
      %v2349 = vld [vmem:[#allocation3] sm:$0xff]
      %v2350 = vld [vmem:[#allocation3 + $0x8] sm:$0xff]
      %v2351 = vld [vmem:[#allocation3 + $0x10] sm:$0xff]
      %v2352 = vld [vmem:[#allocation3 + $0x18] sm:$0xff]
      %v2353 = vld [vmem:[#allocation3 + $0x20] sm:$0xff]
      %v2354 = vld [vmem:[#allocation3 + $0x28] sm:$0xff]
      %v2355 = vld [vmem:[#allocation3 + $0x30] sm:$0xff]
      %v2356 = vld [vmem:[#allocation3 + $0x38] sm:$0xff]
      %v2357 = vld [vmem:[#allocation3 + $0x40] sm:$0xff]
      %v2358 = vld [vmem:[#allocation3 + $0x48] sm:$0xff]
      %v2359 = vld [vmem:[#allocation3 + $0x50] sm:$0xff]
      %v2360 = vld [vmem:[#allocation3 + $0x58] sm:$0xff]
      %v2361 = vld [vmem:[#allocation3 + $0x60] sm:$0xff]
      %v2362 = vld [vmem:[#allocation3 + $0x68] sm:$0xff]
      %v2363 = vld [vmem:[#allocation3 + $0x70] sm:$0xff]
      %v2364 = vld [vmem:[#allocation3 + $0x78] sm:$0xff]
      %v2365 = vld [vmem:[#allocation3 + $0x80] sm:$0xff]
      %v2366 = vld [vmem:[#allocation3 + $0x88] sm:$0xff]
      %v2367 = vld [vmem:[#allocation3 + $0x90] sm:$0xff]
      %v2368 = vld [vmem:[#allocation3 + $0x98] sm:$0xff]
      %v2369 = vld [vmem:[#allocation3 + $0xa0] sm:$0xff]
      %v2370 = vld [vmem:[#allocation3 + $0xa8] sm:$0xff]
      %v2371 = vld [vmem:[#allocation3 + $0xb0] sm:$0xff]
      %v2372 = vld [vmem:[#allocation3 + $0xb8] sm:$0xff]
      %v2373 = vld [vmem:[#allocation3 + $0xc0] sm:$0xff]
      %v2374 = vld [vmem:[#allocation3 + $0xc8] sm:$0xff]
      %v2375 = vld [vmem:[#allocation3 + $0xd0] sm:$0xff]
      %v2376 = vld [vmem:[#allocation3 + $0xd8] sm:$0xff]
      %v2377 = vld [vmem:[#allocation3 + $0xe0] sm:$0xff]
      %v2378 = vld [vmem:[#allocation3 + $0xe8] sm:$0xff]
      %v2379 = vld [vmem:[#allocation3 + $0xf0] sm:$0xff]
      %v2380 = vld [vmem:[#allocation3 + $0xf8] sm:$0xff]
      %v2381 = vld [vmem:[#allocation3 + $0x100] sm:$0xff]
      %v2382 = vld [vmem:[#allocation3 + $0x108] sm:$0xff]
      %v2383 = vld [vmem:[#allocation3 + $0x110] sm:$0xff]
      %v2384 = vld [vmem:[#allocation3 + $0x118] sm:$0xff]
      %v2385 = vld [vmem:[#allocation3 + $0x120] sm:$0xff]
      %v2386 = vld [vmem:[#allocation3 + $0x128] sm:$0xff]
      %v2387 = vld [vmem:[#allocation3 + $0x130] sm:$0xff]
      %v2388 = vld [vmem:[#allocation3 + $0x138] sm:$0xff]
      %v2389 = vld [vmem:[#allocation3 + $0x140] sm:$0xff]
      %v2390 = vld [vmem:[#allocation3 + $0x148] sm:$0xff]
      %v2391 = vld [vmem:[#allocation3 + $0x150] sm:$0xff]
      %v2392 = vld [vmem:[#allocation3 + $0x158] sm:$0xff]
      %v2393 = vld [vmem:[#allocation3 + $0x160] sm:$0xff]
      %v2394 = vld [vmem:[#allocation3 + $0x168] sm:$0xff]
      %v2395 = vld [vmem:[#allocation3 + $0x170] sm:$0xff]
      %v2396 = vld [vmem:[#allocation3 + $0x178] sm:$0xff]
      %v2397 = vld [vmem:[#allocation3 + $0x180] sm:$0xff]
      %v2398 = vld [vmem:[#allocation3 + $0x188] sm:$0xff]
      %v2399 = vld [vmem:[#allocation3 + $0x190] sm:$0xff]
      %v2400 = vld [vmem:[#allocation3 + $0x198] sm:$0xff]
      %v2401 = vld [vmem:[#allocation3 + $0x1a0] sm:$0xff]
      %v2402 = vld [vmem:[#allocation3 + $0x1a8] sm:$0xff]
      %v2403 = vld [vmem:[#allocation3 + $0x1b0] sm:$0xff]
      %v2404 = vld [vmem:[#allocation3 + $0x1b8] sm:$0xff]
      %v2405 = vld [vmem:[#allocation3 + $0x1c0] sm:$0xff]
      %v2406 = vld [vmem:[#allocation3 + $0x1c8] sm:$0xff]
      %v2407 = vld [vmem:[#allocation3 + $0x1d0] sm:$0xff]
      %v2408 = vld [vmem:[#allocation3 + $0x1d8] sm:$0xff]
      %v2409 = vld [vmem:[#allocation3 + $0x1e0] sm:$0xff]
      %v2410 = vld [vmem:[#allocation3 + $0x1e8] sm:$0xff]
      %v2411 = vld [vmem:[#allocation3 + $0x1f0] sm:$0xff]
      %v2412 = vld [vmem:[#allocation3 + $0x1f8] sm:$0xff]
      %v2413 = vld [vmem:[#allocation3 + $0x200] sm:$0xff]
      %v2414 = vld [vmem:[#allocation3 + $0x208] sm:$0xff]
      %v2415 = vld [vmem:[#allocation3 + $0x210] sm:$0xff]
      %v2416 = vld [vmem:[#allocation3 + $0x218] sm:$0xff]
      %v2417 = vld [vmem:[#allocation3 + $0x220] sm:$0xff]
      %v2418 = vld [vmem:[#allocation3 + $0x228] sm:$0xff]
      %v2419 = vld [vmem:[#allocation3 + $0x230] sm:$0xff]
      %v2420 = vld [vmem:[#allocation3 + $0x238] sm:$0xff]
      %v2421 = vld [vmem:[#allocation3 + $0x240] sm:$0xff]
      %v2422 = vld [vmem:[#allocation3 + $0x248] sm:$0xff]
      %v2423 = vld [vmem:[#allocation3 + $0x250] sm:$0xff]
      %v2424 = vld [vmem:[#allocation3 + $0x258] sm:$0xff]
      %v2425 = vld [vmem:[#allocation3 + $0x260] sm:$0x3]
      %v2426 = vld [vmem:[#allocation3 + $0x268] sm:$0x3]
      %v2427 = vpack.c.bf16 %v2351, %v2349
      %v2428 = vpack.c.bf16 %v2352, %v2350
      %v2429 = vpack.c.bf16 %v2355, %v2353
      %v2430 = vpack.c.bf16 %v2356, %v2354
      %v2431 = vpack.c.bf16 %v2359, %v2357
      %v2432 = vpack.c.bf16 %v2360, %v2358
      %v2433 = vpack.c.bf16 %v2363, %v2361
      %v2434 = vpack.c.bf16 %v2364, %v2362
      %v2435 = vpack.c.bf16 %v2367, %v2365
      %v2436 = vpack.c.bf16 %v2368, %v2366
      %v2437 = vpack.c.bf16 %v2371, %v2369
      %v2438 = vpack.c.bf16 %v2372, %v2370
      %v2439 = vpack.c.bf16 %v2375, %v2373
      %v2440 = vpack.c.bf16 %v2376, %v2374
      %v2441 = vpack.c.bf16 %v2379, %v2377
      %v2442 = vpack.c.bf16 %v2380, %v2378
      %v2443 = vpack.c.bf16 %v2383, %v2381
      %v2444 = vpack.c.bf16 %v2384, %v2382
      %v2445 = vpack.c.bf16 %v2387, %v2385
      %v2446 = vpack.c.bf16 %v2388, %v2386
      %v2447 = vpack.c.bf16 %v2391, %v2389
      %v2448 = vpack.c.bf16 %v2392, %v2390
      %v2449 = vpack.c.bf16 %v2395, %v2393
      %v2450 = vpack.c.bf16 %v2396, %v2394
      %v2451 = vpack.c.bf16 %v2399, %v2397
      %v2452 = vpack.c.bf16 %v2400, %v2398
      %v2453 = vpack.c.bf16 %v2403, %v2401
      %v2454 = vpack.c.bf16 %v2404, %v2402
      %v2455 = vpack.c.bf16 %v2407, %v2405
      %v2456 = vpack.c.bf16 %v2408, %v2406
      %v2457 = vpack.c.bf16 %v2411, %v2409
      %v2458 = vpack.c.bf16 %v2412, %v2410
      %v2459 = vpack.c.bf16 %v2415, %v2413
      %v2460 = vpack.c.bf16 %v2416, %v2414
      %v2461 = vpack.c.bf16 %v2419, %v2417
      %v2462 = vpack.c.bf16 %v2420, %v2418
      %v2463 = vpack.c.bf16 %v2423, %v2421
      %v2464 = vpack.c.bf16 %v2424, %v2422
      %v2465 = vpack.c.bf16 %v2425, %v2425
      %v2466 = vpack.c.bf16 %v2426, %v2426
      %v2467 = vld [vmem:[%s7] sm:$0xff]
      %v2468 = vld [vmem:[%s7 + $0x8] sm:$0xf]
      %v2469 = vld [vmem:[%s7 + $0xc] sm:$0xff]
      %v2470 = vld [vmem:[%s7 + $0x14] sm:$0xf]
      %v2471 = vld [vmem:[%s7 + $0x18] sm:$0xff]
      %v2472 = vld [vmem:[%s7 + $0x20] sm:$0xf]
      %v2473 = vld [vmem:[%s7 + $0x24] sm:$0xff]
      %v2474 = vld [vmem:[%s7 + $0x2c] sm:$0xf]
      %v2475 = vld [vmem:[%s7 + $0x30] sm:$0xff]
      %v2476 = vld [vmem:[%s7 + $0x38] sm:$0xf]
      %v2477 = vld [vmem:[%s7 + $0x3c] sm:$0xff]
      %v2478 = vld [vmem:[%s7 + $0x44] sm:$0xf]
      %v2479 = vld [vmem:[%s7 + $0x48] sm:$0x33]
      %v2480 = vld [vmem:[%s7 + $0x50] sm:$0x3]
      %v2495 = vunpack.c.l.b16 %v2467
      %v2496 = vunpack.c.h.b16 %v2467
      %v2497 = vunpack.c.l.b16 %v2468
      %v2498 = vunpack.c.l.b16 %v2469
      %v2499 = vunpack.c.h.b16 %v2469
      %v2500 = vunpack.c.l.b16 %v2470
      %v2501 = vunpack.c.l.b16 %v2471
      %v2502 = vunpack.c.h.b16 %v2471
      %v2503 = vunpack.c.l.b16 %v2472
      %v2504 = vunpack.c.l.b16 %v2473
      %v2505 = vunpack.c.h.b16 %v2473
      %v2506 = vunpack.c.l.b16 %v2474
      %v2507 = vunpack.c.l.b16 %v2475
      %v2508 = vunpack.c.h.b16 %v2475
      %v2509 = vunpack.c.l.b16 %v2476
      %v2510 = vunpack.c.l.b16 %v2477
      %v2511 = vunpack.c.h.b16 %v2477
      %v2512 = vunpack.c.l.b16 %v2478
      %v2513 = vunpack.c.l.b16 %v2479
      %v2514 = vunpack.c.h.b16 %v2479
      %v2515 = vunpack.c.l.b16 %v2480
      %v2516 = vpack.c.b16 %v2498, %v2495
      %v2517 = vpack.c.b16 %v2499, %v2496
      %v2518 = vpack.c.b16 %v2500, %v2497
      %v2519 = vpack.c.b16 %v2504, %v2501
      %v2520 = vpack.c.b16 %v2505, %v2502
      %v2521 = vpack.c.b16 %v2506, %v2503
      %v2522 = vpack.c.b16 %v2510, %v2507
      %v2523 = vpack.c.b16 %v2511, %v2508
      %v2524 = vpack.c.b16 %v2512, %v2509
      %v2525 = vpack.c.b16 %v2513, %v2513
      %v2526 = vpack.c.b16 %v2514, %v2514
      %v2527 = vpack.c.b16 %v2515, %v2515
      %vm2536 = vcmask 408576
      %v2538 = vsel %vm2536, %v2518, 0
      %v2541 = vsel %vm2536, %v2521, 0
      %v2544 = vsel %vm2536, %v2524, 0
      %v2547 = vsel %vm2536, %v2527, 0
      %vm2549 = vcmask 1040384
      %v2551 = vsel %vm2549, %v2465, 0
      %v2554 = vsel %vm2549, %v2466, 0
      %2556 = vmatprep.subr.bf16.mxu0 %v2442
      %2557 = vmatpush1.bf16.msra.mxu0 %v2441
      %2558 = vmatprep.subr.bf16.mxu0 %v2440
      %2559 = vmatpush1.bf16.msra.mxu0 %v2439
      %2560 = vmatprep.subr.bf16.mxu0 %v2438
      %2561 = vmatpush1.bf16.msra.mxu0 %v2437
      %2562 = vmatprep.subr.bf16.mxu0 %v2436
      %2563 = vmatpush1.bf16.msra.mxu0 %v2435
      %2564 = vmatprep.subr.bf16.mxu0 %v2434
      %2565 = vmatpush1.bf16.msra.mxu0 %v2433
      %2566 = vmatprep.subr.bf16.mxu0 %v2432
      %2567 = vmatpush1.bf16.msra.mxu0 %v2431
      %2568 = vmatprep.subr.bf16.mxu0 %v2430
      %2569 = vmatpush1.bf16.msra.mxu0 %v2429
      %2570 = vmatprep.subr.bf16.mxu0 %v2428
      %2571 = vmatpush1.bf16.msra.mxu0 %v2427
      %2572 = vmatprep.subr.bf16.mxu0 %v2458
      %2573 = vmatpush2.bf16.msra.mxu0 %v2457
      %2574 = vmatprep.subr.bf16.mxu0 %v2456
      %2575 = vmatpush2.bf16.msra.mxu0 %v2455
      %2576 = vmatprep.subr.bf16.mxu0 %v2454
      %2577 = vmatpush2.bf16.msra.mxu0 %v2453
      %2578 = vmatprep.subr.bf16.mxu0 %v2452
      %2579 = vmatpush2.bf16.msra.mxu0 %v2451
      %2580 = vmatprep.subr.bf16.mxu0 %v2450
      %2581 = vmatpush2.bf16.msra.mxu0 %v2449
      %2582 = vmatprep.subr.bf16.mxu0 %v2448
      %2583 = vmatpush2.bf16.msra.mxu0 %v2447
      %2584 = vmatprep.subr.bf16.mxu0 %v2446
      %2585 = vmatpush2.bf16.msra.mxu0 %v2445
      %2586 = vmatprep.subr.bf16.mxu0 %v2444
      %2587 = vmatpush2.bf16.msra.mxu0 %v2443
      %2588 = vmatprep.mubr.bf16.mxu0 %v2517
      %2589 = vmatmul.mubr.bf16.gmra.mxu0 %v2516
      %v2590 = vpop.f32.mrf.mxu0
      %v2591 = vadd.f32 0.0, %v2590
      %v2592 = vpop.f32.mrf.mxu0
      %v2593 = vadd.f32 0.0, %v2592
      %v2594 = vpop.f32.mrf.mxu0
      %v2595 = vadd.f32 0.0, %v2594
      %v2596 = vpop.f32.mrf.mxu0
      %v2597 = vadd.f32 0.0, %v2596
      %2598 = vmatprep.mubr.bf16.mxu0 %v2520
      %2599 = vmatmul.mubr.bf16.gmra.mxu0 %v2519
      %v2600 = vpop.f32.mrf.mxu0
      %v2601 = vadd.f32 0.0, %v2600
      %v2602 = vpop.f32.mrf.mxu0
      %v2603 = vadd.f32 0.0, %v2602
      %v2604 = vpop.f32.mrf.mxu0
      %v2605 = vadd.f32 0.0, %v2604
      %v2606 = vpop.f32.mrf.mxu0
      %v2607 = vadd.f32 0.0, %v2606
      %2608 = vmatprep.mubr.bf16.mxu0 %v2523
      %2609 = vmatmul.mubr.bf16.gmra.mxu0 %v2522
      %v2610 = vpop.f32.mrf.mxu0
      %v2611 = vadd.f32 0.0, %v2610
      %v2612 = vpop.f32.mrf.mxu0
      %v2613 = vadd.f32 0.0, %v2612
      %v2614 = vpop.f32.mrf.mxu0
      %v2615 = vadd.f32 0.0, %v2614
      %v2616 = vpop.f32.mrf.mxu0
      %v2617 = vadd.f32 0.0, %v2616
      %2618 = vmatprep.mubr.bf16.mxu0 %v2526
      %2619 = vmatmul.mubr.bf16.gmra.mxu0 %v2525
      %v2620 = vpop.f32.mrf.mxu0
      %v2621 = vadd.f32 0.0, %v2620
      %v2622 = vpop.f32.mrf.mxu0
      %v2623 = vadd.f32 0.0, %v2622
      %v2624 = vpop.f32.mrf.mxu0
      %v2625 = vpop.f32.mrf.mxu0
      %2626 = vdwg.mxu0
      %2627 = vmatprep.subr.bf16.mxu0 0
      %2628 = vmatpush1.bf16.msra.mxu0 0
      %2629 = vmatprep.subr.bf16.mxu0 0
      %2630 = vmatpush1.bf16.msra.mxu0 0
      %2631 = vmatprep.subr.bf16.mxu0 0
      %2632 = vmatpush1.bf16.msra.mxu0 0
      %2633 = vmatprep.subr.bf16.mxu0 0
      %2634 = vmatpush1.bf16.msra.mxu0 0
      %2635 = vmatprep.subr.bf16.mxu0 %v2554
      %2636 = vmatpush1.bf16.msra.mxu0 %v2551
      %2637 = vmatprep.subr.bf16.mxu0 %v2464
      %2638 = vmatpush1.bf16.msra.mxu0 %v2463
      %2639 = vmatprep.subr.bf16.mxu0 %v2462
      %2640 = vmatpush1.bf16.msra.mxu0 %v2461
      %2641 = vmatprep.subr.bf16.mxu0 %v2460
      %2642 = vmatpush1.bf16.msra.mxu0 %v2459
      %2643 = vmatprep.subr.bf16.mxu0 0
      %2644 = vmatpush2.bf16.msra.mxu0 0
      %2645 = vmatprep.subr.bf16.mxu0 0
      %2646 = vmatpush2.bf16.msra.mxu0 0
      %2647 = vmatprep.subr.bf16.mxu0 0
      %2648 = vmatpush2.bf16.msra.mxu0 0
      %2649 = vmatprep.subr.bf16.mxu0 0
      %2650 = vmatpush2.bf16.msra.mxu0 0
      %2651 = vmatprep.subr.bf16.mxu0 0
      %2652 = vmatpush2.bf16.msra.mxu0 0
      %2653 = vmatprep.subr.bf16.mxu0 0
      %2654 = vmatpush2.bf16.msra.mxu0 0
      %2655 = vmatprep.subr.bf16.mxu0 0
      %2656 = vmatpush2.bf16.msra.mxu0 0
      %2657 = vmatprep.subr.bf16.mxu0 0
      %2658 = vmatpush2.bf16.msra.mxu0 0
      %2659 = vmatprep.mubr.bf16.mxu0 0
      %2660 = vmatmul.mubr.bf16.gmra.mxu0 %v2538
      %v2661 = vpop.f32.mrf.mxu0
      %v2662 = vadd.f32 %v2591, %v2661
      %v2663 = vpop.f32.mrf.mxu0
      %v2664 = vadd.f32 %v2593, %v2663
      %v2665 = vpop.f32.mrf.mxu0
      %v2666 = vadd.f32 %v2595, %v2665
      %v2667 = vpop.f32.mrf.mxu0
      %v2668 = vadd.f32 %v2597, %v2667
      %2669 = vmatprep.mubr.bf16.mxu0 0
      %2670 = vmatmul.mubr.bf16.gmra.mxu0 %v2541
      %v2671 = vpop.f32.mrf.mxu0
      %v2672 = vadd.f32 %v2601, %v2671
      %v2673 = vpop.f32.mrf.mxu0
      %v2674 = vadd.f32 %v2603, %v2673
      %v2675 = vpop.f32.mrf.mxu0
      %v2676 = vadd.f32 %v2605, %v2675
      %v2677 = vpop.f32.mrf.mxu0
      %v2678 = vadd.f32 %v2607, %v2677
      %2679 = vmatprep.mubr.bf16.mxu0 0
      %2680 = vmatmul.mubr.bf16.gmra.mxu0 %v2544
      %v2681 = vpop.f32.mrf.mxu0
      %v2682 = vadd.f32 %v2611, %v2681
      %v2683 = vpop.f32.mrf.mxu0
      %v2684 = vadd.f32 %v2613, %v2683
      %v2685 = vpop.f32.mrf.mxu0
      %v2686 = vadd.f32 %v2615, %v2685
      %v2687 = vpop.f32.mrf.mxu0
      %v2688 = vadd.f32 %v2617, %v2687
      %2689 = vmatprep.mubr.bf16.mxu0 0
      %2690 = vmatmul.mubr.bf16.gmra.mxu0 %v2547
      %v2691 = vpop.f32.mrf.mxu0
      %v2692 = vadd.f32 %v2621, %v2691
      %v2693 = vpop.f32.mrf.mxu0
      %v2694 = vadd.f32 %v2623, %v2693
      %v2695 = vpop.f32.mrf.mxu0
      %v2696 = vpop.f32.mrf.mxu0
      %2697 = vdwg.mxu0
      %v2698 = vld [vmem:[%s8] sm:$0xff]
      %v2699 = vld [vmem:[%s8 + $0x8] sm:$0xff]
      %v2700 = vld [vmem:[%s8 + $0x10] sm:$0xff]
      %v2701 = vld [vmem:[%s8 + $0x18] sm:$0xff]
      %v2702 = vld [vmem:[%s8 + $0x20] sm:$0xff]
      %v2703 = vld [vmem:[%s8 + $0x28] sm:$0xff]
      %v2704 = vld [vmem:[%s8 + $0x30] sm:$0xf]
      %2706 = vset.pattern.permute.xlu0 0
      %2707 = vperm.xlu0 %2706, %v2698
      %v2708 = vpop.permute.xlu0 %2707
      %2711 = vset.pattern.permute.xlu0 0
      %2712 = vperm.xlu0 %2711, %v2699
      %v2713 = vpop.permute.xlu0 %2712
      %2716 = vset.pattern.permute.xlu0 0
      %2717 = vperm.xlu0 %2716, %v2700
      %v2718 = vpop.permute.xlu0 %2717
      %2721 = vset.pattern.permute.xlu0 0
      %2722 = vperm.xlu0 %2721, %v2701
      %v2723 = vpop.permute.xlu0 %2722
      %2726 = vset.pattern.permute.xlu0 0
      %2727 = vperm.xlu0 %2726, %v2702
      %v2728 = vpop.permute.xlu0 %2727
      %2731 = vset.pattern.permute.xlu0 0
      %2732 = vperm.xlu0 %2731, %v2703
      %v2733 = vpop.permute.xlu0 %2732
      %2736 = vset.pattern.permute.xlu0 0
      %2737 = vperm.xlu0 %2736, %v2704
      %v2738 = vpop.permute.xlu0 %2737
      %v2740 = vmul.f32 %v2662, %v2708
      %v2741 = vmul.f32 %v2664, %v2708
      %v2742 = vmul.f32 %v2666, %v2713
      %v2743 = vmul.f32 %v2668, %v2713
      %v2744 = vmul.f32 %v2672, %v2718
      %v2745 = vmul.f32 %v2674, %v2718
      %v2746 = vmul.f32 %v2676, %v2723
      %v2747 = vmul.f32 %v2678, %v2723
      %v2748 = vmul.f32 %v2682, %v2728
      %v2749 = vmul.f32 %v2684, %v2728
      %v2750 = vmul.f32 %v2686, %v2733
      %v2751 = vmul.f32 %v2688, %v2733
      %v2752 = vmul.f32 %v2692, %v2738
      %v2753 = vmul.f32 %v2694, %v2738
      %v2754 = vld [vmem:[%s9] sm:$0xff]
      %v2755 = vld [vmem:[%s9 + $0x8] sm:$0xff]
      %v2756 = vld [vmem:[%s9 + $0x10] sm:$0xff]
      %v2757 = vld [vmem:[%s9 + $0x18] sm:$0xff]
      %v2758 = vld [vmem:[%s9 + $0x20] sm:$0xff]
      %v2759 = vld [vmem:[%s9 + $0x28] sm:$0xff]
      %v2760 = vld [vmem:[%s9 + $0x30] sm:$0xf]
      %2762 = vset.pattern.permute.xlu0 0
      %2763 = vperm.xlu0 %2762, %v2754
      %v2764 = vpop.permute.xlu0 %2763
      %2767 = vset.pattern.permute.xlu0 0
      %2768 = vperm.xlu0 %2767, %v2755
      %v2769 = vpop.permute.xlu0 %2768
      %2772 = vset.pattern.permute.xlu0 0
      %2773 = vperm.xlu0 %2772, %v2756
      %v2774 = vpop.permute.xlu0 %2773
      %2777 = vset.pattern.permute.xlu0 0
      %2778 = vperm.xlu0 %2777, %v2757
      %v2779 = vpop.permute.xlu0 %2778
      %2782 = vset.pattern.permute.xlu0 0
      %2783 = vperm.xlu0 %2782, %v2758
      %v2784 = vpop.permute.xlu0 %2783
      %2787 = vset.pattern.permute.xlu0 0
      %2788 = vperm.xlu0 %2787, %v2759
      %v2789 = vpop.permute.xlu0 %2788
      %2792 = vset.pattern.permute.xlu0 0
      %2793 = vperm.xlu0 %2792, %v2760
      %v2794 = vpop.permute.xlu0 %2793
      %v2796 = vadd.f32 %v2740, %v2764
      %v2797 = vadd.f32 %v2741, %v2764
      %v2798 = vadd.f32 %v2742, %v2769
      %v2799 = vadd.f32 %v2743, %v2769
      %v2800 = vadd.f32 %v2744, %v2774
      %v2801 = vadd.f32 %v2745, %v2774
      %v2802 = vadd.f32 %v2746, %v2779
      %v2803 = vadd.f32 %v2747, %v2779
      %v2804 = vadd.f32 %v2748, %v2784
      %v2805 = vadd.f32 %v2749, %v2784
      %v2806 = vadd.f32 %v2750, %v2789
      %v2807 = vadd.f32 %v2751, %v2789
      %v2808 = vadd.f32 %v2752, %v2794
      %v2809 = vadd.f32 %v2753, %v2794
      %v2810 = vmax.f32 %v2796, 0.0
      %v2811 = vmax.f32 %v2797, 0.0
      %v2812 = vmax.f32 %v2798, 0.0
      %v2813 = vmax.f32 %v2799, 0.0
      %v2814 = vmax.f32 %v2800, 0.0
      %v2815 = vmax.f32 %v2801, 0.0
      %v2816 = vmax.f32 %v2802, 0.0
      %v2817 = vmax.f32 %v2803, 0.0
      %v2818 = vmax.f32 %v2804, 0.0
      %v2819 = vmax.f32 %v2805, 0.0
      %v2820 = vmax.f32 %v2806, 0.0
      %v2821 = vmax.f32 %v2807, 0.0
      %v2822 = vmax.f32 %v2808, 0.0
      %v2823 = vmax.f32 %v2809, 0.0
      %v2832 = vrot.slane %v2816, 2
      %v2833 = vrot.slane %v2818, 2
      %v2834 = vsel %vm1797, %v2832, %v2833
      %v2835 = vrot.slane %v2817, 2
      %v2836 = vrot.slane %v2819, 2
      %v2837 = vsel %vm1797, %v2835, %v2836
      %v2838 = vrot.slane %v2820, 2
      %v2839 = vsel %vm1797, %v2833, %v2838
      %v2840 = vrot.slane %v2821, 2
      %v2841 = vsel %vm1797, %v2836, %v2840
      %v2842 = vrot.slane %v2822, 2
      %v2843 = vsel %vm1797, %v2838, %v2842
      %v2844 = vrot.slane %v2823, 2
      %v2845 = vsel %vm1797, %v2840, %v2844
      %v2854 = vadd.f32 %v2810, %v2834
      %v2855 = vadd.f32 %v2811, %v2837
      %v2856 = vadd.f32 %v2812, %v2839
      %v2857 = vadd.f32 %v2813, %v2841
      %v2858 = vadd.f32 %v2814, %v2843
      %v2859 = vadd.f32 %v2815, %v2845
      %v2860 = vadd.f32 %v2816, %v2842
      %v2861 = vadd.f32 %v2817, %v2844
      %v2870 = vrot.slane %v2854, 7
      %v2871 = vrot.slane %v2855, 7
      %v2872 = vrot.slane %v2856, 7
      %v2873 = vsel %vm2549, %v2870, %v2872
      %v2874 = vrot.slane %v2857, 7
      %v2875 = vsel %vm2549, %v2871, %v2874
      %v2876 = vrot.slane %v2858, 7
      %v2877 = vsel %vm2549, %v2872, %v2876
      %v2878 = vrot.slane %v2859, 7
      %v2879 = vsel %vm2549, %v2874, %v2878
      %v2880 = vrot.slane %v2860, 7
      %v2881 = vsel %vm2549, %v2876, %v2880
      %v2882 = vrot.slane %v2861, 7
      %v2883 = vsel %vm2549, %v2878, %v2882
      %2892 = vst [vmem:[%s359 + $0x30] sm:$0xfe] %v2870
      %2893 = vst [vmem:[%s359 + $0x38] sm:$0xfe] %v2871
      %2894 = vst [vmem:[%s359 + $0x40] sm:$0xff] %v2873
      %2895 = vst [vmem:[%s359 + $0x48] sm:$0xff] %v2875
      %2896 = vst [vmem:[%s359 + $0x50] sm:$0xff] %v2877
      %2897 = vst [vmem:[%s359 + $0x58] sm:$0xff] %v2879
      %2898 = vst [vmem:[%s359 + $0x60] sm:$0x7] %v2881
      %2899 = vst [vmem:[%s359 + $0x68] sm:$0x7] %v2883
      %p2900 = scmp.lt.s32.totalorder %s21, 1
      %s2901 = scalar_select %p2900, %s21, 1
      %s2902 = smul.addr %s2901, 14
      %s2903 = smul.addr %s2902, 8
      %s2904 = scalar_lea.vmem %s10, %s2903
      // Predicated region
      $region61: #{dc_block_encoder_fwd.1} parent=59 // pred_check
        %p2905 = pneg %p254
      $region62: #{dc_block_encoder_fwd.1} parent=59 // pred_check_branch
        %2907 = sbr.rel (%p2905) target = $region64
      $region63: #{dc_block_encoder_fwd.1} parent=59 // pred_region
        _
      $region64: #{dc_block_encoder_fwd.1} parent=59 // pred_fallthru
        _
    $region60: #{dc_block_encoder_fwd.1} parent=5 // pred_fallthru
      _
    %p2908 = scmp.le.s32.totalorder 2, %s16
    // Predicated region
    $region65: #{dc_block_encoder_fwd.1} parent=5 // pred_check
      %p2909 = pneg %p2908
    $region66: #{dc_block_encoder_fwd.1} parent=5 // pred_check_branch
      %2911 = sbr.rel (%p2909) target = $region68
    $region67: #{dc_block_encoder_fwd.1} parent=5 // pred_region
      %s2912 = ssub.s32 %s16, 2
      // Predicated region
      $region69: #{dc_block_encoder_fwd.1} parent=67 // pred_check
        %p2913 = pneg %p260
      $region70: #{dc_block_encoder_fwd.1} parent=67 // pred_check_branch
        %2915 = sbr.rel (%p2913) target = $region72
      $region71: #{dc_block_encoder_fwd.1} parent=67 // pred_region
        %p2916 = scmp.lt.s32.totalorder %s22, 1
        %s2917 = scalar_select %p2916, %s22, 1
        %s2918 = smul.addr %s2917, 14
        %s2919 = smul.addr %s2918, 8
        %s2920 = scalar_lea.vmem %s10, %s2919
      $region72: #{dc_block_encoder_fwd.1} parent=67 // pred_fallthru
        _
    $region68: #{dc_block_encoder_fwd.1} parent=5 // pred_fallthru
      _
  $region6: #{dc_block_encoder_fwd.1} parent=0 // loop_footer
    %s20 = sadd.s32 1, %s16
  $region7: #{dc_block_encoder_fwd.1} parent=0 // loop_footer_branch
    %15 = sbr.rel target = $region3
  $region8: #{dc_block_encoder_fwd.1} parent=0 // loop_exit
    _

</llo_original>
